<compile_context>
chip_gen: v7x
topology: tpu7x:2x2x1
jax: 0.10.0
libtpu: 0.0.40
codegen_flags: <defaults>
</compile_context>

<pallas_src>
import math
from functools import partial

import jax
import jax.numpy as jnp
from jax import lax
from jax.experimental import pallas as pl
from jax.experimental.pallas import tpu as pltpu

# MXU operand dtype (f32 accumulation via preferred_element_type).
MXU_DTYPE = jnp.bfloat16
LN_EPS = 1e-5  # PyTorch nn.LayerNorm default


# ----------------------------- in-kernel helpers -----------------------------

def _mha(q, k, v, w_o, b_o, num_heads, scale):
    """Multi-head scaled-dot attention + output projection.

    q: (Bt, Sq, D) f32; k, v: (Bt, Sk, D) f32; w_o: (D, D) bf16; b_o: (1, D) f32.
    All heads' score and p@v contractions run as single batched matmuls with a
    leading batch dim g = head * Bt + example; the output projection is one
    (Bt*Sq, D) @ (D, D) matmul. Returns (Bt*Sq, D) f32.
    """
    Bt, Sq, D = q.shape
    Sk = k.shape[1]
    dk = D // num_heads

    def to_heads(t):  # (Bt, S, D) -> (H*Bt, S, dk), head-major over the batch dim
        return jnp.concatenate(
            [t[:, :, h * dk:(h + 1) * dk] for h in range(num_heads)], axis=0
        ).astype(MXU_DTYPE)

    qh, kh, vh = to_heads(q), to_heads(k), to_heads(v)

    # All heads' scores in one batched contraction (leading batch dim).
    s = jnp.einsum("gqd,gkd->gqk", qh, kh,
                   preferred_element_type=jnp.float32) * scale
    s = s - jnp.max(s, axis=-1, keepdims=True)
    p = jnp.exp(s)
    p = p * pl.reciprocal(jnp.sum(p, axis=-1, keepdims=True), approx=True)

    # All heads' p @ v in one batched contraction.
    ctx = jnp.einsum("gqk,gkd->gqd", p.astype(MXU_DTYPE), vh,
                     preferred_element_type=jnp.float32)       # (H*Bt, Sq, dk)

    # Re-pack heads onto the lane dim and do the output projection as ONE matmul.
    ctx = jnp.concatenate(
        [ctx[h * Bt:(h + 1) * Bt] for h in range(num_heads)], axis=-1)  # (Bt,Sq,D)
    out = jnp.dot(ctx.reshape(Bt * Sq, D).astype(MXU_DTYPE), w_o,
                  preferred_element_type=jnp.float32) + b_o
    return out                                                  # (Bt*Sq, D)


def _add_layernorm(x, y, gamma, beta):
    z = x + y
    mean = jnp.mean(z, axis=-1, keepdims=True)
    cent = z - mean
    var = jnp.mean(cent * cent, axis=-1, keepdims=True)
    return cent * lax.rsqrt(var + LN_EPS) * gamma + beta


def _ffn(x, w1, b1, w2, b2):
    h = jnp.dot(x.astype(MXU_DTYPE), w1, preferred_element_type=jnp.float32) + b1
    h = jnp.maximum(h, 0.0)                      # ReLU; dropout = identity
    return jnp.dot(h.astype(MXU_DTYPE), w2, preferred_element_type=jnp.float32) + b2


# --------------------------------- kernel ------------------------------------

def _decoder_layer_kernel(
    x_ref, enc_ref,
    # self-attention block
    wqkv1_ref, bqkv1_ref, wo1_ref, bo1_ref, g1_ref, be1_ref,
    # cross-attention block
    wq2_ref, bq2_ref, wkv2_ref, bkv2_ref, wo2_ref, bo2_ref, g2_ref, be2_ref,
    # feed-forward block
    wf1_ref, bf1_ref, wf2_ref, bf2_ref, g3_ref, be3_ref,
    o_ref,
    *, num_heads,
):
    Bt, S_dec, D = x_ref.shape
    S_enc = enc_ref.shape[1]
    dk = D // num_heads
    scale = 1.0 / math.sqrt(dk)

    # Flatten the example block into the matmul M dimension.
    xf = x_ref[...].reshape(Bt * S_dec, D)        # (M, D)  f32
    encf = enc_ref[...].reshape(Bt * S_enc, D)    # (Me, D) f32

    # ---- self-attention (fused QKV projection) + add & norm ----
    qkv = jnp.dot(xf.astype(MXU_DTYPE), wqkv1_ref[...],
                  preferred_element_type=jnp.float32) + bqkv1_ref[...]
    q = qkv[:, :D].reshape(Bt, S_dec, D)
    k = qkv[:, D:2 * D].reshape(Bt, S_dec, D)
    v = qkv[:, 2 * D:].reshape(Bt, S_dec, D)
    sa = _mha(q, k, v, wo1_ref[...], bo1_ref[...], num_heads, scale)
    xf = _add_layernorm(xf, sa, g1_ref[...], be1_ref[...])

    # ---- encoder-decoder attention (fused KV projection) + add & norm ----
    q2 = jnp.dot(xf.astype(MXU_DTYPE), wq2_ref[...],
                 preferred_element_type=jnp.float32) + bq2_ref[...]
    kv2 = jnp.dot(encf.astype(MXU_DTYPE), wkv2_ref[...],
                  preferred_element_type=jnp.float32) + bkv2_ref[...]
    k2 = kv2[:, :D].reshape(Bt, S_enc, D)
    v2 = kv2[:, D:].reshape(Bt, S_enc, D)
    ca = _mha(q2.reshape(Bt, S_dec, D), k2, v2, wo2_ref[...], bo2_ref[...],
              num_heads, scale)
    xf = _add_layernorm(xf, ca, g2_ref[...], be2_ref[...])

    # ---- positionwise feed-forward + add & norm ----
    ff = _ffn(xf, wf1_ref[...], bf1_ref[...], wf2_ref[...], bf2_ref[...])
    xf = _add_layernorm(xf, ff, g3_ref[...], be3_ref[...])

    o_ref[...] = xf.reshape(Bt, S_dec, D).astype(o_ref.dtype)


# --------------------------- parameter preparation ---------------------------

def fuse_params(params):
    """One-time prep (hoisted out of the forward path): fuse the Q/K/V and K/V
    projection weights into wide matmuls and cast projection/FFN weights to
    bf16. LN params and biases stay f32."""
    sa, ca = params["self_attn"], params["cross_attn"]
    w = lambda a: a.astype(MXU_DTYPE)
    return dict(
        w_qkv1=w(jnp.concatenate([sa["wq"], sa["wk"], sa["wv"]], axis=1)),
        b_qkv1=jnp.concatenate([sa["bq"], sa["bk"], sa["bv"]], axis=1),
        w_o1=w(sa["wo"]), b_o1=sa["bo"],
        w_q2=w(ca["wq"]), b_q2=ca["bq"],
        w_kv2=w(jnp.concatenate([ca["wk"], ca["wv"]], axis=1)),
        b_kv2=jnp.concatenate([ca["bk"], ca["bv"]], axis=1),
        w_o2=w(ca["wo"]), b_o2=ca["bo"],
        w_f1=w(params["ff_w1"]), b_f1=params["ff_b1"],
        w_f2=w(params["ff_w2"]), b_f2=params["ff_b2"],
        ln1_g=params["ln1_g"], ln1_b=params["ln1_b"],
        ln2_g=params["ln2_g"], ln2_b=params["ln2_b"],
        ln3_g=params["ln3_g"], ln3_b=params["ln3_b"],
    )


def _pick_block_batch(B, S):
    """Smallest divisor of B whose row block (Bt*S) reaches ~256 MXU rows;
    falls back to the whole batch (single grid step) when B*S is small."""
    bt = 1
    for cand in range(1, B + 1):
        if B % cand == 0:
            bt = cand
            if cand * S >= 256:
                break
    return bt


# --------------------------- module forward ----------------------------------

def decoder_layer_forward(x, enc_output, fp, *, num_heads, block_batch=None):
    B, S_dec, D = x.shape
    S_enc = enc_output.shape[1]
    F = fp["w_f1"].shape[1]

    Bt = _pick_block_batch(B, S_dec) if block_batch is None else block_batch
    assert B % Bt == 0
    grid = (B // Bt,)

    def rep(shape):  # weight/bias block: whole array, same block every step
        return pl.BlockSpec(shape, lambda b: (0,) * len(shape))

    in_specs = [
        pl.BlockSpec((Bt, S_dec, D), lambda b: (b, 0, 0)),
        pl.BlockSpec((Bt, S_enc, D), lambda b: (b, 0, 0)),
        # self-attention
        rep((D, 3 * D)), rep((1, 3 * D)), rep((D, D)), rep((1, D)),
        rep((1, D)), rep((1, D)),
        # cross-attention
        rep((D, D)), rep((1, D)), rep((D, 2 * D)), rep((1, 2 * D)),
        rep((D, D)), rep((1, D)), rep((1, D)), rep((1, D)),
        # feed-forward
        rep((D, F)), rep((1, F)), rep((F, D)), rep((1, D)),
        rep((1, D)), rep((1, D)),
    ]

    # ---- explicit VMEM budget (review: v7x has 64 MiB physical VMEM) ----
    w_bytes = 2 * (3 * D * D + D * D + D * D + 2 * D * D + D * D + 2 * D * F)  # bf16
    b_bytes = 4 * (3 * D + 2 * D + 2 * D + D + F + D + 6 * D)                   # f32
    io_block = 4 * Bt * (2 * S_dec * D + S_enc * D)
    scratch = 4 * (Bt * S_dec * 3 * D
                   + num_heads * Bt * S_dec * max(S_dec, S_enc)
                   + Bt * S_dec * F + 4 * Bt * S_dec * D)
    vmem_limit = int(min(64 * 2 ** 20,
                         max(32 * 2 ** 20,
                             2 * (w_bytes + b_bytes + io_block) + scratch)))

    # ---- advisory cost estimate for the surrounding XLA schedule ----
    flops = int(
        2 * B * S_dec * D * (3 * D + 3 * D)        # QKV, q2, out-proj x2
        + 2 * B * S_enc * D * 2 * D                # KV (cross)
        + 4 * B * S_dec * (S_dec + S_enc) * D      # scores + p@v (both attns)
        + 4 * B * S_dec * D * F)                   # FFN
    transcendentals = int(B * num_heads * S_dec * (S_dec + S_enc))
    bytes_accessed = int(w_bytes + b_bytes + 4 * B * (2 * S_dec * D + S_enc * D))

    return pl.pallas_call(
        partial(_decoder_layer_kernel, num_heads=num_heads),
        out_shape=jax.ShapeDtypeStruct((B, S_dec, D), jnp.float32),
        grid=grid,
        in_specs=in_specs,
        out_specs=pl.BlockSpec((Bt, S_dec, D), lambda b: (b, 0, 0)),
        compiler_params=pltpu.CompilerParams(
            dimension_semantics=("parallel",),   # batch axis shards across TCs
            vmem_limit_bytes=vmem_limit,
        ),
        cost_estimate=pl.CostEstimate(
            flops=flops, transcendentals=transcendentals,
            bytes_accessed=bytes_accessed),
    )(
        x, enc_output,
        fp["w_qkv1"], fp["b_qkv1"], fp["w_o1"], fp["b_o1"],
        fp["ln1_g"], fp["ln1_b"],
        fp["w_q2"], fp["b_q2"], fp["w_kv2"], fp["b_kv2"],
        fp["w_o2"], fp["b_o2"], fp["ln2_g"], fp["ln2_b"],
        fp["w_f1"], fp["b_f1"], fp["w_f2"], fp["b_f2"],
        fp["ln3_g"], fp["ln3_b"],
    )


# ----------------------------- pure-JAX reference -----------------------------

def _reference_forward(x, enc, params, num_heads):
    def mha(xq, xkv, p):
        B, Sq, D = xq.shape
        Sk = xkv.shape[1]
        H, dk = num_heads, D // num_heads
        q = (xq @ p["wq"] + p["bq"]).reshape(B, Sq, H, dk).transpose(0, 2, 1, 3)
        k = (xkv @ p["wk"] + p["bk"]).reshape(B, Sk, H, dk).transpose(0, 2, 1, 3)
        v = (xkv @ p["wv"] + p["bv"]).reshape(B, Sk, H, dk).transpose(0, 2, 1, 3)
        s = jnp.einsum("bhqd,bhkd->bhqk", q, k) / math.sqrt(dk)
        pr = jax.nn.softmax(s, axis=-1)
        ctx = jnp.einsum("bhqk,bhkd->bhqd", pr, v)
        ctx = ctx.transpose(0, 2, 1, 3).reshape(B, Sq, D)
        return ctx @ p["wo"] + p["bo"]

    def ln(z, g, b):
        m = z.mean(-1, keepdims=True)
        vv = ((z - m) ** 2).mean(-1, keepdims=True)
        return (z - m) * lax.rsqrt(vv + LN_EPS) * g + b

    h = ln(x + mha(x, x, params["self_attn"]), params["ln1_g"], params["ln1_b"])
    h = ln(h + mha(h, enc, params["cross_attn"]),
           params["ln2_g"], params["ln2_b"])
    ff = jnp.maximum(h @ params["ff_w1"] + params["ff_b1"], 0.0)
    ff = ff @ params["ff_w2"] + params["ff_b2"]
    return ln(h + ff, params["ln3_g"], params["ln3_b"])


# ----------------------------- param init ------------------------------------

def init_params(key, d_model, d_ff):
    ks = jax.random.split(key, 12)

    def lin(k, din, dout):
        w = jax.random.normal(k, (din, dout), jnp.float32) * 0.02
        b = jnp.zeros((1, dout), jnp.float32)
        return w, b

    def attn_params(k0, k1, k2, k3):
        wq, bq = lin(k0, d_model, d_model)
        wk, bk = lin(k1, d_model, d_model)
        wv, bv = lin(k2, d_model, d_model)
        wo, bo = lin(k3, d_model, d_model)
        return dict(wq=wq, bq=bq, wk=wk, bk=bk, wv=wv, bv=bv, wo=wo, bo=bo)

    ff_w1, ff_b1 = lin(ks[8], d_model, d_ff)
    ff_w2, ff_b2 = lin(ks[9], d_ff, d_model)

    ones = jnp.ones((1, d_model), jnp.float32)
    zeros = jnp.zeros((1, d_model), jnp.float32)

    return dict(
        self_attn=attn_params(ks[0], ks[1], ks[2], ks[3]),
        cross_attn=attn_params(ks[4], ks[5], ks[6], ks[7]),
        ff_w1=ff_w1, ff_b1=ff_b1, ff_w2=ff_w2, ff_b2=ff_b2,
        ln1_g=ones, ln1_b=zeros,
        ln2_g=ones, ln2_b=zeros,
        ln3_g=ones, ln3_b=zeros,
    )


# --------------------------------- main ---------------------------------------

if __name__ == "__main__":
    d_model, num_heads, d_ff = 32, 4, 64
    B, S_dec, S_enc = 2, 8, 8

    key = jax.random.PRNGKey(0)
    k_x, k_enc, k_p = jax.random.split(key, 3)

    x = jax.random.normal(k_x, (B, S_dec, d_model), jnp.float32)
    enc_output = jax.random.normal(k_enc, (B, S_enc, d_model), jnp.float32)
    params = init_params(k_p, d_model, d_ff)
    fused = fuse_params(params)   # one-time fusion / bf16 cast (not per-forward)

    fwd = jax.jit(decoder_layer_forward,
                  static_argnames=("num_heads", "block_batch"))
    out = fwd(x, enc_output, fused, num_heads=num_heads)
    out = jax.block_until_ready(out)

    ref = _reference_forward(x, enc_output, params, num_heads)
    max_err = float(jnp.max(jnp.abs(out - ref)))

    assert out.shape == (B, S_dec, d_model)
    assert bool(jnp.all(jnp.isfinite(out)))
    # bf16 MXU operands (f32 accumulate) => small deviation from f32 reference.
    assert max_err < 0.15, f"mismatch vs pure-JAX reference: {max_err}"
    print("KERNEL_OK")
</pallas_src>

<mosaic_0001>
module attributes {stable_mosaic.version = 11 : i64} {
  func.func @_decoder_layer_kernel(%arg0: i32, %arg1: memref<2x8x32xf32, #tpu.memory_space<vmem>>, %arg2: memref<2x8x32xf32, #tpu.memory_space<vmem>>, %arg3: memref<32x96xbf16, #tpu.memory_space<vmem>>, %arg4: memref<1x96xf32, #tpu.memory_space<vmem>>, %arg5: memref<32x32xbf16, #tpu.memory_space<vmem>>, %arg6: memref<1x32xf32, #tpu.memory_space<vmem>>, %arg7: memref<1x32xf32, #tpu.memory_space<vmem>>, %arg8: memref<1x32xf32, #tpu.memory_space<vmem>>, %arg9: memref<32x32xbf16, #tpu.memory_space<vmem>>, %arg10: memref<1x32xf32, #tpu.memory_space<vmem>>, %arg11: memref<32x64xbf16, #tpu.memory_space<vmem>>, %arg12: memref<1x64xf32, #tpu.memory_space<vmem>>, %arg13: memref<32x32xbf16, #tpu.memory_space<vmem>>, %arg14: memref<1x32xf32, #tpu.memory_space<vmem>>, %arg15: memref<1x32xf32, #tpu.memory_space<vmem>>, %arg16: memref<1x32xf32, #tpu.memory_space<vmem>>, %arg17: memref<32x64xbf16, #tpu.memory_space<vmem>>, %arg18: memref<1x64xf32, #tpu.memory_space<vmem>>, %arg19: memref<64x32xbf16, #tpu.memory_space<vmem>>, %arg20: memref<1x32xf32, #tpu.memory_space<vmem>>, %arg21: memref<1x32xf32, #tpu.memory_space<vmem>>, %arg22: memref<1x32xf32, #tpu.memory_space<vmem>>, %arg23: memref<2x8x32xf32, #tpu.memory_space<vmem>>) attributes {dimension_semantics = [#tpu.dimension_semantics<parallel>], iteration_bounds = array<i64: 1>, scalar_prefetch = 0 : i64, scratch_operands = 0 : i64, tpu.core_type = #tpu.core_type<tc>, window_params = [{transform_indices = @transform_0, window_bounds = array<i64: 2, 8, 32>}, {transform_indices = @transform_1, window_bounds = array<i64: 2, 8, 32>}, {pipeline_mode = #tpu.pipeline_mode<synchronous>, transform_indices = @transform_2, window_bounds = array<i64: 32, 96>}, {pipeline_mode = #tpu.pipeline_mode<synchronous>, transform_indices = @transform_3, window_bounds = array<i64: 1, 96>}, {pipeline_mode = #tpu.pipeline_mode<synchronous>, transform_indices = @transform_4, window_bounds = array<i64: 32, 32>}, {pipeline_mode = #tpu.pipeline_mode<synchronous>, transform_indices = @transform_5, window_bounds = array<i64: 1, 32>}, {pipeline_mode = #tpu.pipeline_mode<synchronous>, transform_indices = @transform_6, window_bounds = array<i64: 1, 32>}, {pipeline_mode = #tpu.pipeline_mode<synchronous>, transform_indices = @transform_7, window_bounds = array<i64: 1, 32>}, {pipeline_mode = #tpu.pipeline_mode<synchronous>, transform_indices = @transform_8, window_bounds = array<i64: 32, 32>}, {pipeline_mode = #tpu.pipeline_mode<synchronous>, transform_indices = @transform_9, window_bounds = array<i64: 1, 32>}, {pipeline_mode = #tpu.pipeline_mode<synchronous>, transform_indices = @transform_10, window_bounds = array<i64: 32, 64>}, {pipeline_mode = #tpu.pipeline_mode<synchronous>, transform_indices = @transform_11, window_bounds = array<i64: 1, 64>}, {pipeline_mode = #tpu.pipeline_mode<synchronous>, transform_indices = @transform_12, window_bounds = array<i64: 32, 32>}, {pipeline_mode = #tpu.pipeline_mode<synchronous>, transform_indices = @transform_13, window_bounds = array<i64: 1, 32>}, {pipeline_mode = #tpu.pipeline_mode<synchronous>, transform_indices = @transform_14, window_bounds = array<i64: 1, 32>}, {pipeline_mode = #tpu.pipeline_mode<synchronous>, transform_indices = @transform_15, window_bounds = array<i64: 1, 32>}, {pipeline_mode = #tpu.pipeline_mode<synchronous>, transform_indices = @transform_16, window_bounds = array<i64: 32, 64>}, {pipeline_mode = #tpu.pipeline_mode<synchronous>, transform_indices = @transform_17, window_bounds = array<i64: 1, 64>}, {pipeline_mode = #tpu.pipeline_mode<synchronous>, transform_indices = @transform_18, window_bounds = array<i64: 64, 32>}, {pipeline_mode = #tpu.pipeline_mode<synchronous>, transform_indices = @transform_19, window_bounds = array<i64: 1, 32>}, {pipeline_mode = #tpu.pipeline_mode<synchronous>, transform_indices = @transform_20, window_bounds = array<i64: 1, 32>}, {pipeline_mode = #tpu.pipeline_mode<synchronous>, transform_indices = @transform_21, window_bounds = array<i64: 1, 32>}, {transform_indices = @transform_22, window_bounds = array<i64: 2, 8, 32>}]} {
    %c0 = arith.constant 0 : index
    %c0_0 = arith.constant 0 : index
    %c0_1 = arith.constant 0 : index
    %0 = vector.load %arg1[%c0, %c0_0, %c0_1] : memref<2x8x32xf32, #tpu.memory_space<vmem>>, vector<2x8x32xf32>
    %1 = vector.shape_cast %0 : vector<2x8x32xf32> to vector<16x32xf32>
    %c0_2 = arith.constant 0 : index
    %c0_3 = arith.constant 0 : index
    %c0_4 = arith.constant 0 : index
    %2 = vector.load %arg2[%c0_2, %c0_3, %c0_4] : memref<2x8x32xf32, #tpu.memory_space<vmem>>, vector<2x8x32xf32>
    %3 = vector.shape_cast %2 : vector<2x8x32xf32> to vector<16x32xf32>
    %4 = arith.truncf %1 : vector<16x32xf32> to vector<16x32xbf16>
    %c0_5 = arith.constant 0 : index
    %c0_6 = arith.constant 0 : index
    %5 = vector.load %arg3[%c0_5, %c0_6] : memref<32x96xbf16, #tpu.memory_space<vmem>>, vector<32x96xbf16>
    %cst = arith.constant dense<0.000000e+00> : vector<16x96xf32>
    %6 = tpu.matmul %4, %5, %cst {dimension_numbers = #tpu.dot_dimension_numbers<[1], [0], [0], [1], [0, 0, 1, 1], [], []>} : vector<16x32xbf16>, vector<32x96xbf16>, vector<16x96xf32> -> vector<16x96xf32>
    %c0_7 = arith.constant 0 : index
    %c0_8 = arith.constant 0 : index
    %7 = vector.load %arg4[%c0_7, %c0_8] : memref<1x96xf32, #tpu.memory_space<vmem>>, vector<1x96xf32>
    %8 = vector.broadcast %7 : vector<1x96xf32> to vector<16x96xf32>
    %9 = arith.addf %6, %8 : vector<16x96xf32>
    %10 = vector.extract_strided_slice %9 {offsets = [0, 0], sizes = [16, 32], strides = [1, 1]} : vector<16x96xf32> to vector<16x32xf32>
    %11 = vector.shape_cast %10 : vector<16x32xf32> to vector<2x8x32xf32>
    %12 = vector.extract_strided_slice %9 {offsets = [0, 32], sizes = [16, 32], strides = [1, 1]} : vector<16x96xf32> to vector<16x32xf32>
    %13 = vector.shape_cast %12 : vector<16x32xf32> to vector<2x8x32xf32>
    %14 = vector.extract_strided_slice %9 {offsets = [0, 64], sizes = [16, 32], strides = [1, 1]} : vector<16x96xf32> to vector<16x32xf32>
    %15 = vector.shape_cast %14 : vector<16x32xf32> to vector<2x8x32xf32>
    %c0_9 = arith.constant 0 : index
    %c0_10 = arith.constant 0 : index
    %16 = vector.load %arg5[%c0_9, %c0_10] : memref<32x32xbf16, #tpu.memory_space<vmem>>, vector<32x32xbf16>
    %c0_11 = arith.constant 0 : index
    %c0_12 = arith.constant 0 : index
    %17 = vector.load %arg6[%c0_11, %c0_12] : memref<1x32xf32, #tpu.memory_space<vmem>>, vector<1x32xf32>
    %18 = vector.extract_strided_slice %11 {offsets = [0, 0, 0], sizes = [2, 8, 8], strides = [1, 1, 1]} : vector<2x8x32xf32> to vector<2x8x8xf32>
    %19 = vector.extract_strided_slice %11 {offsets = [0, 0, 8], sizes = [2, 8, 8], strides = [1, 1, 1]} : vector<2x8x32xf32> to vector<2x8x8xf32>
    %20 = vector.extract_strided_slice %11 {offsets = [0, 0, 16], sizes = [2, 8, 8], strides = [1, 1, 1]} : vector<2x8x32xf32> to vector<2x8x8xf32>
    %21 = vector.extract_strided_slice %11 {offsets = [0, 0, 24], sizes = [2, 8, 8], strides = [1, 1, 1]} : vector<2x8x32xf32> to vector<2x8x8xf32>
    %22 = tpu.concatenate %18, %19, %20, %21 in 0 : vector<2x8x8xf32>, vector<2x8x8xf32>, vector<2x8x8xf32>, vector<2x8x8xf32> -> vector<8x8x8xf32>
    %23 = arith.truncf %22 : vector<8x8x8xf32> to vector<8x8x8xbf16>
    %24 = vector.extract_strided_slice %13 {offsets = [0, 0, 0], sizes = [2, 8, 8], strides = [1, 1, 1]} : vector<2x8x32xf32> to vector<2x8x8xf32>
    %25 = vector.extract_strided_slice %13 {offsets = [0, 0, 8], sizes = [2, 8, 8], strides = [1, 1, 1]} : vector<2x8x32xf32> to vector<2x8x8xf32>
    %26 = vector.extract_strided_slice %13 {offsets = [0, 0, 16], sizes = [2, 8, 8], strides = [1, 1, 1]} : vector<2x8x32xf32> to vector<2x8x8xf32>
    %27 = vector.extract_strided_slice %13 {offsets = [0, 0, 24], sizes = [2, 8, 8], strides = [1, 1, 1]} : vector<2x8x32xf32> to vector<2x8x8xf32>
    %28 = tpu.concatenate %24, %25, %26, %27 in 0 : vector<2x8x8xf32>, vector<2x8x8xf32>, vector<2x8x8xf32>, vector<2x8x8xf32> -> vector<8x8x8xf32>
    %29 = arith.truncf %28 : vector<8x8x8xf32> to vector<8x8x8xbf16>
    %30 = vector.extract_strided_slice %15 {offsets = [0, 0, 0], sizes = [2, 8, 8], strides = [1, 1, 1]} : vector<2x8x32xf32> to vector<2x8x8xf32>
    %31 = vector.extract_strided_slice %15 {offsets = [0, 0, 8], sizes = [2, 8, 8], strides = [1, 1, 1]} : vector<2x8x32xf32> to vector<2x8x8xf32>
    %32 = vector.extract_strided_slice %15 {offsets = [0, 0, 16], sizes = [2, 8, 8], strides = [1, 1, 1]} : vector<2x8x32xf32> to vector<2x8x8xf32>
    %33 = vector.extract_strided_slice %15 {offsets = [0, 0, 24], sizes = [2, 8, 8], strides = [1, 1, 1]} : vector<2x8x32xf32> to vector<2x8x8xf32>
    %34 = tpu.concatenate %30, %31, %32, %33 in 0 : vector<2x8x8xf32>, vector<2x8x8xf32>, vector<2x8x8xf32>, vector<2x8x8xf32> -> vector<8x8x8xf32>
    %35 = arith.truncf %34 : vector<8x8x8xf32> to vector<8x8x8xbf16>
    "tpu.trace_start"() <{level = 10 : i32, message = "gqd,gkd->gqk"}> : () -> ()
    %cst_13 = arith.constant dense<0.000000e+00> : vector<8x8x8xf32>
    %36 = tpu.matmul %23, %29, %cst_13 {dimension_numbers = #tpu.dot_dimension_numbers<[2], [2], [1], [1], [0, 0, 0, 1, 1, 1], [0], [0]>} : vector<8x8x8xbf16>, vector<8x8x8xbf16>, vector<8x8x8xf32> -> vector<8x8x8xf32>
    "tpu.trace_stop"() : () -> ()
    %cst_14 = arith.constant 0.353553385 : f32
    %37 = vector.broadcast %cst_14 : f32 to vector<8x8x8xf32>
    %38 = arith.mulf %36, %37 : vector<8x8x8xf32>
    %cst_15 = arith.constant dense<0xFF800000> : vector<8x8xf32>
    %39 = vector.multi_reduction <maximumf>, %38, %cst_15 [2] : vector<8x8x8xf32> to vector<8x8xf32>
    %40 = vector.shape_cast %39 : vector<8x8xf32> to vector<8x8x1xf32>
    %41 = vector.broadcast %40 : vector<8x8x1xf32> to vector<8x8x8xf32>
    %42 = arith.subf %38, %41 : vector<8x8x8xf32>
    %43 = math.exp %42 : vector<8x8x8xf32>
    %cst_16 = arith.constant dense<0.000000e+00> : vector<8x8xf32>
    %44 = vector.multi_reduction <add>, %43, %cst_16 [2] : vector<8x8x8xf32> to vector<8x8xf32>
    %45 = vector.shape_cast %44 : vector<8x8xf32> to vector<8x8x1xf32>
    %46 = tpu.reciprocal %45 {approx = true} : vector<8x8x1xf32> -> vector<8x8x1xf32>
    %47 = vector.broadcast %46 : vector<8x8x1xf32> to vector<8x8x8xf32>
    %48 = arith.mulf %43, %47 : vector<8x8x8xf32>
    %49 = arith.truncf %48 : vector<8x8x8xf32> to vector<8x8x8xbf16>
    "tpu.trace_start"() <{level = 10 : i32, message = "gqk,gkd->gqd"}> : () -> ()
    %cst_17 = arith.constant dense<0.000000e+00> : vector<8x8x8xf32>
    %50 = tpu.matmul %49, %35, %cst_17 {dimension_numbers = #tpu.dot_dimension_numbers<[2], [1], [1], [2], [0, 0, 0, 1, 1, 2], [0], [0]>} : vector<8x8x8xbf16>, vector<8x8x8xbf16>, vector<8x8x8xf32> -> vector<8x8x8xf32>
    "tpu.trace_stop"() : () -> ()
    %51 = vector.extract_strided_slice %50 {offsets = [0, 0, 0], sizes = [2, 8, 8], strides = [1, 1, 1]} : vector<8x8x8xf32> to vector<2x8x8xf32>
    %52 = vector.extract_strided_slice %50 {offsets = [2, 0, 0], sizes = [2, 8, 8], strides = [1, 1, 1]} : vector<8x8x8xf32> to vector<2x8x8xf32>
    %53 = vector.extract_strided_slice %50 {offsets = [4, 0, 0], sizes = [2, 8, 8], strides = [1, 1, 1]} : vector<8x8x8xf32> to vector<2x8x8xf32>
    %54 = vector.extract_strided_slice %50 {offsets = [6, 0, 0], sizes = [2, 8, 8], strides = [1, 1, 1]} : vector<8x8x8xf32> to vector<2x8x8xf32>
    %55 = tpu.concatenate %51, %52, %53, %54 in 2 : vector<2x8x8xf32>, vector<2x8x8xf32>, vector<2x8x8xf32>, vector<2x8x8xf32> -> vector<2x8x32xf32>
    %56 = vector.shape_cast %55 : vector<2x8x32xf32> to vector<16x32xf32>
    %57 = arith.truncf %56 : vector<16x32xf32> to vector<16x32xbf16>
    %cst_18 = arith.constant dense<0.000000e+00> : vector<16x32xf32>
    %58 = tpu.matmul %57, %16, %cst_18 {dimension_numbers = #tpu.dot_dimension_numbers<[1], [0], [0], [1], [0, 0, 1, 1], [], []>} : vector<16x32xbf16>, vector<32x32xbf16>, vector<16x32xf32> -> vector<16x32xf32>
    %59 = vector.broadcast %17 : vector<1x32xf32> to vector<16x32xf32>
    %60 = arith.addf %58, %59 : vector<16x32xf32>
    %c0_19 = arith.constant 0 : index
    %c0_20 = arith.constant 0 : index
    %61 = vector.load %arg7[%c0_19, %c0_20] : memref<1x32xf32, #tpu.memory_space<vmem>>, vector<1x32xf32>
    %c0_21 = arith.constant 0 : index
    %c0_22 = arith.constant 0 : index
    %62 = vector.load %arg8[%c0_21, %c0_22] : memref<1x32xf32, #tpu.memory_space<vmem>>, vector<1x32xf32>
    %63 = arith.addf %1, %60 : vector<16x32xf32>
    %cst_23 = arith.constant dense<0.000000e+00> : vector<16xf32>
    %64 = vector.multi_reduction <add>, %63, %cst_23 [1] : vector<16x32xf32> to vector<16xf32>
    %65 = vector.shape_cast %64 : vector<16xf32> to vector<16x1xf32>
    %cst_24 = arith.constant 3.200000e+01 : f32
    %66 = vector.broadcast %cst_24 : f32 to vector<16x1xf32>
    %67 = arith.divf %65, %66 : vector<16x1xf32>
    %68 = vector.broadcast %67 : vector<16x1xf32> to vector<16x32xf32>
    %69 = arith.subf %63, %68 : vector<16x32xf32>
    %70 = arith.mulf %69, %69 : vector<16x32xf32>
    %cst_25 = arith.constant dense<0.000000e+00> : vector<16xf32>
    %71 = vector.multi_reduction <add>, %70, %cst_25 [1] : vector<16x32xf32> to vector<16xf32>
    %72 = vector.shape_cast %71 : vector<16xf32> to vector<16x1xf32>
    %cst_26 = arith.constant 3.200000e+01 : f32
    %73 = vector.broadcast %cst_26 : f32 to vector<16x1xf32>
    %74 = arith.divf %72, %73 : vector<16x1xf32>
    %cst_27 = arith.constant 9.99999974E-6 : f32
    %75 = vector.broadcast %cst_27 : f32 to vector<16x1xf32>
    %76 = arith.addf %74, %75 : vector<16x1xf32>
    %77 = math.rsqrt %76 : vector<16x1xf32>
    %78 = vector.broadcast %77 : vector<16x1xf32> to vector<16x32xf32>
    %79 = arith.mulf %69, %78 : vector<16x32xf32>
    %80 = vector.broadcast %61 : vector<1x32xf32> to vector<16x32xf32>
    %81 = arith.mulf %79, %80 : vector<16x32xf32>
    %82 = vector.broadcast %62 : vector<1x32xf32> to vector<16x32xf32>
    %83 = arith.addf %81, %82 : vector<16x32xf32>
    %84 = arith.truncf %83 : vector<16x32xf32> to vector<16x32xbf16>
    %c0_28 = arith.constant 0 : index
    %c0_29 = arith.constant 0 : index
    %85 = vector.load %arg9[%c0_28, %c0_29] : memref<32x32xbf16, #tpu.memory_space<vmem>>, vector<32x32xbf16>
    %cst_30 = arith.constant dense<0.000000e+00> : vector<16x32xf32>
    %86 = tpu.matmul %84, %85, %cst_30 {dimension_numbers = #tpu.dot_dimension_numbers<[1], [0], [0], [1], [0, 0, 1, 1], [], []>} : vector<16x32xbf16>, vector<32x32xbf16>, vector<16x32xf32> -> vector<16x32xf32>
    %c0_31 = arith.constant 0 : index
    %c0_32 = arith.constant 0 : index
    %87 = vector.load %arg10[%c0_31, %c0_32] : memref<1x32xf32, #tpu.memory_space<vmem>>, vector<1x32xf32>
    %88 = vector.broadcast %87 : vector<1x32xf32> to vector<16x32xf32>
    %89 = arith.addf %86, %88 : vector<16x32xf32>
    %90 = arith.truncf %3 : vector<16x32xf32> to vector<16x32xbf16>
    %c0_33 = arith.constant 0 : index
    %c0_34 = arith.constant 0 : index
    %91 = vector.load %arg11[%c0_33, %c0_34] : memref<32x64xbf16, #tpu.memory_space<vmem>>, vector<32x64xbf16>
    %cst_35 = arith.constant dense<0.000000e+00> : vector<16x64xf32>
    %92 = tpu.matmul %90, %91, %cst_35 {dimension_numbers = #tpu.dot_dimension_numbers<[1], [0], [0], [1], [0, 0, 1, 1], [], []>} : vector<16x32xbf16>, vector<32x64xbf16>, vector<16x64xf32> -> vector<16x64xf32>
    %c0_36 = arith.constant 0 : index
    %c0_37 = arith.constant 0 : index
    %93 = vector.load %arg12[%c0_36, %c0_37] : memref<1x64xf32, #tpu.memory_space<vmem>>, vector<1x64xf32>
    %94 = vector.broadcast %93 : vector<1x64xf32> to vector<16x64xf32>
    %95 = arith.addf %92, %94 : vector<16x64xf32>
    %96 = vector.extract_strided_slice %95 {offsets = [0, 0], sizes = [16, 32], strides = [1, 1]} : vector<16x64xf32> to vector<16x32xf32>
    %97 = vector.shape_cast %96 : vector<16x32xf32> to vector<2x8x32xf32>
    %98 = vector.extract_strided_slice %95 {offsets = [0, 32], sizes = [16, 32], strides = [1, 1]} : vector<16x64xf32> to vector<16x32xf32>
    %99 = vector.shape_cast %98 : vector<16x32xf32> to vector<2x8x32xf32>
    %100 = vector.shape_cast %89 : vector<16x32xf32> to vector<2x8x32xf32>
    %c0_38 = arith.constant 0 : index
    %c0_39 = arith.constant 0 : index
    %101 = vector.load %arg13[%c0_38, %c0_39] : memref<32x32xbf16, #tpu.memory_space<vmem>>, vector<32x32xbf16>
    %c0_40 = arith.constant 0 : index
    %c0_41 = arith.constant 0 : index
    %102 = vector.load %arg14[%c0_40, %c0_41] : memref<1x32xf32, #tpu.memory_space<vmem>>, vector<1x32xf32>
    %103 = vector.extract_strided_slice %100 {offsets = [0, 0, 0], sizes = [2, 8, 8], strides = [1, 1, 1]} : vector<2x8x32xf32> to vector<2x8x8xf32>
    %104 = vector.extract_strided_slice %100 {offsets = [0, 0, 8], sizes = [2, 8, 8], strides = [1, 1, 1]} : vector<2x8x32xf32> to vector<2x8x8xf32>
    %105 = vector.extract_strided_slice %100 {offsets = [0, 0, 16], sizes = [2, 8, 8], strides = [1, 1, 1]} : vector<2x8x32xf32> to vector<2x8x8xf32>
    %106 = vector.extract_strided_slice %100 {offsets = [0, 0, 24], sizes = [2, 8, 8], strides = [1, 1, 1]} : vector<2x8x32xf32> to vector<2x8x8xf32>
    %107 = tpu.concatenate %103, %104, %105, %106 in 0 : vector<2x8x8xf32>, vector<2x8x8xf32>, vector<2x8x8xf32>, vector<2x8x8xf32> -> vector<8x8x8xf32>
    %108 = arith.truncf %107 : vector<8x8x8xf32> to vector<8x8x8xbf16>
    %109 = vector.extract_strided_slice %97 {offsets = [0, 0, 0], sizes = [2, 8, 8], strides = [1, 1, 1]} : vector<2x8x32xf32> to vector<2x8x8xf32>
    %110 = vector.extract_strided_slice %97 {offsets = [0, 0, 8], sizes = [2, 8, 8], strides = [1, 1, 1]} : vector<2x8x32xf32> to vector<2x8x8xf32>
    %111 = vector.extract_strided_slice %97 {offsets = [0, 0, 16], sizes = [2, 8, 8], strides = [1, 1, 1]} : vector<2x8x32xf32> to vector<2x8x8xf32>
    %112 = vector.extract_strided_slice %97 {offsets = [0, 0, 24], sizes = [2, 8, 8], strides = [1, 1, 1]} : vector<2x8x32xf32> to vector<2x8x8xf32>
    %113 = tpu.concatenate %109, %110, %111, %112 in 0 : vector<2x8x8xf32>, vector<2x8x8xf32>, vector<2x8x8xf32>, vector<2x8x8xf32> -> vector<8x8x8xf32>
    %114 = arith.truncf %113 : vector<8x8x8xf32> to vector<8x8x8xbf16>
    %115 = vector.extract_strided_slice %99 {offsets = [0, 0, 0], sizes = [2, 8, 8], strides = [1, 1, 1]} : vector<2x8x32xf32> to vector<2x8x8xf32>
    %116 = vector.extract_strided_slice %99 {offsets = [0, 0, 8], sizes = [2, 8, 8], strides = [1, 1, 1]} : vector<2x8x32xf32> to vector<2x8x8xf32>
    %117 = vector.extract_strided_slice %99 {offsets = [0, 0, 16], sizes = [2, 8, 8], strides = [1, 1, 1]} : vector<2x8x32xf32> to vector<2x8x8xf32>
    %118 = vector.extract_strided_slice %99 {offsets = [0, 0, 24], sizes = [2, 8, 8], strides = [1, 1, 1]} : vector<2x8x32xf32> to vector<2x8x8xf32>
    %119 = tpu.concatenate %115, %116, %117, %118 in 0 : vector<2x8x8xf32>, vector<2x8x8xf32>, vector<2x8x8xf32>, vector<2x8x8xf32> -> vector<8x8x8xf32>
    %120 = arith.truncf %119 : vector<8x8x8xf32> to vector<8x8x8xbf16>
    "tpu.trace_start"() <{level = 10 : i32, message = "gqd,gkd->gqk"}> : () -> ()
    %cst_42 = arith.constant dense<0.000000e+00> : vector<8x8x8xf32>
    %121 = tpu.matmul %108, %114, %cst_42 {dimension_numbers = #tpu.dot_dimension_numbers<[2], [2], [1], [1], [0, 0, 0, 1, 1, 1], [0], [0]>} : vector<8x8x8xbf16>, vector<8x8x8xbf16>, vector<8x8x8xf32> -> vector<8x8x8xf32>
    "tpu.trace_stop"() : () -> ()
    %cst_43 = arith.constant 0.353553385 : f32
    %122 = vector.broadcast %cst_43 : f32 to vector<8x8x8xf32>
    %123 = arith.mulf %121, %122 : vector<8x8x8xf32>
    %cst_44 = arith.constant dense<0xFF800000> : vector<8x8xf32>
    %124 = vector.multi_reduction <maximumf>, %123, %cst_44 [2] : vector<8x8x8xf32> to vector<8x8xf32>
    %125 = vector.shape_cast %124 : vector<8x8xf32> to vector<8x8x1xf32>
    %126 = vector.broadcast %125 : vector<8x8x1xf32> to vector<8x8x8xf32>
    %127 = arith.subf %123, %126 : vector<8x8x8xf32>
    %128 = math.exp %127 : vector<8x8x8xf32>
    %cst_45 = arith.constant dense<0.000000e+00> : vector<8x8xf32>
    %129 = vector.multi_reduction <add>, %128, %cst_45 [2] : vector<8x8x8xf32> to vector<8x8xf32>
    %130 = vector.shape_cast %129 : vector<8x8xf32> to vector<8x8x1xf32>
    %131 = tpu.reciprocal %130 {approx = true} : vector<8x8x1xf32> -> vector<8x8x1xf32>
    %132 = vector.broadcast %131 : vector<8x8x1xf32> to vector<8x8x8xf32>
    %133 = arith.mulf %128, %132 : vector<8x8x8xf32>
    %134 = arith.truncf %133 : vector<8x8x8xf32> to vector<8x8x8xbf16>
    "tpu.trace_start"() <{level = 10 : i32, message = "gqk,gkd->gqd"}> : () -> ()
    %cst_46 = arith.constant dense<0.000000e+00> : vector<8x8x8xf32>
    %135 = tpu.matmul %134, %120, %cst_46 {dimension_numbers = #tpu.dot_dimension_numbers<[2], [1], [1], [2], [0, 0, 0, 1, 1, 2], [0], [0]>} : vector<8x8x8xbf16>, vector<8x8x8xbf16>, vector<8x8x8xf32> -> vector<8x8x8xf32>
    "tpu.trace_stop"() : () -> ()
    %136 = vector.extract_strided_slice %135 {offsets = [0, 0, 0], sizes = [2, 8, 8], strides = [1, 1, 1]} : vector<8x8x8xf32> to vector<2x8x8xf32>
    %137 = vector.extract_strided_slice %135 {offsets = [2, 0, 0], sizes = [2, 8, 8], strides = [1, 1, 1]} : vector<8x8x8xf32> to vector<2x8x8xf32>
    %138 = vector.extract_strided_slice %135 {offsets = [4, 0, 0], sizes = [2, 8, 8], strides = [1, 1, 1]} : vector<8x8x8xf32> to vector<2x8x8xf32>
    %139 = vector.extract_strided_slice %135 {offsets = [6, 0, 0], sizes = [2, 8, 8], strides = [1, 1, 1]} : vector<8x8x8xf32> to vector<2x8x8xf32>
    %140 = tpu.concatenate %136, %137, %138, %139 in 2 : vector<2x8x8xf32>, vector<2x8x8xf32>, vector<2x8x8xf32>, vector<2x8x8xf32> -> vector<2x8x32xf32>
    %141 = vector.shape_cast %140 : vector<2x8x32xf32> to vector<16x32xf32>
    %142 = arith.truncf %141 : vector<16x32xf32> to vector<16x32xbf16>
    %cst_47 = arith.constant dense<0.000000e+00> : vector<16x32xf32>
    %143 = tpu.matmul %142, %101, %cst_47 {dimension_numbers = #tpu.dot_dimension_numbers<[1], [0], [0], [1], [0, 0, 1, 1], [], []>} : vector<16x32xbf16>, vector<32x32xbf16>, vector<16x32xf32> -> vector<16x32xf32>
    %144 = vector.broadcast %102 : vector<1x32xf32> to vector<16x32xf32>
    %145 = arith.addf %143, %144 : vector<16x32xf32>
    %c0_48 = arith.constant 0 : index
    %c0_49 = arith.constant 0 : index
    %146 = vector.load %arg15[%c0_48, %c0_49] : memref<1x32xf32, #tpu.memory_space<vmem>>, vector<1x32xf32>
    %c0_50 = arith.constant 0 : index
    %c0_51 = arith.constant 0 : index
    %147 = vector.load %arg16[%c0_50, %c0_51] : memref<1x32xf32, #tpu.memory_space<vmem>>, vector<1x32xf32>
    %148 = arith.addf %83, %145 : vector<16x32xf32>
    %cst_52 = arith.constant dense<0.000000e+00> : vector<16xf32>
    %149 = vector.multi_reduction <add>, %148, %cst_52 [1] : vector<16x32xf32> to vector<16xf32>
    %150 = vector.shape_cast %149 : vector<16xf32> to vector<16x1xf32>
    %cst_53 = arith.constant 3.200000e+01 : f32
    %151 = vector.broadcast %cst_53 : f32 to vector<16x1xf32>
    %152 = arith.divf %150, %151 : vector<16x1xf32>
    %153 = vector.broadcast %152 : vector<16x1xf32> to vector<16x32xf32>
    %154 = arith.subf %148, %153 : vector<16x32xf32>
    %155 = arith.mulf %154, %154 : vector<16x32xf32>
    %cst_54 = arith.constant dense<0.000000e+00> : vector<16xf32>
    %156 = vector.multi_reduction <add>, %155, %cst_54 [1] : vector<16x32xf32> to vector<16xf32>
    %157 = vector.shape_cast %156 : vector<16xf32> to vector<16x1xf32>
    %cst_55 = arith.constant 3.200000e+01 : f32
    %158 = vector.broadcast %cst_55 : f32 to vector<16x1xf32>
    %159 = arith.divf %157, %158 : vector<16x1xf32>
    %cst_56 = arith.constant 9.99999974E-6 : f32
    %160 = vector.broadcast %cst_56 : f32 to vector<16x1xf32>
    %161 = arith.addf %159, %160 : vector<16x1xf32>
    %162 = math.rsqrt %161 : vector<16x1xf32>
    %163 = vector.broadcast %162 : vector<16x1xf32> to vector<16x32xf32>
    %164 = arith.mulf %154, %163 : vector<16x32xf32>
    %165 = vector.broadcast %146 : vector<1x32xf32> to vector<16x32xf32>
    %166 = arith.mulf %164, %165 : vector<16x32xf32>
    %167 = vector.broadcast %147 : vector<1x32xf32> to vector<16x32xf32>
    %168 = arith.addf %166, %167 : vector<16x32xf32>
    %c0_57 = arith.constant 0 : index
    %c0_58 = arith.constant 0 : index
    %169 = vector.load %arg17[%c0_57, %c0_58] : memref<32x64xbf16, #tpu.memory_space<vmem>>, vector<32x64xbf16>
    %c0_59 = arith.constant 0 : index
    %c0_60 = arith.constant 0 : index
    %170 = vector.load %arg18[%c0_59, %c0_60] : memref<1x64xf32, #tpu.memory_space<vmem>>, vector<1x64xf32>
    %c0_61 = arith.constant 0 : index
    %c0_62 = arith.constant 0 : index
    %171 = vector.load %arg19[%c0_61, %c0_62] : memref<64x32xbf16, #tpu.memory_space<vmem>>, vector<64x32xbf16>
    %c0_63 = arith.constant 0 : index
    %c0_64 = arith.constant 0 : index
    %172 = vector.load %arg20[%c0_63, %c0_64] : memref<1x32xf32, #tpu.memory_space<vmem>>, vector<1x32xf32>
    %173 = arith.truncf %168 : vector<16x32xf32> to vector<16x32xbf16>
    %cst_65 = arith.constant dense<0.000000e+00> : vector<16x64xf32>
    %174 = tpu.matmul %173, %169, %cst_65 {dimension_numbers = #tpu.dot_dimension_numbers<[1], [0], [0], [1], [0, 0, 1, 1], [], []>} : vector<16x32xbf16>, vector<32x64xbf16>, vector<16x64xf32> -> vector<16x64xf32>
    %175 = vector.broadcast %170 : vector<1x64xf32> to vector<16x64xf32>
    %176 = arith.addf %174, %175 : vector<16x64xf32>
    %cst_66 = arith.constant 0.000000e+00 : f32
    %177 = vector.broadcast %cst_66 : f32 to vector<16x64xf32>
    %178 = arith.maximumf %176, %177 : vector<16x64xf32>
    %179 = arith.truncf %178 : vector<16x64xf32> to vector<16x64xbf16>
    %cst_67 = arith.constant dense<0.000000e+00> : vector<16x32xf32>
    %180 = tpu.matmul %179, %171, %cst_67 {dimension_numbers = #tpu.dot_dimension_numbers<[1], [0], [0], [1], [0, 0, 1, 1], [], []>} : vector<16x64xbf16>, vector<64x32xbf16>, vector<16x32xf32> -> vector<16x32xf32>
    %181 = vector.broadcast %172 : vector<1x32xf32> to vector<16x32xf32>
    %182 = arith.addf %180, %181 : vector<16x32xf32>
    %c0_68 = arith.constant 0 : index
    %c0_69 = arith.constant 0 : index
    %183 = vector.load %arg21[%c0_68, %c0_69] : memref<1x32xf32, #tpu.memory_space<vmem>>, vector<1x32xf32>
    %c0_70 = arith.constant 0 : index
    %c0_71 = arith.constant 0 : index
    %184 = vector.load %arg22[%c0_70, %c0_71] : memref<1x32xf32, #tpu.memory_space<vmem>>, vector<1x32xf32>
    %185 = arith.addf %168, %182 : vector<16x32xf32>
    %cst_72 = arith.constant dense<0.000000e+00> : vector<16xf32>
    %186 = vector.multi_reduction <add>, %185, %cst_72 [1] : vector<16x32xf32> to vector<16xf32>
    %187 = vector.shape_cast %186 : vector<16xf32> to vector<16x1xf32>
    %cst_73 = arith.constant 3.200000e+01 : f32
    %188 = vector.broadcast %cst_73 : f32 to vector<16x1xf32>
    %189 = arith.divf %187, %188 : vector<16x1xf32>
    %190 = vector.broadcast %189 : vector<16x1xf32> to vector<16x32xf32>
    %191 = arith.subf %185, %190 : vector<16x32xf32>
    %192 = arith.mulf %191, %191 : vector<16x32xf32>
    %cst_74 = arith.constant dense<0.000000e+00> : vector<16xf32>
    %193 = vector.multi_reduction <add>, %192, %cst_74 [1] : vector<16x32xf32> to vector<16xf32>
    %194 = vector.shape_cast %193 : vector<16xf32> to vector<16x1xf32>
    %cst_75 = arith.constant 3.200000e+01 : f32
    %195 = vector.broadcast %cst_75 : f32 to vector<16x1xf32>
    %196 = arith.divf %194, %195 : vector<16x1xf32>
    %cst_76 = arith.constant 9.99999974E-6 : f32
    %197 = vector.broadcast %cst_76 : f32 to vector<16x1xf32>
    %198 = arith.addf %196, %197 : vector<16x1xf32>
    %199 = math.rsqrt %198 : vector<16x1xf32>
    %200 = vector.broadcast %199 : vector<16x1xf32> to vector<16x32xf32>
    %201 = arith.mulf %191, %200 : vector<16x32xf32>
    %202 = vector.broadcast %183 : vector<1x32xf32> to vector<16x32xf32>
    %203 = arith.mulf %201, %202 : vector<16x32xf32>
    %204 = vector.broadcast %184 : vector<1x32xf32> to vector<16x32xf32>
    %205 = arith.addf %203, %204 : vector<16x32xf32>
    %206 = vector.shape_cast %205 : vector<16x32xf32> to vector<2x8x32xf32>
    %c0_77 = arith.constant 0 : index
    %c0_78 = arith.constant 0 : index
    %c0_79 = arith.constant 0 : index
    %207 = vector.load %arg23[%c0_77, %c0_78, %c0_79] : memref<2x8x32xf32, #tpu.memory_space<vmem>>, vector<2x8x32xf32>
    tpu.vector_store %arg23[%c0_77, %c0_78, %c0_79], %206 {strides = array<i32>} : memref<2x8x32xf32, #tpu.memory_space<vmem>>, vector<2x8x32xf32>,
    return
  }
  func.func @transform_0(%arg0: i32) -> (i32, i32, i32) {
    %c0_i32 = arith.constant 0 : i32
    %c0_i32_0 = arith.constant 0 : i32
    %c0_i32_1 = arith.constant 0 : i32
    return %arg0, %c0_i32, %c0_i32_0 : i32, i32, i32
  }
  func.func @transform_1(%arg0: i32) -> (i32, i32, i32) {
    %c0_i32 = arith.constant 0 : i32
    %c0_i32_0 = arith.constant 0 : i32
    %c0_i32_1 = arith.constant 0 : i32
    return %arg0, %c0_i32, %c0_i32_0 : i32, i32, i32
  }
  func.func @transform_2(%arg0: i32) -> (i32, i32) {
    %c0_i32 = arith.constant 0 : i32
    %c0_i32_0 = arith.constant 0 : i32
    %c0_i32_1 = arith.constant 0 : i32
    return %c0_i32, %c0_i32_0 : i32, i32
  }
  func.func @transform_3(%arg0: i32) -> (i32, i32) {
    %c0_i32 = arith.constant 0 : i32
    %c0_i32_0 = arith.constant 0 : i32
    %c0_i32_1 = arith.constant 0 : i32
    return %c0_i32, %c0_i32_0 : i32, i32
  }
  func.func @transform_4(%arg0: i32) -> (i32, i32) {
    %c0_i32 = arith.constant 0 : i32
    %c0_i32_0 = arith.constant 0 : i32
    %c0_i32_1 = arith.constant 0 : i32
    return %c0_i32, %c0_i32_0 : i32, i32
  }
  func.func @transform_5(%arg0: i32) -> (i32, i32) {
    %c0_i32 = arith.constant 0 : i32
    %c0_i32_0 = arith.constant 0 : i32
    %c0_i32_1 = arith.constant 0 : i32
    return %c0_i32, %c0_i32_0 : i32, i32
  }
  func.func @transform_6(%arg0: i32) -> (i32, i32) {
    %c0_i32 = arith.constant 0 : i32
    %c0_i32_0 = arith.constant 0 : i32
    %c0_i32_1 = arith.constant 0 : i32
    return %c0_i32, %c0_i32_0 : i32, i32
  }
  func.func @transform_7(%arg0: i32) -> (i32, i32) {
    %c0_i32 = arith.constant 0 : i32
    %c0_i32_0 = arith.constant 0 : i32
    %c0_i32_1 = arith.constant 0 : i32
    return %c0_i32, %c0_i32_0 : i32, i32
  }
  func.func @transform_8(%arg0: i32) -> (i32, i32) {
    %c0_i32 = arith.constant 0 : i32
    %c0_i32_0 = arith.constant 0 : i32
    %c0_i32_1 = arith.constant 0 : i32
    return %c0_i32, %c0_i32_0 : i32, i32
  }
  func.func @transform_9(%arg0: i32) -> (i32, i32) {
    %c0_i32 = arith.constant 0 : i32
    %c0_i32_0 = arith.constant 0 : i32
    %c0_i32_1 = arith.constant 0 : i32
    return %c0_i32, %c0_i32_0 : i32, i32
  }
  func.func @transform_10(%arg0: i32) -> (i32, i32) {
    %c0_i32 = arith.constant 0 : i32
    %c0_i32_0 = arith.constant 0 : i32
    %c0_i32_1 = arith.constant 0 : i32
    return %c0_i32, %c0_i32_0 : i32, i32
  }
  func.func @transform_11(%arg0: i32) -> (i32, i32) {
    %c0_i32 = arith.constant 0 : i32
    %c0_i32_0 = arith.constant 0 : i32
    %c0_i32_1 = arith.constant 0 : i32
    return %c0_i32, %c0_i32_0 : i32, i32
  }
  func.func @transform_12(%arg0: i32) -> (i32, i32) {
    %c0_i32 = arith.constant 0 : i32
    %c0_i32_0 = arith.constant 0 : i32
    %c0_i32_1 = arith.constant 0 : i32
    return %c0_i32, %c0_i32_0 : i32, i32
  }
  func.func @transform_13(%arg0: i32) -> (i32, i32) {
    %c0_i32 = arith.constant 0 : i32
    %c0_i32_0 = arith.constant 0 : i32
    %c0_i32_1 = arith.constant 0 : i32
    return %c0_i32, %c0_i32_0 : i32, i32
  }
  func.func @transform_14(%arg0: i32) -> (i32, i32) {
    %c0_i32 = arith.constant 0 : i32
    %c0_i32_0 = arith.constant 0 : i32
    %c0_i32_1 = arith.constant 0 : i32
    return %c0_i32, %c0_i32_0 : i32, i32
  }
  func.func @transform_15(%arg0: i32) -> (i32, i32) {
    %c0_i32 = arith.constant 0 : i32
    %c0_i32_0 = arith.constant 0 : i32
    %c0_i32_1 = arith.constant 0 : i32
    return %c0_i32, %c0_i32_0 : i32, i32
  }
  func.func @transform_16(%arg0: i32) -> (i32, i32) {
    %c0_i32 = arith.constant 0 : i32
    %c0_i32_0 = arith.constant 0 : i32
    %c0_i32_1 = arith.constant 0 : i32
    return %c0_i32, %c0_i32_0 : i32, i32
  }
  func.func @transform_17(%arg0: i32) -> (i32, i32) {
    %c0_i32 = arith.constant 0 : i32
    %c0_i32_0 = arith.constant 0 : i32
    %c0_i32_1 = arith.constant 0 : i32
    return %c0_i32, %c0_i32_0 : i32, i32
  }
  func.func @transform_18(%arg0: i32) -> (i32, i32) {
    %c0_i32 = arith.constant 0 : i32
    %c0_i32_0 = arith.constant 0 : i32
    %c0_i32_1 = arith.constant 0 : i32
    return %c0_i32, %c0_i32_0 : i32, i32
  }
  func.func @transform_19(%arg0: i32) -> (i32, i32) {
    %c0_i32 = arith.constant 0 : i32
    %c0_i32_0 = arith.constant 0 : i32
    %c0_i32_1 = arith.constant 0 : i32
    return %c0_i32, %c0_i32_0 : i32, i32
  }
  func.func @transform_20(%arg0: i32) -> (i32, i32) {
    %c0_i32 = arith.constant 0 : i32
    %c0_i32_0 = arith.constant 0 : i32
    %c0_i32_1 = arith.constant 0 : i32
    return %c0_i32, %c0_i32_0 : i32, i32
  }
  func.func @transform_21(%arg0: i32) -> (i32, i32) {
    %c0_i32 = arith.constant 0 : i32
    %c0_i32_0 = arith.constant 0 : i32
    %c0_i32_1 = arith.constant 0 : i32
    return %c0_i32, %c0_i32_0 : i32, i32
  }
  func.func @transform_22(%arg0: i32) -> (i32, i32, i32) {
    %c0_i32 = arith.constant 0 : i32
    %c0_i32_0 = arith.constant 0 : i32
    %c0_i32_1 = arith.constant 0 : i32
    return %arg0, %c0_i32, %c0_i32_0 : i32, i32, i32
  }
}

</mosaic_0001>

<llo_original>
// kernel: decoder_layer_forward.1
$region0: #{decoder_layer_forward.1}
  #allocation0 [shape = 'u32[]', space=smem, size = 0x4, offset = 0x4, fixed_abs, tag = 'smem constant byte address 0x4 - core index']
  #allocation1 [shape = 'u32[144,128]{1,0:T(1,128)}', space=vmem, size = 0x12000, scoped, tag = 'internal scratch']
  %s0 = inlined_call_operand.vmem [shape: f32[2,8,32], index: 0, kind: input, shape index: {}]
  %s1 = inlined_call_operand.vmem [shape: f32[2,8,32], index: 1, kind: input, shape index: {}]
  %s2 = inlined_call_operand.vmem [shape: bf16[32,96], index: 2, kind: input, shape index: {}]
  %s3 = inlined_call_operand.hbm [shape: f32[1,96], index: 3, kind: input, shape index: {}]
  %s4 = inlined_call_operand.vmem [shape: bf16[32,32], index: 4, kind: input, shape index: {}]
  %s5 = inlined_call_operand.hbm [shape: f32[1,32], index: 5, kind: input, shape index: {}]
  %s6 = inlined_call_operand.hbm [shape: f32[1,32], index: 6, kind: input, shape index: {}]
  %s7 = inlined_call_operand.hbm [shape: f32[1,32], index: 7, kind: input, shape index: {}]
  %s8 = inlined_call_operand.vmem [shape: bf16[32,32], index: 8, kind: input, shape index: {}]
  %s9 = inlined_call_operand.hbm [shape: f32[1,32], index: 9, kind: input, shape index: {}]
  %s10 = inlined_call_operand.vmem [shape: bf16[32,64], index: 10, kind: input, shape index: {}]
  %s11 = inlined_call_operand.hbm [shape: f32[1,64], index: 11, kind: input, shape index: {}]
  %s12 = inlined_call_operand.hbm [shape: bf16[32,32], index: 12, kind: input, shape index: {}]
  %s13 = inlined_call_operand.hbm [shape: f32[1,32], index: 13, kind: input, shape index: {}]
  %s14 = inlined_call_operand.hbm [shape: f32[1,32], index: 14, kind: input, shape index: {}]
  %s15 = inlined_call_operand.hbm [shape: f32[1,32], index: 15, kind: input, shape index: {}]
  %s16 = inlined_call_operand.hbm [shape: bf16[32,64], index: 16, kind: input, shape index: {}]
  %s17 = inlined_call_operand.hbm [shape: f32[1,64], index: 17, kind: input, shape index: {}]
  %s18 = inlined_call_operand.vmem [shape: bf16[64,32], index: 18, kind: input, shape index: {}]
  %s19 = inlined_call_operand.hbm [shape: f32[1,32], index: 19, kind: input, shape index: {}]
  %s20 = inlined_call_operand.hbm [shape: f32[1,32], index: 20, kind: input, shape index: {}]
  %s21 = inlined_call_operand.hbm [shape: f32[1,32], index: 21, kind: input, shape index: {}]
  %s22 = inlined_call_operand.hbm [shape: f32[2,8,32], index: 22, kind: output, shape index: {}]
  %s23 = sld [smem:[#allocation0]]
  $region158: #{decoder_layer_forward.1} parent=0
    _
  %s25 = ssub.s32 1, %s23
  %s26 = scalar_select 0, %s25, %s23
  $region1: #{decoder_layer_forward.1} parent=0
    #allocation2 [shape = 'u8[512]{0}', space=vmem, size = 0x400, scoped, tag = 'input window, operand 3, single buffered']
    #allocation3 [shape = 's32[1]{0}', space=sflag, size = 0x4, scoped, tag = 'scoped memory for decoder_layer_forward.1']
    #allocation4 [shape = 's32[1]{0}', space=sflag, size = 0x4, scoped, tag = 'scoped memory for decoder_layer_forward.1']
    #allocation5 [shape = 'u8[512]{0}', space=vmem, size = 0x400, scoped, tag = 'input window, operand 5, single buffered']
    #allocation6 [shape = 's32[1]{0}', space=sflag, size = 0x4, scoped, tag = 'scoped memory for decoder_layer_forward.1']
    #allocation7 [shape = 'u8[512]{0}', space=vmem, size = 0x400, scoped, tag = 'input window, operand 6, single buffered']
    #allocation8 [shape = 'u8[512]{0}', space=vmem, size = 0x400, scoped, tag = 'input window, operand 7, single buffered']
    #allocation9 [shape = 's32[1]{0}', space=sflag, size = 0x4, scoped, tag = 'scoped memory for decoder_layer_forward.1']
    #allocation10 [shape = 'u8[512]{0}', space=vmem, size = 0x400, scoped, tag = 'input window, operand 9, single buffered']
    #allocation11 [shape = 'u8[512]{0}', space=vmem, size = 0x400, scoped, tag = 'input window, operand 11, single buffered']
    #allocation12 [shape = 's32[1]{0}', space=sflag, size = 0x4, scoped, tag = 'scoped memory for decoder_layer_forward.1']
    #allocation13 [shape = 'u8[8192]{0}', space=vmem, size = 0x2000, scoped, tag = 'input window, operand 12, single buffered']
    #allocation14 [shape = 'u8[512]{0}', space=vmem, size = 0x400, scoped, tag = 'input window, operand 13, single buffered']
    #allocation15 [shape = 's32[1]{0}', space=sflag, size = 0x4, scoped, tag = 'scoped memory for decoder_layer_forward.1']
    #allocation16 [shape = 'u8[512]{0}', space=vmem, size = 0x400, scoped, tag = 'input window, operand 14, single buffered']
    #allocation17 [shape = 'u8[512]{0}', space=vmem, size = 0x400, scoped, tag = 'input window, operand 15, single buffered']
    #allocation18 [shape = 's32[1]{0}', space=sflag, size = 0x4, scoped, tag = 'scoped memory for decoder_layer_forward.1']
    #allocation19 [shape = 'u8[8192]{0}', space=vmem, size = 0x2000, scoped, tag = 'input window, operand 16, single buffered']
    #allocation20 [shape = 'u8[512]{0}', space=vmem, size = 0x400, scoped, tag = 'input window, operand 17, single buffered']
    #allocation21 [shape = 's32[1]{0}', space=sflag, size = 0x4, scoped, tag = 'scoped memory for decoder_layer_forward.1']
    #allocation22 [shape = 'u8[512]{0}', space=vmem, size = 0x400, scoped, tag = 'input window, operand 19, single buffered']
    #allocation23 [shape = 'u8[512]{0}', space=vmem, size = 0x400, scoped, tag = 'input window, operand 20, single buffered']
    #allocation24 [shape = 's32[1]{0}', space=sflag, size = 0x4, scoped, tag = 'scoped memory for decoder_layer_forward.1']
    #allocation25 [shape = 'u8[512]{0}', space=vmem, size = 0x400, scoped, tag = 'input window, operand 21, single buffered']
    #allocation26 [shape = 'u8[8192]{0}', space=vmem, size = 0x2000, scoped, tag = 'output window, operand 0, single buffered']
    %27 = vsyncpa [#allocation3], 0
    %28 = vsyncpa [#allocation6], 0
    %29 = vsyncpa [#allocation9], 0
    %30 = vsyncpa [#allocation12], 0
    %31 = vsyncpa [#allocation15], 0
    %32 = vsyncpa [#allocation18], 0
    %33 = vsyncpa [#allocation21], 0
    %34 = vsyncpa [#allocation24], 0
    %35 = vsyncpa [#allocation4], 0
    // Predicated region
    $region2: #{decoder_layer_forward.1} parent=1 // pred_check
      _
    $region3: #{decoder_layer_forward.1} parent=1 // pred_check_branch
      %37 = sbr.rel (0) target = $region5
    $region4: #{decoder_layer_forward.1} parent=1 // pred_region
      _
    $region5: #{decoder_layer_forward.1} parent=1 // pred_fallthru
      _
    // Predicated region
    $region6: #{decoder_layer_forward.1} parent=1 // pred_check
      _
    $region7: #{decoder_layer_forward.1} parent=1 // pred_check_branch
      %39 = sbr.rel (0) target = $region9
    $region8: #{decoder_layer_forward.1} parent=1 // pred_region
      _
    $region9: #{decoder_layer_forward.1} parent=1 // pred_fallthru
      _
    // Predicated region
    $region10: #{decoder_layer_forward.1} parent=1 // pred_check
      _
    $region11: #{decoder_layer_forward.1} parent=1 // pred_check_branch
      %41 = sbr.rel (0) target = $region13
    $region12: #{decoder_layer_forward.1} parent=1 // pred_region
      _
    $region13: #{decoder_layer_forward.1} parent=1 // pred_fallthru
      _
    // Predicated region
    $region14: #{decoder_layer_forward.1} parent=1 // pred_check
      _
    $region15: #{decoder_layer_forward.1} parent=1 // pred_check_branch
      %43 = sbr.rel (0) target = $region17
    $region16: #{decoder_layer_forward.1} parent=1 // pred_region
      %s45 = ssub.s32 16, 16
      %46 = vsyncadd [#allocation3], %s45
      %s48 = sshll.u32 [#allocation2], 4
      %s49 = int_to_ptr.vmem [resolvable:$true] %s48
      %51 = dma.hbm_to_vmem [thread:$0]  %s3, 16, %s49, [#allocation3]
    $region17: #{decoder_layer_forward.1} parent=1 // pred_fallthru
      _
    // Predicated region
    $region18: #{decoder_layer_forward.1} parent=1 // pred_check
      _
    $region19: #{decoder_layer_forward.1} parent=1 // pred_check_branch
      %53 = sbr.rel (0) target = $region21
    $region20: #{decoder_layer_forward.1} parent=1 // pred_region
      _
    $region21: #{decoder_layer_forward.1} parent=1 // pred_fallthru
      _
    // Predicated region
    $region22: #{decoder_layer_forward.1} parent=1 // pred_check
      _
    $region23: #{decoder_layer_forward.1} parent=1 // pred_check_branch
      %55 = sbr.rel (0) target = $region25
    $region24: #{decoder_layer_forward.1} parent=1 // pred_region
      %s57 = ssub.s32 16, 16
      %58 = vsyncadd [#allocation6], %s57
      %s60 = sshll.u32 [#allocation5], 4
      %s61 = int_to_ptr.vmem [resolvable:$true] %s60
      %63 = dma.hbm_to_vmem [thread:$0]  %s5, 16, %s61, [#allocation6]
    $region25: #{decoder_layer_forward.1} parent=1 // pred_fallthru
      _
    // Predicated region
    $region26: #{decoder_layer_forward.1} parent=1 // pred_check
      _
    $region27: #{decoder_layer_forward.1} parent=1 // pred_check_branch
      %65 = sbr.rel (0) target = $region29
    $region28: #{decoder_layer_forward.1} parent=1 // pred_region
      %s67 = ssub.s32 16, 16
      %68 = vsyncadd [#allocation6], %s67
      %s70 = sshll.u32 [#allocation7], 4
      %s71 = int_to_ptr.vmem [resolvable:$true] %s70
      %73 = dma.hbm_to_vmem [thread:$0]  %s6, 16, %s71, [#allocation6]
    $region29: #{decoder_layer_forward.1} parent=1 // pred_fallthru
      _
    // Predicated region
    $region30: #{decoder_layer_forward.1} parent=1 // pred_check
      _
    $region31: #{decoder_layer_forward.1} parent=1 // pred_check_branch
      %75 = sbr.rel (0) target = $region33
    $region32: #{decoder_layer_forward.1} parent=1 // pred_region
      %s77 = ssub.s32 16, 16
      %78 = vsyncadd [#allocation9], %s77
      %s80 = sshll.u32 [#allocation8], 4
      %s81 = int_to_ptr.vmem [resolvable:$true] %s80
      %83 = dma.hbm_to_vmem [thread:$0]  %s7, 16, %s81, [#allocation9]
    $region33: #{decoder_layer_forward.1} parent=1 // pred_fallthru
      _
    // Predicated region
    $region34: #{decoder_layer_forward.1} parent=1 // pred_check
      _
    $region35: #{decoder_layer_forward.1} parent=1 // pred_check_branch
      %85 = sbr.rel (0) target = $region37
    $region36: #{decoder_layer_forward.1} parent=1 // pred_region
      _
    $region37: #{decoder_layer_forward.1} parent=1 // pred_fallthru
      _
    // Predicated region
    $region38: #{decoder_layer_forward.1} parent=1 // pred_check
      _
    $region39: #{decoder_layer_forward.1} parent=1 // pred_check_branch
      %87 = sbr.rel (0) target = $region41
    $region40: #{decoder_layer_forward.1} parent=1 // pred_region
      %s89 = ssub.s32 16, 16
      %90 = vsyncadd [#allocation9], %s89
      %s92 = sshll.u32 [#allocation10], 4
      %s93 = int_to_ptr.vmem [resolvable:$true] %s92
      %95 = dma.hbm_to_vmem [thread:$0]  %s9, 16, %s93, [#allocation9]
    $region41: #{decoder_layer_forward.1} parent=1 // pred_fallthru
      _
    // Predicated region
    $region42: #{decoder_layer_forward.1} parent=1 // pred_check
      _
    $region43: #{decoder_layer_forward.1} parent=1 // pred_check_branch
      %97 = sbr.rel (0) target = $region45
    $region44: #{decoder_layer_forward.1} parent=1 // pred_region
      _
    $region45: #{decoder_layer_forward.1} parent=1 // pred_fallthru
      _
    // Predicated region
    $region46: #{decoder_layer_forward.1} parent=1 // pred_check
      _
    $region47: #{decoder_layer_forward.1} parent=1 // pred_check_branch
      %99 = sbr.rel (0) target = $region49
    $region48: #{decoder_layer_forward.1} parent=1 // pred_region
      %s101 = ssub.s32 16, 16
      %102 = vsyncadd [#allocation12], %s101
      %s104 = sshll.u32 [#allocation11], 4
      %s105 = int_to_ptr.vmem [resolvable:$true] %s104
      %107 = dma.hbm_to_vmem [thread:$0]  %s11, 16, %s105, [#allocation12]
    $region49: #{decoder_layer_forward.1} parent=1 // pred_fallthru
      _
    // Predicated region
    $region50: #{decoder_layer_forward.1} parent=1 // pred_check
      _
    $region51: #{decoder_layer_forward.1} parent=1 // pred_check_branch
      %109 = sbr.rel (0) target = $region53
    $region52: #{decoder_layer_forward.1} parent=1 // pred_region
      %s111 = ssub.s32 256, 256
      %112 = vsyncadd [#allocation12], %s111
      %s113 = sshll.u32 [#allocation13], 4
      %s114 = int_to_ptr.vmem [resolvable:$true] %s113
      %119 = dma.hbm_to_vmem [thread:$0]  %s12, 256, %s114, [#allocation12], 64, 64, 4
    $region53: #{decoder_layer_forward.1} parent=1 // pred_fallthru
      _
    // Predicated region
    $region54: #{decoder_layer_forward.1} parent=1 // pred_check
      _
    $region55: #{decoder_layer_forward.1} parent=1 // pred_check_branch
      %121 = sbr.rel (0) target = $region57
    $region56: #{decoder_layer_forward.1} parent=1 // pred_region
      %s123 = ssub.s32 16, 16
      %124 = vsyncadd [#allocation15], %s123
      %s126 = sshll.u32 [#allocation14], 4
      %s127 = int_to_ptr.vmem [resolvable:$true] %s126
      %129 = dma.hbm_to_vmem [thread:$0]  %s13, 16, %s127, [#allocation15]
    $region57: #{decoder_layer_forward.1} parent=1 // pred_fallthru
      _
    // Predicated region
    $region58: #{decoder_layer_forward.1} parent=1 // pred_check
      _
    $region59: #{decoder_layer_forward.1} parent=1 // pred_check_branch
      %131 = sbr.rel (0) target = $region61
    $region60: #{decoder_layer_forward.1} parent=1 // pred_region
      %s133 = ssub.s32 16, 16
      %134 = vsyncadd [#allocation15], %s133
      %s136 = sshll.u32 [#allocation16], 4
      %s137 = int_to_ptr.vmem [resolvable:$true] %s136
      %139 = dma.hbm_to_vmem [thread:$0]  %s14, 16, %s137, [#allocation15]
    $region61: #{decoder_layer_forward.1} parent=1 // pred_fallthru
      _
    // Predicated region
    $region62: #{decoder_layer_forward.1} parent=1 // pred_check
      _
    $region63: #{decoder_layer_forward.1} parent=1 // pred_check_branch
      %141 = sbr.rel (0) target = $region65
    $region64: #{decoder_layer_forward.1} parent=1 // pred_region
      %s143 = ssub.s32 16, 16
      %144 = vsyncadd [#allocation18], %s143
      %s146 = sshll.u32 [#allocation17], 4
      %s147 = int_to_ptr.vmem [resolvable:$true] %s146
      %149 = dma.hbm_to_vmem [thread:$0]  %s15, 16, %s147, [#allocation18]
    $region65: #{decoder_layer_forward.1} parent=1 // pred_fallthru
      _
    // Predicated region
    $region66: #{decoder_layer_forward.1} parent=1 // pred_check
      _
    $region67: #{decoder_layer_forward.1} parent=1 // pred_check_branch
      %151 = sbr.rel (0) target = $region69
    $region68: #{decoder_layer_forward.1} parent=1 // pred_region
      %s153 = ssub.s32 256, 256
      %154 = vsyncadd [#allocation18], %s153
      %s155 = sshll.u32 [#allocation19], 4
      %s156 = int_to_ptr.vmem [resolvable:$true] %s155
      %161 = dma.hbm_to_vmem [thread:$0]  %s16, 256, %s156, [#allocation18], 64, 64, 4
    $region69: #{decoder_layer_forward.1} parent=1 // pred_fallthru
      _
    // Predicated region
    $region70: #{decoder_layer_forward.1} parent=1 // pred_check
      _
    $region71: #{decoder_layer_forward.1} parent=1 // pred_check_branch
      %163 = sbr.rel (0) target = $region73
    $region72: #{decoder_layer_forward.1} parent=1 // pred_region
      %s165 = ssub.s32 16, 16
      %166 = vsyncadd [#allocation21], %s165
      %s168 = sshll.u32 [#allocation20], 4
      %s169 = int_to_ptr.vmem [resolvable:$true] %s168
      %171 = dma.hbm_to_vmem [thread:$0]  %s17, 16, %s169, [#allocation21]
    $region73: #{decoder_layer_forward.1} parent=1 // pred_fallthru
      _
    // Predicated region
    $region74: #{decoder_layer_forward.1} parent=1 // pred_check
      _
    $region75: #{decoder_layer_forward.1} parent=1 // pred_check_branch
      %173 = sbr.rel (0) target = $region77
    $region76: #{decoder_layer_forward.1} parent=1 // pred_region
      _
    $region77: #{decoder_layer_forward.1} parent=1 // pred_fallthru
      _
    // Predicated region
    $region78: #{decoder_layer_forward.1} parent=1 // pred_check
      _
    $region79: #{decoder_layer_forward.1} parent=1 // pred_check_branch
      %175 = sbr.rel (0) target = $region81
    $region80: #{decoder_layer_forward.1} parent=1 // pred_region
      %s177 = ssub.s32 16, 16
      %178 = vsyncadd [#allocation21], %s177
      %s180 = sshll.u32 [#allocation22], 4
      %s181 = int_to_ptr.vmem [resolvable:$true] %s180
      %183 = dma.hbm_to_vmem [thread:$0]  %s19, 16, %s181, [#allocation21]
    $region81: #{decoder_layer_forward.1} parent=1 // pred_fallthru
      _
    // Predicated region
    $region82: #{decoder_layer_forward.1} parent=1 // pred_check
      _
    $region83: #{decoder_layer_forward.1} parent=1 // pred_check_branch
      %185 = sbr.rel (0) target = $region85
    $region84: #{decoder_layer_forward.1} parent=1 // pred_region
      %s187 = ssub.s32 16, 16
      %188 = vsyncadd [#allocation24], %s187
      %s190 = sshll.u32 [#allocation23], 4
      %s191 = int_to_ptr.vmem [resolvable:$true] %s190
      %193 = dma.hbm_to_vmem [thread:$0]  %s20, 16, %s191, [#allocation24]
    $region85: #{decoder_layer_forward.1} parent=1 // pred_fallthru
      _
    // Predicated region
    $region86: #{decoder_layer_forward.1} parent=1 // pred_check
      _
    $region87: #{decoder_layer_forward.1} parent=1 // pred_check_branch
      %195 = sbr.rel (0) target = $region89
    $region88: #{decoder_layer_forward.1} parent=1 // pred_region
      %s197 = ssub.s32 16, 16
      %198 = vsyncadd [#allocation24], %s197
      %s200 = sshll.u32 [#allocation25], 4
      %s201 = int_to_ptr.vmem [resolvable:$true] %s200
      %203 = dma.hbm_to_vmem [thread:$0]  %s21, 16, %s201, [#allocation24]
    $region89: #{decoder_layer_forward.1} parent=1 // pred_fallthru
      _
    // Predicated region
    $region90: #{decoder_layer_forward.1} parent=1 // pred_check
      _
    $region91: #{decoder_layer_forward.1} parent=1 // pred_check_branch
      %205 = sbr.rel (0) target = $region93
    $region92: #{decoder_layer_forward.1} parent=1 // pred_region
      %206 = dma.done [#allocation3], 16
    $region93: #{decoder_layer_forward.1} parent=1 // pred_fallthru
      _
    // Predicated region
    $region94: #{decoder_layer_forward.1} parent=1 // pred_check
      _
    $region95: #{decoder_layer_forward.1} parent=1 // pred_check_branch
      %208 = sbr.rel (0) target = $region97
    $region96: #{decoder_layer_forward.1} parent=1 // pred_region
      %209 = dma.done [#allocation6], 16
    $region97: #{decoder_layer_forward.1} parent=1 // pred_fallthru
      _
    // Predicated region
    $region98: #{decoder_layer_forward.1} parent=1 // pred_check
      _
    $region99: #{decoder_layer_forward.1} parent=1 // pred_check_branch
      %211 = sbr.rel (0) target = $region101
    $region100: #{decoder_layer_forward.1} parent=1 // pred_region
      %212 = dma.done [#allocation6], 16
    $region101: #{decoder_layer_forward.1} parent=1 // pred_fallthru
      _
    // Predicated region
    $region102: #{decoder_layer_forward.1} parent=1 // pred_check
      _
    $region103: #{decoder_layer_forward.1} parent=1 // pred_check_branch
      %214 = sbr.rel (0) target = $region105
    $region104: #{decoder_layer_forward.1} parent=1 // pred_region
      %215 = dma.done [#allocation9], 16
    $region105: #{decoder_layer_forward.1} parent=1 // pred_fallthru
      _
    // Predicated region
    $region106: #{decoder_layer_forward.1} parent=1 // pred_check
      _
    $region107: #{decoder_layer_forward.1} parent=1 // pred_check_branch
      %217 = sbr.rel (0) target = $region109
    $region108: #{decoder_layer_forward.1} parent=1 // pred_region
      %218 = dma.done [#allocation9], 16
    $region109: #{decoder_layer_forward.1} parent=1 // pred_fallthru
      _
    // Predicated region
    $region110: #{decoder_layer_forward.1} parent=1 // pred_check
      _
    $region111: #{decoder_layer_forward.1} parent=1 // pred_check_branch
      %220 = sbr.rel (0) target = $region113
    $region112: #{decoder_layer_forward.1} parent=1 // pred_region
      %221 = dma.done [#allocation12], 16
    $region113: #{decoder_layer_forward.1} parent=1 // pred_fallthru
      _
    // Predicated region
    $region114: #{decoder_layer_forward.1} parent=1 // pred_check
      _
    $region115: #{decoder_layer_forward.1} parent=1 // pred_check_branch
      %223 = sbr.rel (0) target = $region117
    $region116: #{decoder_layer_forward.1} parent=1 // pred_region
      %224 = dma.done [#allocation12], 256
    $region117: #{decoder_layer_forward.1} parent=1 // pred_fallthru
      _
    // Predicated region
    $region118: #{decoder_layer_forward.1} parent=1 // pred_check
      _
    $region119: #{decoder_layer_forward.1} parent=1 // pred_check_branch
      %226 = sbr.rel (0) target = $region121
    $region120: #{decoder_layer_forward.1} parent=1 // pred_region
      %227 = dma.done [#allocation15], 16
    $region121: #{decoder_layer_forward.1} parent=1 // pred_fallthru
      _
    // Predicated region
    $region122: #{decoder_layer_forward.1} parent=1 // pred_check
      _
    $region123: #{decoder_layer_forward.1} parent=1 // pred_check_branch
      %229 = sbr.rel (0) target = $region125
    $region124: #{decoder_layer_forward.1} parent=1 // pred_region
      %230 = dma.done [#allocation15], 16
    $region125: #{decoder_layer_forward.1} parent=1 // pred_fallthru
      _
    // Predicated region
    $region126: #{decoder_layer_forward.1} parent=1 // pred_check
      _
    $region127: #{decoder_layer_forward.1} parent=1 // pred_check_branch
      %232 = sbr.rel (0) target = $region129
    $region128: #{decoder_layer_forward.1} parent=1 // pred_region
      %233 = dma.done [#allocation18], 16
    $region129: #{decoder_layer_forward.1} parent=1 // pred_fallthru
      _
    // Predicated region
    $region130: #{decoder_layer_forward.1} parent=1 // pred_check
      _
    $region131: #{decoder_layer_forward.1} parent=1 // pred_check_branch
      %235 = sbr.rel (0) target = $region133
    $region132: #{decoder_layer_forward.1} parent=1 // pred_region
      %236 = dma.done [#allocation18], 256
    $region133: #{decoder_layer_forward.1} parent=1 // pred_fallthru
      _
    // Predicated region
    $region134: #{decoder_layer_forward.1} parent=1 // pred_check
      _
    $region135: #{decoder_layer_forward.1} parent=1 // pred_check_branch
      %238 = sbr.rel (0) target = $region137
    $region136: #{decoder_layer_forward.1} parent=1 // pred_region
      %239 = dma.done [#allocation21], 16
    $region137: #{decoder_layer_forward.1} parent=1 // pred_fallthru
      _
    // Predicated region
    $region138: #{decoder_layer_forward.1} parent=1 // pred_check
      _
    $region139: #{decoder_layer_forward.1} parent=1 // pred_check_branch
      %241 = sbr.rel (0) target = $region141
    $region140: #{decoder_layer_forward.1} parent=1 // pred_region
      %242 = dma.done [#allocation21], 16
    $region141: #{decoder_layer_forward.1} parent=1 // pred_fallthru
      _
    // Predicated region
    $region142: #{decoder_layer_forward.1} parent=1 // pred_check
      _
    $region143: #{decoder_layer_forward.1} parent=1 // pred_check_branch
      %244 = sbr.rel (0) target = $region145
    $region144: #{decoder_layer_forward.1} parent=1 // pred_region
      %245 = dma.done [#allocation24], 16
    $region145: #{decoder_layer_forward.1} parent=1 // pred_fallthru
      _
    // Predicated region
    $region146: #{decoder_layer_forward.1} parent=1 // pred_check
      _
    $region147: #{decoder_layer_forward.1} parent=1 // pred_check_branch
      %247 = sbr.rel (0) target = $region149
    $region148: #{decoder_layer_forward.1} parent=1 // pred_region
      %248 = dma.done [#allocation24], 16
    $region149: #{decoder_layer_forward.1} parent=1 // pred_fallthru
      _
    %v250 = vld [vmem:[%s0] sm:$0xff]
    %v251 = vld [vmem:[%s0 + $0x8] sm:$0xff]
    %v252 = vld [vmem:[%s1] sm:$0xff]
    %v253 = vld [vmem:[%s1 + $0x8] sm:$0xff]
    %v254 = vpack.c.bf16 %v251, %v250
    %v255 = vld [vmem:[%s2] sm:$0xf]
    %v256 = vld [vmem:[%s2 + $0x4] sm:$0xf]
    %v257 = vld [vmem:[%s2 + $0x8] sm:$0xf]
    %v258 = vld [vmem:[%s2 + $0xc] sm:$0xf]
    %v259 = vld [vmem:[#allocation2] sm:$0x1]
    %v261 = vlaneseq
    %v262 = vshrl.u32 %v261, 7
    %v263 = vsub.s32 0, %v262
    %v264 = vrot.slane %v259, %v263
    %v270 = vunpack.c.l.b16 %v255
    %v271 = vunpack.c.l.b16 %v256
    %v272 = vunpack.c.l.b16 %v257
    %v273 = vunpack.c.l.b16 %v258
    %v274 = vpack.c.b16 %v271, %v270
    %v275 = vpack.c.b16 %v273, %v272
    %vm278 = vcmask 261120
    %v280 = vsel %vm278, %v254, 0
    %282 = vmatprep.subr.bf16.mxu0 0
    %283 = vmatpush1.bf16.msra.mxu0 %v274
    %284 = vmatprep.subr.bf16.mxu0 0
    %285 = vmatpush1.bf16.msra.mxu0 %v275
    %286 = vmatprep.subr.bf16.mxu0 0
    %287 = vmatpush1.bf16.msra.mxu0 0
    %288 = vmatprep.subr.bf16.mxu0 0
    %289 = vmatpush1.bf16.msra.mxu0 0
    %290 = vmatprep.subr.bf16.mxu0 0
    %291 = vmatpush1.bf16.msra.mxu0 0
    %292 = vmatprep.subr.bf16.mxu0 0
    %293 = vmatpush1.bf16.msra.mxu0 0
    %294 = vmatprep.subr.bf16.mxu0 0
    %295 = vmatpush1.bf16.msra.mxu0 0
    %296 = vmatprep.subr.bf16.mxu0 0
    %297 = vmatpush1.bf16.msra.mxu0 0
    %298 = vmatprep.subr.bf16.mxu0 0
    %299 = vmatpush1.bf16.msra.mxu0 0
    %300 = vmatprep.subr.bf16.mxu0 0
    %301 = vmatpush1.bf16.msra.mxu0 0
    %302 = vmatprep.subr.bf16.mxu0 0
    %303 = vmatpush1.bf16.msra.mxu0 0
    %304 = vmatprep.subr.bf16.mxu0 0
    %305 = vmatpush1.bf16.msra.mxu0 0
    %306 = vmatprep.subr.bf16.mxu0 0
    %307 = vmatpush1.bf16.msra.mxu0 0
    %308 = vmatprep.subr.bf16.mxu0 0
    %309 = vmatpush1.bf16.msra.mxu0 0
    %310 = vmatprep.subr.bf16.mxu0 0
    %311 = vmatpush1.bf16.msra.mxu0 0
    %312 = vmatprep.subr.bf16.mxu0 0
    %313 = vmatpush1.bf16.msra.mxu0 0
    %314 = vmatprep.mubr.bf16.mxu0 0
    %315 = vmatmul.mubr.bf16.gmra.mrb[0].mxu0 %v280
    %v316 = vpop.f32.mrb[0].mxu0
    %v317 = vadd.f32 %v264, %v316
    %v318 = vpop.f32.mrb[0].mxu0
    %v319 = vpop.f32.mrb[0].mxu0
    %v320 = vadd.f32 %v264, %v319
    %v321 = vpop.f32.mrb[0].mxu0
    %322 = vdwg.mxu0
    %v323 = vld [vmem:[%s4] sm:$0xf]
    %v324 = vld [vmem:[%s4 + $0x4] sm:$0xf]
    %v325 = vld [vmem:[%s4 + $0x8] sm:$0xf]
    %v326 = vld [vmem:[%s4 + $0xc] sm:$0xf]
    %v327 = vld [vmem:[#allocation5] sm:$0x1]
    %330 = vrot.lane.b32.xlu0 %v317, 120
    %v331 = vpop.permute.xlu0 %330
    %332 = vrot.lane.b32.xlu0 %v320, 120
    %v333 = vpop.permute.xlu0 %332
    %336 = vrot.lane.b32.xlu0 %v317, 112
    %v337 = vpop.permute.xlu0 %336
    %338 = vrot.lane.b32.xlu0 %v320, 112
    %v339 = vpop.permute.xlu0 %338
    %342 = vrot.lane.b32.xlu0 %v317, 104
    %v343 = vpop.permute.xlu0 %342
    %344 = vrot.lane.b32.xlu0 %v320, 104
    %v345 = vpop.permute.xlu0 %344
    %v348 = vpack.c.bf16 %v317, %v317
    %v349 = vpack.c.bf16 %v320, %v320
    %v350 = vpack.c.bf16 %v331, %v331
    %v351 = vpack.c.bf16 %v333, %v333
    %v352 = vpack.c.bf16 %v337, %v337
    %v353 = vpack.c.bf16 %v339, %v339
    %v354 = vpack.c.bf16 %v343, %v343
    %v355 = vpack.c.bf16 %v345, %v345
    %357 = vrot.lane.b32.xlu0 %v348, 96
    %v358 = vpop.permute.xlu0 %357
    %vm359 = vcmask 64512
    %v361 = vsel %vm359, %v348, 0
    %v364 = vsel %vm359, %v358, 0
    %366 = vmatprep.subr.bf16.mxu0 0
    %367 = vmatpush1.bf16.xpose.msra.mxu0 %v364
    %368 = vmatprep.subr.bf16.mxu0 0
    %369 = vmatpush1.bf16.xpose.msra.mxu0 0
    %370 = vmatprep.subr.bf16.mxu0 0
    %371 = vmatpush1.bf16.xpose.msra.mxu0 0
    %372 = vmatprep.subr.bf16.mxu0 0
    %373 = vmatpush1.bf16.xpose.msra.mxu0 0
    %374 = vmatprep.subr.bf16.mxu0 0
    %375 = vmatpush1.bf16.xpose.msra.mxu0 0
    %376 = vmatprep.subr.bf16.mxu0 0
    %377 = vmatpush1.bf16.xpose.msra.mxu0 0
    %378 = vmatprep.subr.bf16.mxu0 0
    %379 = vmatpush1.bf16.xpose.msra.mxu0 0
    %380 = vmatprep.subr.bf16.mxu0 0
    %381 = vmatpush1.bf16.xpose.msra.mxu0 0
    %382 = vmatprep.subr.bf16.mxu0 0
    %383 = vmatpush1.bf16.xpose.msra.mxu0 0
    %384 = vmatprep.subr.bf16.mxu0 0
    %385 = vmatpush1.bf16.xpose.msra.mxu0 0
    %386 = vmatprep.subr.bf16.mxu0 0
    %387 = vmatpush1.bf16.xpose.msra.mxu0 0
    %388 = vmatprep.subr.bf16.mxu0 0
    %389 = vmatpush1.bf16.xpose.msra.mxu0 0
    %390 = vmatprep.subr.bf16.mxu0 0
    %391 = vmatpush1.bf16.xpose.msra.mxu0 0
    %392 = vmatprep.subr.bf16.mxu0 0
    %393 = vmatpush1.bf16.xpose.msra.mxu0 0
    %394 = vmatprep.subr.bf16.mxu0 0
    %395 = vmatpush1.bf16.xpose.msra.mxu0 0
    %396 = vmatprep.subr.bf16.mxu0 0
    %397 = vmatpush1.bf16.xpose.msra.mxu0 0
    %398 = vmatprep.mubr.bf16.mxu0 0
    %399 = vmatmul.mubr.bf16.gmra.mrb[0].mxu0 %v361
    %v400 = vpop.f32.mrb[0].mxu0
    %v401 = vadd.f32 0.0, %v400
    %v402 = vpop.f32.mrb[0].mxu0
    %v403 = vpop.f32.mrb[0].mxu0
    %v404 = vpop.f32.mrb[0].mxu0
    %405 = vdwg.mxu0
    %407 = vrot.lane.b32.xlu0 %v349, 96
    %v408 = vpop.permute.xlu0 %407
    %v410 = vsel %vm359, %v349, 0
    %v413 = vsel %vm359, %v408, 0
    %415 = vmatprep.subr.bf16.mxu0 0
    %416 = vmatpush1.bf16.xpose.msra.mxu0 %v413
    %417 = vmatprep.subr.bf16.mxu0 0
    %418 = vmatpush1.bf16.xpose.msra.mxu0 0
    %419 = vmatprep.subr.bf16.mxu0 0
    %420 = vmatpush1.bf16.xpose.msra.mxu0 0
    %421 = vmatprep.subr.bf16.mxu0 0
    %422 = vmatpush1.bf16.xpose.msra.mxu0 0
    %423 = vmatprep.subr.bf16.mxu0 0
    %424 = vmatpush1.bf16.xpose.msra.mxu0 0
    %425 = vmatprep.subr.bf16.mxu0 0
    %426 = vmatpush1.bf16.xpose.msra.mxu0 0
    %427 = vmatprep.subr.bf16.mxu0 0
    %428 = vmatpush1.bf16.xpose.msra.mxu0 0
    %429 = vmatprep.subr.bf16.mxu0 0
    %430 = vmatpush1.bf16.xpose.msra.mxu0 0
    %431 = vmatprep.subr.bf16.mxu0 0
    %432 = vmatpush1.bf16.xpose.msra.mxu0 0
    %433 = vmatprep.subr.bf16.mxu0 0
    %434 = vmatpush1.bf16.xpose.msra.mxu0 0
    %435 = vmatprep.subr.bf16.mxu0 0
    %436 = vmatpush1.bf16.xpose.msra.mxu0 0
    %437 = vmatprep.subr.bf16.mxu0 0
    %438 = vmatpush1.bf16.xpose.msra.mxu0 0
    %439 = vmatprep.subr.bf16.mxu0 0
    %440 = vmatpush1.bf16.xpose.msra.mxu0 0
    %441 = vmatprep.subr.bf16.mxu0 0
    %442 = vmatpush1.bf16.xpose.msra.mxu0 0
    %443 = vmatprep.subr.bf16.mxu0 0
    %444 = vmatpush1.bf16.xpose.msra.mxu0 0
    %445 = vmatprep.subr.bf16.mxu0 0
    %446 = vmatpush1.bf16.xpose.msra.mxu0 0
    %447 = vmatprep.mubr.bf16.mxu0 0
    %448 = vmatmul.mubr.bf16.gmra.mrb[0].mxu0 %v410
    %v449 = vpop.f32.mrb[0].mxu0
    %v450 = vadd.f32 0.0, %v449
    %v451 = vpop.f32.mrb[0].mxu0
    %v452 = vpop.f32.mrb[0].mxu0
    %v453 = vpop.f32.mrb[0].mxu0
    %454 = vdwg.mxu0
    %456 = vrot.lane.b32.xlu0 %v350, 96
    %v457 = vpop.permute.xlu0 %456
    %v459 = vsel %vm359, %v350, 0
    %v462 = vsel %vm359, %v457, 0
    %464 = vmatprep.subr.bf16.mxu0 0
    %465 = vmatpush1.bf16.xpose.msra.mxu0 %v462
    %466 = vmatprep.subr.bf16.mxu0 0
    %467 = vmatpush1.bf16.xpose.msra.mxu0 0
    %468 = vmatprep.subr.bf16.mxu0 0
    %469 = vmatpush1.bf16.xpose.msra.mxu0 0
    %470 = vmatprep.subr.bf16.mxu0 0
    %471 = vmatpush1.bf16.xpose.msra.mxu0 0
    %472 = vmatprep.subr.bf16.mxu0 0
    %473 = vmatpush1.bf16.xpose.msra.mxu0 0
    %474 = vmatprep.subr.bf16.mxu0 0
    %475 = vmatpush1.bf16.xpose.msra.mxu0 0
    %476 = vmatprep.subr.bf16.mxu0 0
    %477 = vmatpush1.bf16.xpose.msra.mxu0 0
    %478 = vmatprep.subr.bf16.mxu0 0
    %479 = vmatpush1.bf16.xpose.msra.mxu0 0
    %480 = vmatprep.subr.bf16.mxu0 0
    %481 = vmatpush1.bf16.xpose.msra.mxu0 0
    %482 = vmatprep.subr.bf16.mxu0 0
    %483 = vmatpush1.bf16.xpose.msra.mxu0 0
    %484 = vmatprep.subr.bf16.mxu0 0
    %485 = vmatpush1.bf16.xpose.msra.mxu0 0
    %486 = vmatprep.subr.bf16.mxu0 0
    %487 = vmatpush1.bf16.xpose.msra.mxu0 0
    %488 = vmatprep.subr.bf16.mxu0 0
    %489 = vmatpush1.bf16.xpose.msra.mxu0 0
    %490 = vmatprep.subr.bf16.mxu0 0
    %491 = vmatpush1.bf16.xpose.msra.mxu0 0
    %492 = vmatprep.subr.bf16.mxu0 0
    %493 = vmatpush1.bf16.xpose.msra.mxu0 0
    %494 = vmatprep.subr.bf16.mxu0 0
    %495 = vmatpush1.bf16.xpose.msra.mxu0 0
    %496 = vmatprep.mubr.bf16.mxu0 0
    %497 = vmatmul.mubr.bf16.gmra.mrb[0].mxu0 %v459
    %v498 = vpop.f32.mrb[0].mxu0
    %v499 = vadd.f32 0.0, %v498
    %v500 = vpop.f32.mrb[0].mxu0
    %v501 = vpop.f32.mrb[0].mxu0
    %v502 = vpop.f32.mrb[0].mxu0
    %503 = vdwg.mxu0
    %505 = vrot.lane.b32.xlu0 %v351, 96
    %v506 = vpop.permute.xlu0 %505
    %v508 = vsel %vm359, %v351, 0
    %v511 = vsel %vm359, %v506, 0
    %513 = vmatprep.subr.bf16.mxu0 0
    %514 = vmatpush1.bf16.xpose.msra.mxu0 %v511
    %515 = vmatprep.subr.bf16.mxu0 0
    %516 = vmatpush1.bf16.xpose.msra.mxu0 0
    %517 = vmatprep.subr.bf16.mxu0 0
    %518 = vmatpush1.bf16.xpose.msra.mxu0 0
    %519 = vmatprep.subr.bf16.mxu0 0
    %520 = vmatpush1.bf16.xpose.msra.mxu0 0
    %521 = vmatprep.subr.bf16.mxu0 0
    %522 = vmatpush1.bf16.xpose.msra.mxu0 0
    %523 = vmatprep.subr.bf16.mxu0 0
    %524 = vmatpush1.bf16.xpose.msra.mxu0 0
    %525 = vmatprep.subr.bf16.mxu0 0
    %526 = vmatpush1.bf16.xpose.msra.mxu0 0
    %527 = vmatprep.subr.bf16.mxu0 0
    %528 = vmatpush1.bf16.xpose.msra.mxu0 0
    %529 = vmatprep.subr.bf16.mxu0 0
    %530 = vmatpush1.bf16.xpose.msra.mxu0 0
    %531 = vmatprep.subr.bf16.mxu0 0
    %532 = vmatpush1.bf16.xpose.msra.mxu0 0
    %533 = vmatprep.subr.bf16.mxu0 0
    %534 = vmatpush1.bf16.xpose.msra.mxu0 0
    %535 = vmatprep.subr.bf16.mxu0 0
    %536 = vmatpush1.bf16.xpose.msra.mxu0 0
    %537 = vmatprep.subr.bf16.mxu0 0
    %538 = vmatpush1.bf16.xpose.msra.mxu0 0
    %539 = vmatprep.subr.bf16.mxu0 0
    %540 = vmatpush1.bf16.xpose.msra.mxu0 0
    %541 = vmatprep.subr.bf16.mxu0 0
    %542 = vmatpush1.bf16.xpose.msra.mxu0 0
    %543 = vmatprep.subr.bf16.mxu0 0
    %544 = vmatpush1.bf16.xpose.msra.mxu0 0
    %545 = vmatprep.mubr.bf16.mxu0 0
    %546 = vmatmul.mubr.bf16.gmra.mrb[0].mxu0 %v508
    %v547 = vpop.f32.mrb[0].mxu0
    %v548 = vadd.f32 0.0, %v547
    %v549 = vpop.f32.mrb[0].mxu0
    %v550 = vpop.f32.mrb[0].mxu0
    %v551 = vpop.f32.mrb[0].mxu0
    %552 = vdwg.mxu0
    %554 = vrot.lane.b32.xlu0 %v352, 96
    %v555 = vpop.permute.xlu0 %554
    %v557 = vsel %vm359, %v352, 0
    %v560 = vsel %vm359, %v555, 0
    %562 = vmatprep.subr.bf16.mxu0 0
    %563 = vmatpush1.bf16.xpose.msra.mxu0 %v560
    %564 = vmatprep.subr.bf16.mxu0 0
    %565 = vmatpush1.bf16.xpose.msra.mxu0 0
    %566 = vmatprep.subr.bf16.mxu0 0
    %567 = vmatpush1.bf16.xpose.msra.mxu0 0
    %568 = vmatprep.subr.bf16.mxu0 0
    %569 = vmatpush1.bf16.xpose.msra.mxu0 0
    %570 = vmatprep.subr.bf16.mxu0 0
    %571 = vmatpush1.bf16.xpose.msra.mxu0 0
    %572 = vmatprep.subr.bf16.mxu0 0
    %573 = vmatpush1.bf16.xpose.msra.mxu0 0
    %574 = vmatprep.subr.bf16.mxu0 0
    %575 = vmatpush1.bf16.xpose.msra.mxu0 0
    %576 = vmatprep.subr.bf16.mxu0 0
    %577 = vmatpush1.bf16.xpose.msra.mxu0 0
    %578 = vmatprep.subr.bf16.mxu0 0
    %579 = vmatpush1.bf16.xpose.msra.mxu0 0
    %580 = vmatprep.subr.bf16.mxu0 0
    %581 = vmatpush1.bf16.xpose.msra.mxu0 0
    %582 = vmatprep.subr.bf16.mxu0 0
    %583 = vmatpush1.bf16.xpose.msra.mxu0 0
    %584 = vmatprep.subr.bf16.mxu0 0
    %585 = vmatpush1.bf16.xpose.msra.mxu0 0
    %586 = vmatprep.subr.bf16.mxu0 0
    %587 = vmatpush1.bf16.xpose.msra.mxu0 0
    %588 = vmatprep.subr.bf16.mxu0 0
    %589 = vmatpush1.bf16.xpose.msra.mxu0 0
    %590 = vmatprep.subr.bf16.mxu0 0
    %591 = vmatpush1.bf16.xpose.msra.mxu0 0
    %592 = vmatprep.subr.bf16.mxu0 0
    %593 = vmatpush1.bf16.xpose.msra.mxu0 0
    %594 = vmatprep.mubr.bf16.mxu0 0
    %595 = vmatmul.mubr.bf16.gmra.mrb[0].mxu0 %v557
    %v596 = vpop.f32.mrb[0].mxu0
    %v597 = vadd.f32 0.0, %v596
    %v598 = vpop.f32.mrb[0].mxu0
    %v599 = vpop.f32.mrb[0].mxu0
    %v600 = vpop.f32.mrb[0].mxu0
    %601 = vdwg.mxu0
    %603 = vrot.lane.b32.xlu0 %v353, 96
    %v604 = vpop.permute.xlu0 %603
    %v606 = vsel %vm359, %v353, 0
    %v609 = vsel %vm359, %v604, 0
    %611 = vmatprep.subr.bf16.mxu0 0
    %612 = vmatpush1.bf16.xpose.msra.mxu0 %v609
    %613 = vmatprep.subr.bf16.mxu0 0
    %614 = vmatpush1.bf16.xpose.msra.mxu0 0
    %615 = vmatprep.subr.bf16.mxu0 0
    %616 = vmatpush1.bf16.xpose.msra.mxu0 0
    %617 = vmatprep.subr.bf16.mxu0 0
    %618 = vmatpush1.bf16.xpose.msra.mxu0 0
    %619 = vmatprep.subr.bf16.mxu0 0
    %620 = vmatpush1.bf16.xpose.msra.mxu0 0
    %621 = vmatprep.subr.bf16.mxu0 0
    %622 = vmatpush1.bf16.xpose.msra.mxu0 0
    %623 = vmatprep.subr.bf16.mxu0 0
    %624 = vmatpush1.bf16.xpose.msra.mxu0 0
    %625 = vmatprep.subr.bf16.mxu0 0
    %626 = vmatpush1.bf16.xpose.msra.mxu0 0
    %627 = vmatprep.subr.bf16.mxu0 0
    %628 = vmatpush1.bf16.xpose.msra.mxu0 0
    %629 = vmatprep.subr.bf16.mxu0 0
    %630 = vmatpush1.bf16.xpose.msra.mxu0 0
    %631 = vmatprep.subr.bf16.mxu0 0
    %632 = vmatpush1.bf16.xpose.msra.mxu0 0
    %633 = vmatprep.subr.bf16.mxu0 0
    %634 = vmatpush1.bf16.xpose.msra.mxu0 0
    %635 = vmatprep.subr.bf16.mxu0 0
    %636 = vmatpush1.bf16.xpose.msra.mxu0 0
    %637 = vmatprep.subr.bf16.mxu0 0
    %638 = vmatpush1.bf16.xpose.msra.mxu0 0
    %639 = vmatprep.subr.bf16.mxu0 0
    %640 = vmatpush1.bf16.xpose.msra.mxu0 0
    %641 = vmatprep.subr.bf16.mxu0 0
    %642 = vmatpush1.bf16.xpose.msra.mxu0 0
    %643 = vmatprep.mubr.bf16.mxu0 0
    %644 = vmatmul.mubr.bf16.gmra.mrb[0].mxu0 %v606
    %v645 = vpop.f32.mrb[0].mxu0
    %v646 = vadd.f32 0.0, %v645
    %v647 = vpop.f32.mrb[0].mxu0
    %v648 = vpop.f32.mrb[0].mxu0
    %v649 = vpop.f32.mrb[0].mxu0
    %650 = vdwg.mxu0
    %652 = vrot.lane.b32.xlu0 %v354, 96
    %v653 = vpop.permute.xlu0 %652
    %v655 = vsel %vm359, %v354, 0
    %v658 = vsel %vm359, %v653, 0
    %660 = vmatprep.subr.bf16.mxu0 0
    %661 = vmatpush1.bf16.xpose.msra.mxu0 %v658
    %662 = vmatprep.subr.bf16.mxu0 0
    %663 = vmatpush1.bf16.xpose.msra.mxu0 0
    %664 = vmatprep.subr.bf16.mxu0 0
    %665 = vmatpush1.bf16.xpose.msra.mxu0 0
    %666 = vmatprep.subr.bf16.mxu0 0
    %667 = vmatpush1.bf16.xpose.msra.mxu0 0
    %668 = vmatprep.subr.bf16.mxu0 0
    %669 = vmatpush1.bf16.xpose.msra.mxu0 0
    %670 = vmatprep.subr.bf16.mxu0 0
    %671 = vmatpush1.bf16.xpose.msra.mxu0 0
    %672 = vmatprep.subr.bf16.mxu0 0
    %673 = vmatpush1.bf16.xpose.msra.mxu0 0
    %674 = vmatprep.subr.bf16.mxu0 0
    %675 = vmatpush1.bf16.xpose.msra.mxu0 0
    %676 = vmatprep.subr.bf16.mxu0 0
    %677 = vmatpush1.bf16.xpose.msra.mxu0 0
    %678 = vmatprep.subr.bf16.mxu0 0
    %679 = vmatpush1.bf16.xpose.msra.mxu0 0
    %680 = vmatprep.subr.bf16.mxu0 0
    %681 = vmatpush1.bf16.xpose.msra.mxu0 0
    %682 = vmatprep.subr.bf16.mxu0 0
    %683 = vmatpush1.bf16.xpose.msra.mxu0 0
    %684 = vmatprep.subr.bf16.mxu0 0
    %685 = vmatpush1.bf16.xpose.msra.mxu0 0
    %686 = vmatprep.subr.bf16.mxu0 0
    %687 = vmatpush1.bf16.xpose.msra.mxu0 0
    %688 = vmatprep.subr.bf16.mxu0 0
    %689 = vmatpush1.bf16.xpose.msra.mxu0 0
    %690 = vmatprep.subr.bf16.mxu0 0
    %691 = vmatpush1.bf16.xpose.msra.mxu0 0
    %692 = vmatprep.mubr.bf16.mxu0 0
    %693 = vmatmul.mubr.bf16.gmra.mrb[0].mxu0 %v655
    %v694 = vpop.f32.mrb[0].mxu0
    %v695 = vadd.f32 0.0, %v694
    %v696 = vpop.f32.mrb[0].mxu0
    %v697 = vpop.f32.mrb[0].mxu0
    %v698 = vpop.f32.mrb[0].mxu0
    %699 = vdwg.mxu0
    %701 = vrot.lane.b32.xlu0 %v355, 96
    %v702 = vpop.permute.xlu0 %701
    %v704 = vsel %vm359, %v355, 0
    %v707 = vsel %vm359, %v702, 0
    %709 = vmatprep.subr.bf16.mxu0 0
    %710 = vmatpush1.bf16.xpose.msra.mxu0 %v707
    %711 = vmatprep.subr.bf16.mxu0 0
    %712 = vmatpush1.bf16.xpose.msra.mxu0 0
    %713 = vmatprep.subr.bf16.mxu0 0
    %714 = vmatpush1.bf16.xpose.msra.mxu0 0
    %715 = vmatprep.subr.bf16.mxu0 0
    %716 = vmatpush1.bf16.xpose.msra.mxu0 0
    %717 = vmatprep.subr.bf16.mxu0 0
    %718 = vmatpush1.bf16.xpose.msra.mxu0 0
    %719 = vmatprep.subr.bf16.mxu0 0
    %720 = vmatpush1.bf16.xpose.msra.mxu0 0
    %721 = vmatprep.subr.bf16.mxu0 0
    %722 = vmatpush1.bf16.xpose.msra.mxu0 0
    %723 = vmatprep.subr.bf16.mxu0 0
    %724 = vmatpush1.bf16.xpose.msra.mxu0 0
    %725 = vmatprep.subr.bf16.mxu0 0
    %726 = vmatpush1.bf16.xpose.msra.mxu0 0
    %727 = vmatprep.subr.bf16.mxu0 0
    %728 = vmatpush1.bf16.xpose.msra.mxu0 0
    %729 = vmatprep.subr.bf16.mxu0 0
    %730 = vmatpush1.bf16.xpose.msra.mxu0 0
    %731 = vmatprep.subr.bf16.mxu0 0
    %732 = vmatpush1.bf16.xpose.msra.mxu0 0
    %733 = vmatprep.subr.bf16.mxu0 0
    %734 = vmatpush1.bf16.xpose.msra.mxu0 0
    %735 = vmatprep.subr.bf16.mxu0 0
    %736 = vmatpush1.bf16.xpose.msra.mxu0 0
    %737 = vmatprep.subr.bf16.mxu0 0
    %738 = vmatpush1.bf16.xpose.msra.mxu0 0
    %739 = vmatprep.subr.bf16.mxu0 0
    %740 = vmatpush1.bf16.xpose.msra.mxu0 0
    %741 = vmatprep.mubr.bf16.mxu0 0
    %742 = vmatmul.mubr.bf16.gmra.mrb[0].mxu0 %v704
    %v743 = vpop.f32.mrb[0].mxu0
    %v744 = vadd.f32 0.0, %v743
    %v745 = vpop.f32.mrb[0].mxu0
    %v746 = vpop.f32.mrb[0].mxu0
    %v747 = vpop.f32.mrb[0].mxu0
    %748 = vdwg.mxu0
    %v749 = vmul.f32 %v401, 0.35355338
    %v750 = vmul.f32 %v450, 0.35355338
    %v751 = vmul.f32 %v499, 0.35355338
    %v752 = vmul.f32 %v548, 0.35355338
    %v753 = vmul.f32 %v597, 0.35355338
    %v754 = vmul.f32 %v646, 0.35355338
    %v755 = vmul.f32 %v695, 0.35355338
    %v756 = vmul.f32 %v744, 0.35355338
    %v757 = vsel %vm359, %v749, -inf
    %758 = vmax.xlane.f32.xlu0 %v757
    %v759 = vpop.xlane.xlu0 %758
    %v760 = vsel %vm359, %v750, -inf
    %761 = vmax.xlane.f32.xlu0 %v760
    %v762 = vpop.xlane.xlu0 %761
    %v763 = vsel %vm359, %v751, -inf
    %764 = vmax.xlane.f32.xlu0 %v763
    %v765 = vpop.xlane.xlu0 %764
    %v766 = vsel %vm359, %v752, -inf
    %767 = vmax.xlane.f32.xlu0 %v766
    %v768 = vpop.xlane.xlu0 %767
    %v769 = vsel %vm359, %v753, -inf
    %770 = vmax.xlane.f32.xlu0 %v769
    %v771 = vpop.xlane.xlu0 %770
    %v772 = vsel %vm359, %v754, -inf
    %773 = vmax.xlane.f32.xlu0 %v772
    %v774 = vpop.xlane.xlu0 %773
    %v775 = vsel %vm359, %v755, -inf
    %776 = vmax.xlane.f32.xlu0 %v775
    %v777 = vpop.xlane.xlu0 %776
    %v778 = vsel %vm359, %v756, -inf
    %779 = vmax.xlane.f32.xlu0 %v778
    %v780 = vpop.xlane.xlu0 %779
    %v781 = vsub.f32 %v749, %v759
    %v782 = vsub.f32 %v750, %v762
    %v783 = vsub.f32 %v751, %v765
    %v784 = vsub.f32 %v752, %v768
    %v785 = vsub.f32 %v753, %v771
    %v786 = vsub.f32 %v754, %v774
    %v787 = vsub.f32 %v755, %v777
    %v788 = vsub.f32 %v756, %v780
    %v789 = vmul.f32 %v781, 1.442695
    %v790 = vpow.pop %v789
    %v791 = vmul.f32 %v782, 1.442695
    %v792 = vpow.pop %v791
    %v793 = vmul.f32 %v783, 1.442695
    %v794 = vpow.pop %v793
    %v795 = vmul.f32 %v784, 1.442695
    %v796 = vpow.pop %v795
    %v797 = vmul.f32 %v785, 1.442695
    %v798 = vpow.pop %v797
    %v799 = vmul.f32 %v786, 1.442695
    %v800 = vpow.pop %v799
    %v801 = vmul.f32 %v787, 1.442695
    %v802 = vpow.pop %v801
    %v803 = vmul.f32 %v788, 1.442695
    %v804 = vpow.pop %v803
    %v805 = vsel %vm359, %v790, 0.0
    %806 = vadd.xlane.f32.xlu0 %v805
    %v807 = vpop.xlane.xlu0 %806
    %v808 = vsel %vm359, %v792, 0.0
    %809 = vadd.xlane.f32.xlu0 %v808
    %v810 = vpop.xlane.xlu0 %809
    %v811 = vsel %vm359, %v794, 0.0
    %812 = vadd.xlane.f32.xlu0 %v811
    %v813 = vpop.xlane.xlu0 %812
    %v814 = vsel %vm359, %v796, 0.0
    %815 = vadd.xlane.f32.xlu0 %v814
    %v816 = vpop.xlane.xlu0 %815
    %v817 = vsel %vm359, %v798, 0.0
    %818 = vadd.xlane.f32.xlu0 %v817
    %v819 = vpop.xlane.xlu0 %818
    %v820 = vsel %vm359, %v800, 0.0
    %821 = vadd.xlane.f32.xlu0 %v820
    %v822 = vpop.xlane.xlu0 %821
    %v823 = vsel %vm359, %v802, 0.0
    %824 = vadd.xlane.f32.xlu0 %v823
    %v825 = vpop.xlane.xlu0 %824
    %v826 = vsel %vm359, %v804, 0.0
    %827 = vadd.xlane.f32.xlu0 %v826
    %v828 = vpop.xlane.xlu0 %827
    %v829 = vrcp.pop %v807
    %v830 = vrcp.pop %v810
    %v831 = vrcp.pop %v813
    %v832 = vrcp.pop %v816
    %v833 = vrcp.pop %v819
    %v834 = vrcp.pop %v822
    %v835 = vrcp.pop %v825
    %v836 = vrcp.pop %v828
    %v837 = vmul.f32 %v790, %v829
    %v838 = vmul.f32 %v792, %v830
    %v839 = vmul.f32 %v794, %v831
    %v840 = vmul.f32 %v796, %v832
    %v841 = vmul.f32 %v798, %v833
    %v842 = vmul.f32 %v800, %v834
    %v843 = vmul.f32 %v802, %v835
    %v844 = vmul.f32 %v804, %v836
    %v845 = vpack.c.bf16 %v837, %v837
    %v846 = vpack.c.bf16 %v838, %v838
    %v847 = vpack.c.bf16 %v839, %v839
    %v848 = vpack.c.bf16 %v840, %v840
    %v849 = vpack.c.bf16 %v841, %v841
    %v850 = vpack.c.bf16 %v842, %v842
    %v851 = vpack.c.bf16 %v843, %v843
    %v852 = vpack.c.bf16 %v844, %v844
    %853 = vrot.lane.b32.xlu0 %v348, 64
    %v854 = vpop.permute.xlu0 %853
    %v856 = vsel %vm359, %v845, 0
    %vm858 = vcmask 1043456
    %v860 = vsel %vm858, %v854, 0
    %862 = vmatprep.subr.bf16.mxu0 0
    %863 = vmatpush1.bf16.msra.mxu0 %v860
    %864 = vmatprep.subr.bf16.mxu0 0
    %865 = vmatpush1.bf16.msra.mxu0 0
    %866 = vmatprep.subr.bf16.mxu0 0
    %867 = vmatpush1.bf16.msra.mxu0 0
    %868 = vmatprep.subr.bf16.mxu0 0
    %869 = vmatpush1.bf16.msra.mxu0 0
    %870 = vmatprep.subr.bf16.mxu0 0
    %871 = vmatpush1.bf16.msra.mxu0 0
    %872 = vmatprep.subr.bf16.mxu0 0
    %873 = vmatpush1.bf16.msra.mxu0 0
    %874 = vmatprep.subr.bf16.mxu0 0
    %875 = vmatpush1.bf16.msra.mxu0 0
    %876 = vmatprep.subr.bf16.mxu0 0
    %877 = vmatpush1.bf16.msra.mxu0 0
    %878 = vmatprep.subr.bf16.mxu0 0
    %879 = vmatpush1.bf16.msra.mxu0 0
    %880 = vmatprep.subr.bf16.mxu0 0
    %881 = vmatpush1.bf16.msra.mxu0 0
    %882 = vmatprep.subr.bf16.mxu0 0
    %883 = vmatpush1.bf16.msra.mxu0 0
    %884 = vmatprep.subr.bf16.mxu0 0
    %885 = vmatpush1.bf16.msra.mxu0 0
    %886 = vmatprep.subr.bf16.mxu0 0
    %887 = vmatpush1.bf16.msra.mxu0 0
    %888 = vmatprep.subr.bf16.mxu0 0
    %889 = vmatpush1.bf16.msra.mxu0 0
    %890 = vmatprep.subr.bf16.mxu0 0
    %891 = vmatpush1.bf16.msra.mxu0 0
    %892 = vmatprep.subr.bf16.mxu0 0
    %893 = vmatpush1.bf16.msra.mxu0 0
    %894 = vmatprep.mubr.bf16.mxu0 0
    %895 = vmatmul.mubr.bf16.gmra.mrb[0].mxu0 %v856
    %v896 = vpop.f32.mrb[0].mxu0
    %v897 = vadd.f32 0.0, %v896
    %v898 = vpop.f32.mrb[0].mxu0
    %v899 = vpop.f32.mrb[0].mxu0
    %v900 = vpop.f32.mrb[0].mxu0
    %901 = vdwg.mxu0
    %902 = vrot.lane.b32.xlu0 %v349, 64
    %v903 = vpop.permute.xlu0 %902
    %v905 = vsel %vm359, %v846, 0
    %v908 = vsel %vm858, %v903, 0
    %910 = vmatprep.subr.bf16.mxu0 0
    %911 = vmatpush1.bf16.msra.mxu0 %v908
    %912 = vmatprep.subr.bf16.mxu0 0
    %913 = vmatpush1.bf16.msra.mxu0 0
    %914 = vmatprep.subr.bf16.mxu0 0
    %915 = vmatpush1.bf16.msra.mxu0 0
    %916 = vmatprep.subr.bf16.mxu0 0
    %917 = vmatpush1.bf16.msra.mxu0 0
    %918 = vmatprep.subr.bf16.mxu0 0
    %919 = vmatpush1.bf16.msra.mxu0 0
    %920 = vmatprep.subr.bf16.mxu0 0
    %921 = vmatpush1.bf16.msra.mxu0 0
    %922 = vmatprep.subr.bf16.mxu0 0
    %923 = vmatpush1.bf16.msra.mxu0 0
    %924 = vmatprep.subr.bf16.mxu0 0
    %925 = vmatpush1.bf16.msra.mxu0 0
    %926 = vmatprep.subr.bf16.mxu0 0
    %927 = vmatpush1.bf16.msra.mxu0 0
    %928 = vmatprep.subr.bf16.mxu0 0
    %929 = vmatpush1.bf16.msra.mxu0 0
    %930 = vmatprep.subr.bf16.mxu0 0
    %931 = vmatpush1.bf16.msra.mxu0 0
    %932 = vmatprep.subr.bf16.mxu0 0
    %933 = vmatpush1.bf16.msra.mxu0 0
    %934 = vmatprep.subr.bf16.mxu0 0
    %935 = vmatpush1.bf16.msra.mxu0 0
    %936 = vmatprep.subr.bf16.mxu0 0
    %937 = vmatpush1.bf16.msra.mxu0 0
    %938 = vmatprep.subr.bf16.mxu0 0
    %939 = vmatpush1.bf16.msra.mxu0 0
    %940 = vmatprep.subr.bf16.mxu0 0
    %941 = vmatpush1.bf16.msra.mxu0 0
    %942 = vmatprep.mubr.bf16.mxu0 0
    %943 = vmatmul.mubr.bf16.gmra.mrb[0].mxu0 %v905
    %v944 = vpop.f32.mrb[0].mxu0
    %v945 = vadd.f32 0.0, %v944
    %v946 = vpop.f32.mrb[0].mxu0
    %v947 = vpop.f32.mrb[0].mxu0
    %v948 = vpop.f32.mrb[0].mxu0
    %949 = vdwg.mxu0
    %950 = vrot.lane.b32.xlu0 %v350, 64
    %v951 = vpop.permute.xlu0 %950
    %v953 = vsel %vm359, %v847, 0
    %v956 = vsel %vm858, %v951, 0
    %958 = vmatprep.subr.bf16.mxu0 0
    %959 = vmatpush1.bf16.msra.mxu0 %v956
    %960 = vmatprep.subr.bf16.mxu0 0
    %961 = vmatpush1.bf16.msra.mxu0 0
    %962 = vmatprep.subr.bf16.mxu0 0
    %963 = vmatpush1.bf16.msra.mxu0 0
    %964 = vmatprep.subr.bf16.mxu0 0
    %965 = vmatpush1.bf16.msra.mxu0 0
    %966 = vmatprep.subr.bf16.mxu0 0
    %967 = vmatpush1.bf16.msra.mxu0 0
    %968 = vmatprep.subr.bf16.mxu0 0
    %969 = vmatpush1.bf16.msra.mxu0 0
    %970 = vmatprep.subr.bf16.mxu0 0
    %971 = vmatpush1.bf16.msra.mxu0 0
    %972 = vmatprep.subr.bf16.mxu0 0
    %973 = vmatpush1.bf16.msra.mxu0 0
    %974 = vmatprep.subr.bf16.mxu0 0
    %975 = vmatpush1.bf16.msra.mxu0 0
    %976 = vmatprep.subr.bf16.mxu0 0
    %977 = vmatpush1.bf16.msra.mxu0 0
    %978 = vmatprep.subr.bf16.mxu0 0
    %979 = vmatpush1.bf16.msra.mxu0 0
    %980 = vmatprep.subr.bf16.mxu0 0
    %981 = vmatpush1.bf16.msra.mxu0 0
    %982 = vmatprep.subr.bf16.mxu0 0
    %983 = vmatpush1.bf16.msra.mxu0 0
    %984 = vmatprep.subr.bf16.mxu0 0
    %985 = vmatpush1.bf16.msra.mxu0 0
    %986 = vmatprep.subr.bf16.mxu0 0
    %987 = vmatpush1.bf16.msra.mxu0 0
    %988 = vmatprep.subr.bf16.mxu0 0
    %989 = vmatpush1.bf16.msra.mxu0 0
    %990 = vmatprep.mubr.bf16.mxu0 0
    %991 = vmatmul.mubr.bf16.gmra.mrb[0].mxu0 %v953
    %v992 = vpop.f32.mrb[0].mxu0
    %v993 = vadd.f32 0.0, %v992
    %v994 = vpop.f32.mrb[0].mxu0
    %v995 = vpop.f32.mrb[0].mxu0
    %v996 = vpop.f32.mrb[0].mxu0
    %997 = vdwg.mxu0
    %998 = vrot.lane.b32.xlu0 %v351, 64
    %v999 = vpop.permute.xlu0 %998
    %v1001 = vsel %vm359, %v848, 0
    %v1004 = vsel %vm858, %v999, 0
    %1006 = vmatprep.subr.bf16.mxu0 0
    %1007 = vmatpush1.bf16.msra.mxu0 %v1004
    %1008 = vmatprep.subr.bf16.mxu0 0
    %1009 = vmatpush1.bf16.msra.mxu0 0
    %1010 = vmatprep.subr.bf16.mxu0 0
    %1011 = vmatpush1.bf16.msra.mxu0 0
    %1012 = vmatprep.subr.bf16.mxu0 0
    %1013 = vmatpush1.bf16.msra.mxu0 0
    %1014 = vmatprep.subr.bf16.mxu0 0
    %1015 = vmatpush1.bf16.msra.mxu0 0
    %1016 = vmatprep.subr.bf16.mxu0 0
    %1017 = vmatpush1.bf16.msra.mxu0 0
    %1018 = vmatprep.subr.bf16.mxu0 0
    %1019 = vmatpush1.bf16.msra.mxu0 0
    %1020 = vmatprep.subr.bf16.mxu0 0
    %1021 = vmatpush1.bf16.msra.mxu0 0
    %1022 = vmatprep.subr.bf16.mxu0 0
    %1023 = vmatpush1.bf16.msra.mxu0 0
    %1024 = vmatprep.subr.bf16.mxu0 0
    %1025 = vmatpush1.bf16.msra.mxu0 0
    %1026 = vmatprep.subr.bf16.mxu0 0
    %1027 = vmatpush1.bf16.msra.mxu0 0
    %1028 = vmatprep.subr.bf16.mxu0 0
    %1029 = vmatpush1.bf16.msra.mxu0 0
    %1030 = vmatprep.subr.bf16.mxu0 0
    %1031 = vmatpush1.bf16.msra.mxu0 0
    %1032 = vmatprep.subr.bf16.mxu0 0
    %1033 = vmatpush1.bf16.msra.mxu0 0
    %1034 = vmatprep.subr.bf16.mxu0 0
    %1035 = vmatpush1.bf16.msra.mxu0 0
    %1036 = vmatprep.subr.bf16.mxu0 0
    %1037 = vmatpush1.bf16.msra.mxu0 0
    %1038 = vmatprep.mubr.bf16.mxu0 0
    %1039 = vmatmul.mubr.bf16.gmra.mrb[0].mxu0 %v1001
    %v1040 = vpop.f32.mrb[0].mxu0
    %v1041 = vadd.f32 0.0, %v1040
    %v1042 = vpop.f32.mrb[0].mxu0
    %v1043 = vpop.f32.mrb[0].mxu0
    %v1044 = vpop.f32.mrb[0].mxu0
    %1045 = vdwg.mxu0
    %1046 = vrot.lane.b32.xlu0 %v352, 64
    %v1047 = vpop.permute.xlu0 %1046
    %v1049 = vsel %vm359, %v849, 0
    %v1052 = vsel %vm858, %v1047, 0
    %1054 = vmatprep.subr.bf16.mxu0 0
    %1055 = vmatpush1.bf16.msra.mxu0 %v1052
    %1056 = vmatprep.subr.bf16.mxu0 0
    %1057 = vmatpush1.bf16.msra.mxu0 0
    %1058 = vmatprep.subr.bf16.mxu0 0
    %1059 = vmatpush1.bf16.msra.mxu0 0
    %1060 = vmatprep.subr.bf16.mxu0 0
    %1061 = vmatpush1.bf16.msra.mxu0 0
    %1062 = vmatprep.subr.bf16.mxu0 0
    %1063 = vmatpush1.bf16.msra.mxu0 0
    %1064 = vmatprep.subr.bf16.mxu0 0
    %1065 = vmatpush1.bf16.msra.mxu0 0
    %1066 = vmatprep.subr.bf16.mxu0 0
    %1067 = vmatpush1.bf16.msra.mxu0 0
    %1068 = vmatprep.subr.bf16.mxu0 0
    %1069 = vmatpush1.bf16.msra.mxu0 0
    %1070 = vmatprep.subr.bf16.mxu0 0
    %1071 = vmatpush1.bf16.msra.mxu0 0
    %1072 = vmatprep.subr.bf16.mxu0 0
    %1073 = vmatpush1.bf16.msra.mxu0 0
    %1074 = vmatprep.subr.bf16.mxu0 0
    %1075 = vmatpush1.bf16.msra.mxu0 0
    %1076 = vmatprep.subr.bf16.mxu0 0
    %1077 = vmatpush1.bf16.msra.mxu0 0
    %1078 = vmatprep.subr.bf16.mxu0 0
    %1079 = vmatpush1.bf16.msra.mxu0 0
    %1080 = vmatprep.subr.bf16.mxu0 0
    %1081 = vmatpush1.bf16.msra.mxu0 0
    %1082 = vmatprep.subr.bf16.mxu0 0
    %1083 = vmatpush1.bf16.msra.mxu0 0
    %1084 = vmatprep.subr.bf16.mxu0 0
    %1085 = vmatpush1.bf16.msra.mxu0 0
    %1086 = vmatprep.mubr.bf16.mxu0 0
    %1087 = vmatmul.mubr.bf16.gmra.mrb[0].mxu0 %v1049
    %v1088 = vpop.f32.mrb[0].mxu0
    %v1089 = vadd.f32 0.0, %v1088
    %v1090 = vpop.f32.mrb[0].mxu0
    %v1091 = vpop.f32.mrb[0].mxu0
    %v1092 = vpop.f32.mrb[0].mxu0
    %1093 = vdwg.mxu0
    %1094 = vrot.lane.b32.xlu0 %v353, 64
    %v1095 = vpop.permute.xlu0 %1094
    %v1097 = vsel %vm359, %v850, 0
    %v1100 = vsel %vm858, %v1095, 0
    %1102 = vmatprep.subr.bf16.mxu0 0
    %1103 = vmatpush1.bf16.msra.mxu0 %v1100
    %1104 = vmatprep.subr.bf16.mxu0 0
    %1105 = vmatpush1.bf16.msra.mxu0 0
    %1106 = vmatprep.subr.bf16.mxu0 0
    %1107 = vmatpush1.bf16.msra.mxu0 0
    %1108 = vmatprep.subr.bf16.mxu0 0
    %1109 = vmatpush1.bf16.msra.mxu0 0
    %1110 = vmatprep.subr.bf16.mxu0 0
    %1111 = vmatpush1.bf16.msra.mxu0 0
    %1112 = vmatprep.subr.bf16.mxu0 0
    %1113 = vmatpush1.bf16.msra.mxu0 0
    %1114 = vmatprep.subr.bf16.mxu0 0
    %1115 = vmatpush1.bf16.msra.mxu0 0
    %1116 = vmatprep.subr.bf16.mxu0 0
    %1117 = vmatpush1.bf16.msra.mxu0 0
    %1118 = vmatprep.subr.bf16.mxu0 0
    %1119 = vmatpush1.bf16.msra.mxu0 0
    %1120 = vmatprep.subr.bf16.mxu0 0
    %1121 = vmatpush1.bf16.msra.mxu0 0
    %1122 = vmatprep.subr.bf16.mxu0 0
    %1123 = vmatpush1.bf16.msra.mxu0 0
    %1124 = vmatprep.subr.bf16.mxu0 0
    %1125 = vmatpush1.bf16.msra.mxu0 0
    %1126 = vmatprep.subr.bf16.mxu0 0
    %1127 = vmatpush1.bf16.msra.mxu0 0
    %1128 = vmatprep.subr.bf16.mxu0 0
    %1129 = vmatpush1.bf16.msra.mxu0 0
    %1130 = vmatprep.subr.bf16.mxu0 0
    %1131 = vmatpush1.bf16.msra.mxu0 0
    %1132 = vmatprep.subr.bf16.mxu0 0
    %1133 = vmatpush1.bf16.msra.mxu0 0
    %1134 = vmatprep.mubr.bf16.mxu0 0
    %1135 = vmatmul.mubr.bf16.gmra.mrb[0].mxu0 %v1097
    %v1136 = vpop.f32.mrb[0].mxu0
    %v1137 = vadd.f32 0.0, %v1136
    %v1138 = vpop.f32.mrb[0].mxu0
    %v1139 = vpop.f32.mrb[0].mxu0
    %v1140 = vpop.f32.mrb[0].mxu0
    %1141 = vdwg.mxu0
    %1142 = vrot.lane.b32.xlu0 %v354, 64
    %v1143 = vpop.permute.xlu0 %1142
    %v1145 = vsel %vm359, %v851, 0
    %v1148 = vsel %vm858, %v1143, 0
    %1150 = vmatprep.subr.bf16.mxu0 0
    %1151 = vmatpush1.bf16.msra.mxu0 %v1148
    %1152 = vmatprep.subr.bf16.mxu0 0
    %1153 = vmatpush1.bf16.msra.mxu0 0
    %1154 = vmatprep.subr.bf16.mxu0 0
    %1155 = vmatpush1.bf16.msra.mxu0 0
    %1156 = vmatprep.subr.bf16.mxu0 0
    %1157 = vmatpush1.bf16.msra.mxu0 0
    %1158 = vmatprep.subr.bf16.mxu0 0
    %1159 = vmatpush1.bf16.msra.mxu0 0
    %1160 = vmatprep.subr.bf16.mxu0 0
    %1161 = vmatpush1.bf16.msra.mxu0 0
    %1162 = vmatprep.subr.bf16.mxu0 0
    %1163 = vmatpush1.bf16.msra.mxu0 0
    %1164 = vmatprep.subr.bf16.mxu0 0
    %1165 = vmatpush1.bf16.msra.mxu0 0
    %1166 = vmatprep.subr.bf16.mxu0 0
    %1167 = vmatpush1.bf16.msra.mxu0 0
    %1168 = vmatprep.subr.bf16.mxu0 0
    %1169 = vmatpush1.bf16.msra.mxu0 0
    %1170 = vmatprep.subr.bf16.mxu0 0
    %1171 = vmatpush1.bf16.msra.mxu0 0
    %1172 = vmatprep.subr.bf16.mxu0 0
    %1173 = vmatpush1.bf16.msra.mxu0 0
    %1174 = vmatprep.subr.bf16.mxu0 0
    %1175 = vmatpush1.bf16.msra.mxu0 0
    %1176 = vmatprep.subr.bf16.mxu0 0
    %1177 = vmatpush1.bf16.msra.mxu0 0
    %1178 = vmatprep.subr.bf16.mxu0 0
    %1179 = vmatpush1.bf16.msra.mxu0 0
    %1180 = vmatprep.subr.bf16.mxu0 0
    %1181 = vmatpush1.bf16.msra.mxu0 0
    %1182 = vmatprep.mubr.bf16.mxu0 0
    %1183 = vmatmul.mubr.bf16.gmra.mrb[0].mxu0 %v1145
    %v1184 = vpop.f32.mrb[0].mxu0
    %v1185 = vadd.f32 0.0, %v1184
    %v1186 = vpop.f32.mrb[0].mxu0
    %v1187 = vpop.f32.mrb[0].mxu0
    %v1188 = vpop.f32.mrb[0].mxu0
    %1189 = vdwg.mxu0
    %1190 = vrot.lane.b32.xlu0 %v355, 64
    %v1191 = vpop.permute.xlu0 %1190
    %v1193 = vsel %vm359, %v852, 0
    %v1196 = vsel %vm858, %v1191, 0
    %1198 = vmatprep.subr.bf16.mxu0 0
    %1199 = vmatpush1.bf16.msra.mxu0 %v1196
    %1200 = vmatprep.subr.bf16.mxu0 0
    %1201 = vmatpush1.bf16.msra.mxu0 0
    %1202 = vmatprep.subr.bf16.mxu0 0
    %1203 = vmatpush1.bf16.msra.mxu0 0
    %1204 = vmatprep.subr.bf16.mxu0 0
    %1205 = vmatpush1.bf16.msra.mxu0 0
    %1206 = vmatprep.subr.bf16.mxu0 0
    %1207 = vmatpush1.bf16.msra.mxu0 0
    %1208 = vmatprep.subr.bf16.mxu0 0
    %1209 = vmatpush1.bf16.msra.mxu0 0
    %1210 = vmatprep.subr.bf16.mxu0 0
    %1211 = vmatpush1.bf16.msra.mxu0 0
    %1212 = vmatprep.subr.bf16.mxu0 0
    %1213 = vmatpush1.bf16.msra.mxu0 0
    %1214 = vmatprep.subr.bf16.mxu0 0
    %1215 = vmatpush1.bf16.msra.mxu0 0
    %1216 = vmatprep.subr.bf16.mxu0 0
    %1217 = vmatpush1.bf16.msra.mxu0 0
    %1218 = vmatprep.subr.bf16.mxu0 0
    %1219 = vmatpush1.bf16.msra.mxu0 0
    %1220 = vmatprep.subr.bf16.mxu0 0
    %1221 = vmatpush1.bf16.msra.mxu0 0
    %1222 = vmatprep.subr.bf16.mxu0 0
    %1223 = vmatpush1.bf16.msra.mxu0 0
    %1224 = vmatprep.subr.bf16.mxu0 0
    %1225 = vmatpush1.bf16.msra.mxu0 0
    %1226 = vmatprep.subr.bf16.mxu0 0
    %1227 = vmatpush1.bf16.msra.mxu0 0
    %1228 = vmatprep.subr.bf16.mxu0 0
    %1229 = vmatpush1.bf16.msra.mxu0 0
    %1230 = vmatprep.mubr.bf16.mxu0 0
    %1231 = vmatmul.mubr.bf16.gmra.mrb[0].mxu0 %v1193
    %v1232 = vpop.f32.mrb[0].mxu0
    %v1233 = vadd.f32 0.0, %v1232
    %v1234 = vpop.f32.mrb[0].mxu0
    %v1235 = vpop.f32.mrb[0].mxu0
    %v1236 = vpop.f32.mrb[0].mxu0
    %1237 = vdwg.mxu0
    %1240 = vrot.lane.b32.xlu0 %v993, 8
    %v1241 = vpop.permute.xlu0 %1240
    %1242 = vrot.lane.b32.xlu0 %v1041, 8
    %v1243 = vpop.permute.xlu0 %1242
    %1248 = vrot.lane.b32.xlu0 %v1089, 16
    %v1249 = vpop.permute.xlu0 %1248
    %1250 = vrot.lane.b32.xlu0 %v1137, 16
    %v1251 = vpop.permute.xlu0 %1250
    %1256 = vrot.lane.b32.xlu0 %v1185, 24
    %v1257 = vpop.permute.xlu0 %1256
    %1258 = vrot.lane.b32.xlu0 %v1233, 24
    %v1259 = vpop.permute.xlu0 %1258
    %v1262 = vsel %vm359, %v897, %v1241
    %v1263 = vsel %vm359, %v945, %v1243
    %vm1264 = vcmask 130048
    %v1265 = vsel %vm1264, %v1262, %v1249
    %v1266 = vsel %vm1264, %v1263, %v1251
    %vm1267 = vcmask 195584
    %v1268 = vsel %vm1267, %v1265, %v1257
    %v1269 = vsel %vm1267, %v1266, %v1259
    %v1270 = vpack.c.bf16 %v1269, %v1268
    %v1272 = vlaneseq
    %v1273 = vshrl.u32 %v1272, 7
    %v1274 = vsub.s32 0, %v1273
    %v1275 = vrot.slane %v327, %v1274
    %v1281 = vunpack.c.l.b16 %v323
    %v1282 = vunpack.c.l.b16 %v324
    %v1283 = vunpack.c.l.b16 %v325
    %v1284 = vunpack.c.l.b16 %v326
    %v1285 = vpack.c.b16 %v1282, %v1281
    %v1286 = vpack.c.b16 %v1284, %v1283
    %v1290 = vsel %vm278, %v1270, 0
    %1292 = vmatprep.subr.bf16.mxu0 0
    %1293 = vmatpush1.bf16.msra.mxu0 %v1285
    %1294 = vmatprep.subr.bf16.mxu0 0
    %1295 = vmatpush1.bf16.msra.mxu0 %v1286
    %1296 = vmatprep.subr.bf16.mxu0 0
    %1297 = vmatpush1.bf16.msra.mxu0 0
    %1298 = vmatprep.subr.bf16.mxu0 0
    %1299 = vmatpush1.bf16.msra.mxu0 0
    %1300 = vmatprep.subr.bf16.mxu0 0
    %1301 = vmatpush1.bf16.msra.mxu0 0
    %1302 = vmatprep.subr.bf16.mxu0 0
    %1303 = vmatpush1.bf16.msra.mxu0 0
    %1304 = vmatprep.subr.bf16.mxu0 0
    %1305 = vmatpush1.bf16.msra.mxu0 0
    %1306 = vmatprep.subr.bf16.mxu0 0
    %1307 = vmatpush1.bf16.msra.mxu0 0
    %1308 = vmatprep.subr.bf16.mxu0 0
    %1309 = vmatpush1.bf16.msra.mxu0 0
    %1310 = vmatprep.subr.bf16.mxu0 0
    %1311 = vmatpush1.bf16.msra.mxu0 0
    %1312 = vmatprep.subr.bf16.mxu0 0
    %1313 = vmatpush1.bf16.msra.mxu0 0
    %1314 = vmatprep.subr.bf16.mxu0 0
    %1315 = vmatpush1.bf16.msra.mxu0 0
    %1316 = vmatprep.subr.bf16.mxu0 0
    %1317 = vmatpush1.bf16.msra.mxu0 0
    %1318 = vmatprep.subr.bf16.mxu0 0
    %1319 = vmatpush1.bf16.msra.mxu0 0
    %1320 = vmatprep.subr.bf16.mxu0 0
    %1321 = vmatpush1.bf16.msra.mxu0 0
    %1322 = vmatprep.subr.bf16.mxu0 0
    %1323 = vmatpush1.bf16.msra.mxu0 0
    %1324 = vmatprep.mubr.bf16.mxu0 0
    %1325 = vmatmul.mubr.bf16.gmra.mrb[0].mxu0 %v1290
    %v1326 = vpop.f32.mrb[0].mxu0
    %v1327 = vadd.f32 %v1275, %v1326
    %v1328 = vpop.f32.mrb[0].mxu0
    %v1329 = vpop.f32.mrb[0].mxu0
    %v1330 = vadd.f32 %v1275, %v1329
    %v1331 = vpop.f32.mrb[0].mxu0
    %1332 = vdwg.mxu0
    %v1333 = vld [vmem:[#allocation7] sm:$0x1]
    %v1334 = vld [vmem:[#allocation8] sm:$0x1]
    %v1335 = vadd.f32 %v250, %v1327
    %v1336 = vadd.f32 %v251, %v1330
    %v1337 = vsel %vm278, %v1335, 0.0
    %1338 = vadd.xlane.f32.xlu0 %v1337
    %v1339 = vpop.xlane.xlu0 %1338
    %v1340 = vsel %vm278, %v1336, 0.0
    %1341 = vadd.xlane.f32.xlu0 %v1340
    %v1342 = vpop.xlane.xlu0 %1341
    %v1343 = vrcp.pop 32.0
    %v1344 = vmul.f32 %v1339, %v1343
    %v1345 = vmul.f32 %v1342, %v1343
    %v1346 = vsub.f32 %v1335, %v1344
    %v1347 = vsub.f32 %v1336, %v1345
    %v1348 = vmul.f32 %v1346, %v1346
    %v1349 = vmul.f32 %v1347, %v1347
    %v1350 = vsel %vm278, %v1348, 0.0
    %1351 = vadd.xlane.f32.xlu0 %v1350
    %v1352 = vpop.xlane.xlu0 %1351
    %v1353 = vsel %vm278, %v1349, 0.0
    %1354 = vadd.xlane.f32.xlu0 %v1353
    %v1355 = vpop.xlane.xlu0 %1354
    %v1356 = vmul.f32 %v1352, %v1343
    %v1357 = vmul.f32 %v1355, %v1343
    %v1358 = vadd.f32 %v1356, 1e-05
    %v1359 = vadd.f32 %v1357, 1e-05
    %v1360 = vrsqrt.pop %v1358
    %v1361 = vrsqrt.pop %v1359
    %v1362 = vmul.f32 %v1346, %v1360
    %v1363 = vmul.f32 %v1347, %v1361
    %v1365 = vlaneseq
    %v1366 = vshrl.u32 %v1365, 7
    %v1367 = vsub.s32 0, %v1366
    %v1368 = vrot.slane %v1333, %v1367
    %v1370 = vmul.f32 %v1362, %v1368
    %v1371 = vmul.f32 %v1363, %v1368
    %v1373 = vlaneseq
    %v1374 = vshrl.u32 %v1373, 7
    %v1375 = vsub.s32 0, %v1374
    %v1376 = vrot.slane %v1334, %v1375
    %v1378 = vadd.f32 %v1370, %v1376
    %v1379 = vadd.f32 %v1371, %v1376
    %v1380 = vpack.c.bf16 %v1379, %v1378
    %v1381 = vld [vmem:[%s8] sm:$0xf]
    %v1382 = vld [vmem:[%s8 + $0x4] sm:$0xf]
    %v1383 = vld [vmem:[%s8 + $0x8] sm:$0xf]
    %v1384 = vld [vmem:[%s8 + $0xc] sm:$0xf]
    %v1385 = vld [vmem:[#allocation10] sm:$0x1]
    %v1387 = vlaneseq
    %v1388 = vshrl.u32 %v1387, 7
    %v1389 = vsub.s32 0, %v1388
    %v1390 = vrot.slane %v1385, %v1389
    %v1396 = vunpack.c.l.b16 %v1381
    %v1397 = vunpack.c.l.b16 %v1382
    %v1398 = vunpack.c.l.b16 %v1383
    %v1399 = vunpack.c.l.b16 %v1384
    %v1400 = vpack.c.b16 %v1397, %v1396
    %v1401 = vpack.c.b16 %v1399, %v1398
    %v1405 = vsel %vm278, %v1380, 0
    %1407 = vmatprep.subr.bf16.mxu0 0
    %1408 = vmatpush1.bf16.msra.mxu0 %v1400
    %1409 = vmatprep.subr.bf16.mxu0 0
    %1410 = vmatpush1.bf16.msra.mxu0 %v1401
    %1411 = vmatprep.subr.bf16.mxu0 0
    %1412 = vmatpush1.bf16.msra.mxu0 0
    %1413 = vmatprep.subr.bf16.mxu0 0
    %1414 = vmatpush1.bf16.msra.mxu0 0
    %1415 = vmatprep.subr.bf16.mxu0 0
    %1416 = vmatpush1.bf16.msra.mxu0 0
    %1417 = vmatprep.subr.bf16.mxu0 0
    %1418 = vmatpush1.bf16.msra.mxu0 0
    %1419 = vmatprep.subr.bf16.mxu0 0
    %1420 = vmatpush1.bf16.msra.mxu0 0
    %1421 = vmatprep.subr.bf16.mxu0 0
    %1422 = vmatpush1.bf16.msra.mxu0 0
    %1423 = vmatprep.subr.bf16.mxu0 0
    %1424 = vmatpush1.bf16.msra.mxu0 0
    %1425 = vmatprep.subr.bf16.mxu0 0
    %1426 = vmatpush1.bf16.msra.mxu0 0
    %1427 = vmatprep.subr.bf16.mxu0 0
    %1428 = vmatpush1.bf16.msra.mxu0 0
    %1429 = vmatprep.subr.bf16.mxu0 0
    %1430 = vmatpush1.bf16.msra.mxu0 0
    %1431 = vmatprep.subr.bf16.mxu0 0
    %1432 = vmatpush1.bf16.msra.mxu0 0
    %1433 = vmatprep.subr.bf16.mxu0 0
    %1434 = vmatpush1.bf16.msra.mxu0 0
    %1435 = vmatprep.subr.bf16.mxu0 0
    %1436 = vmatpush1.bf16.msra.mxu0 0
    %1437 = vmatprep.subr.bf16.mxu0 0
    %1438 = vmatpush1.bf16.msra.mxu0 0
    %1439 = vmatprep.mubr.bf16.mxu0 0
    %1440 = vmatmul.mubr.bf16.gmra.mrb[0].mxu0 %v1405
    %v1441 = vpop.f32.mrb[0].mxu0
    %v1442 = vadd.f32 %v1390, %v1441
    %v1443 = vpop.f32.mrb[0].mxu0
    %v1444 = vpop.f32.mrb[0].mxu0
    %v1445 = vadd.f32 %v1390, %v1444
    %v1446 = vpop.f32.mrb[0].mxu0
    %1447 = vdwg.mxu0
    %v1448 = vpack.c.bf16 %v253, %v252
    %v1449 = vld [vmem:[%s10] sm:$0xf]
    %v1450 = vld [vmem:[%s10 + $0x4] sm:$0xf]
    %v1451 = vld [vmem:[%s10 + $0x8] sm:$0xf]
    %v1452 = vld [vmem:[%s10 + $0xc] sm:$0xf]
    %v1453 = vld [vmem:[#allocation11] sm:$0x1]
    %v1455 = vlaneseq
    %v1456 = vshrl.u32 %v1455, 7
    %v1457 = vsub.s32 0, %v1456
    %v1458 = vrot.slane %v1453, %v1457
    %v1464 = vunpack.c.l.b16 %v1449
    %v1465 = vunpack.c.l.b16 %v1450
    %v1466 = vunpack.c.l.b16 %v1451
    %v1467 = vunpack.c.l.b16 %v1452
    %v1468 = vpack.c.b16 %v1465, %v1464
    %v1469 = vpack.c.b16 %v1467, %v1466
    %v1473 = vsel %vm278, %v1448, 0
    %1475 = vmatprep.subr.bf16.mxu0 0
    %1476 = vmatpush1.bf16.msra.mxu0 %v1468
    %1477 = vmatprep.subr.bf16.mxu0 0
    %1478 = vmatpush1.bf16.msra.mxu0 %v1469
    %1479 = vmatprep.subr.bf16.mxu0 0
    %1480 = vmatpush1.bf16.msra.mxu0 0
    %1481 = vmatprep.subr.bf16.mxu0 0
    %1482 = vmatpush1.bf16.msra.mxu0 0
    %1483 = vmatprep.subr.bf16.mxu0 0
    %1484 = vmatpush1.bf16.msra.mxu0 0
    %1485 = vmatprep.subr.bf16.mxu0 0
    %1486 = vmatpush1.bf16.msra.mxu0 0
    %1487 = vmatprep.subr.bf16.mxu0 0
    %1488 = vmatpush1.bf16.msra.mxu0 0
    %1489 = vmatprep.subr.bf16.mxu0 0
    %1490 = vmatpush1.bf16.msra.mxu0 0
    %1491 = vmatprep.subr.bf16.mxu0 0
    %1492 = vmatpush1.bf16.msra.mxu0 0
    %1493 = vmatprep.subr.bf16.mxu0 0
    %1494 = vmatpush1.bf16.msra.mxu0 0
    %1495 = vmatprep.subr.bf16.mxu0 0
    %1496 = vmatpush1.bf16.msra.mxu0 0
    %1497 = vmatprep.subr.bf16.mxu0 0
    %1498 = vmatpush1.bf16.msra.mxu0 0
    %1499 = vmatprep.subr.bf16.mxu0 0
    %1500 = vmatpush1.bf16.msra.mxu0 0
    %1501 = vmatprep.subr.bf16.mxu0 0
    %1502 = vmatpush1.bf16.msra.mxu0 0
    %1503 = vmatprep.subr.bf16.mxu0 0
    %1504 = vmatpush1.bf16.msra.mxu0 0
    %1505 = vmatprep.subr.bf16.mxu0 0
    %1506 = vmatpush1.bf16.msra.mxu0 0
    %1507 = vmatprep.mubr.bf16.mxu0 0
    %1508 = vmatmul.mubr.bf16.gmra.mrb[0].mxu0 %v1473
    %v1509 = vpop.f32.mrb[0].mxu0
    %v1510 = vadd.f32 %v1458, %v1509
    %v1511 = vpop.f32.mrb[0].mxu0
    %v1512 = vpop.f32.mrb[0].mxu0
    %v1513 = vadd.f32 %v1458, %v1512
    %v1514 = vpop.f32.mrb[0].mxu0
    %1515 = vdwg.mxu0
    %v1516 = vld [vmem:[#allocation13] sm:$0xf]
    %v1517 = vld [vmem:[#allocation13 + $0x4] sm:$0xf]
    %v1518 = vld [vmem:[#allocation13 + $0x8] sm:$0xf]
    %v1519 = vld [vmem:[#allocation13 + $0xc] sm:$0xf]
    %v1520 = vld [vmem:[#allocation14] sm:$0x1]
    %1523 = vrot.lane.b32.xlu0 %v1442, 120
    %v1524 = vpop.permute.xlu0 %1523
    %1525 = vrot.lane.b32.xlu0 %v1445, 120
    %v1526 = vpop.permute.xlu0 %1525
    %1529 = vrot.lane.b32.xlu0 %v1442, 112
    %v1530 = vpop.permute.xlu0 %1529
    %1531 = vrot.lane.b32.xlu0 %v1445, 112
    %v1532 = vpop.permute.xlu0 %1531
    %1535 = vrot.lane.b32.xlu0 %v1442, 104
    %v1536 = vpop.permute.xlu0 %1535
    %1537 = vrot.lane.b32.xlu0 %v1445, 104
    %v1538 = vpop.permute.xlu0 %1537
    %v1541 = vpack.c.bf16 %v1442, %v1442
    %v1542 = vpack.c.bf16 %v1445, %v1445
    %v1543 = vpack.c.bf16 %v1524, %v1524
    %v1544 = vpack.c.bf16 %v1526, %v1526
    %v1545 = vpack.c.bf16 %v1530, %v1530
    %v1546 = vpack.c.bf16 %v1532, %v1532
    %v1547 = vpack.c.bf16 %v1536, %v1536
    %v1548 = vpack.c.bf16 %v1538, %v1538
    %1551 = vrot.lane.b32.xlu0 %v1510, 120
    %v1552 = vpop.permute.xlu0 %1551
    %1553 = vrot.lane.b32.xlu0 %v1513, 120
    %v1554 = vpop.permute.xlu0 %1553
    %1557 = vrot.lane.b32.xlu0 %v1510, 112
    %v1558 = vpop.permute.xlu0 %1557
    %1559 = vrot.lane.b32.xlu0 %v1513, 112
    %v1560 = vpop.permute.xlu0 %1559
    %1563 = vrot.lane.b32.xlu0 %v1510, 104
    %v1564 = vpop.permute.xlu0 %1563
    %1565 = vrot.lane.b32.xlu0 %v1513, 104
    %v1566 = vpop.permute.xlu0 %1565
    %v1569 = vpack.c.bf16 %v1510, %v1510
    %v1570 = vpack.c.bf16 %v1513, %v1513
    %v1571 = vpack.c.bf16 %v1552, %v1552
    %v1572 = vpack.c.bf16 %v1554, %v1554
    %v1573 = vpack.c.bf16 %v1558, %v1558
    %v1574 = vpack.c.bf16 %v1560, %v1560
    %v1575 = vpack.c.bf16 %v1564, %v1564
    %v1576 = vpack.c.bf16 %v1566, %v1566
    %v1578 = vsel %vm359, %v1541, 0
    %v1581 = vsel %vm359, %v1569, 0
    %1583 = vmatprep.subr.bf16.mxu0 0
    %1584 = vmatpush1.bf16.xpose.msra.mxu0 %v1581
    %1585 = vmatprep.subr.bf16.mxu0 0
    %1586 = vmatpush1.bf16.xpose.msra.mxu0 0
    %1587 = vmatprep.subr.bf16.mxu0 0
    %1588 = vmatpush1.bf16.xpose.msra.mxu0 0
    %1589 = vmatprep.subr.bf16.mxu0 0
    %1590 = vmatpush1.bf16.xpose.msra.mxu0 0
    %1591 = vmatprep.subr.bf16.mxu0 0
    %1592 = vmatpush1.bf16.xpose.msra.mxu0 0
    %1593 = vmatprep.subr.bf16.mxu0 0
    %1594 = vmatpush1.bf16.xpose.msra.mxu0 0
    %1595 = vmatprep.subr.bf16.mxu0 0
    %1596 = vmatpush1.bf16.xpose.msra.mxu0 0
    %1597 = vmatprep.subr.bf16.mxu0 0
    %1598 = vmatpush1.bf16.xpose.msra.mxu0 0
    %1599 = vmatprep.subr.bf16.mxu0 0
    %1600 = vmatpush1.bf16.xpose.msra.mxu0 0
    %1601 = vmatprep.subr.bf16.mxu0 0
    %1602 = vmatpush1.bf16.xpose.msra.mxu0 0
    %1603 = vmatprep.subr.bf16.mxu0 0
    %1604 = vmatpush1.bf16.xpose.msra.mxu0 0
    %1605 = vmatprep.subr.bf16.mxu0 0
    %1606 = vmatpush1.bf16.xpose.msra.mxu0 0
    %1607 = vmatprep.subr.bf16.mxu0 0
    %1608 = vmatpush1.bf16.xpose.msra.mxu0 0
    %1609 = vmatprep.subr.bf16.mxu0 0
    %1610 = vmatpush1.bf16.xpose.msra.mxu0 0
    %1611 = vmatprep.subr.bf16.mxu0 0
    %1612 = vmatpush1.bf16.xpose.msra.mxu0 0
    %1613 = vmatprep.subr.bf16.mxu0 0
    %1614 = vmatpush1.bf16.xpose.msra.mxu0 0
    %1615 = vmatprep.mubr.bf16.mxu0 0
    %1616 = vmatmul.mubr.bf16.gmra.mrb[0].mxu0 %v1578
    %v1617 = vpop.f32.mrb[0].mxu0
    %v1618 = vadd.f32 0.0, %v1617
    %v1619 = vpop.f32.mrb[0].mxu0
    %v1620 = vpop.f32.mrb[0].mxu0
    %v1621 = vpop.f32.mrb[0].mxu0
    %1622 = vdwg.mxu0
    %v1624 = vsel %vm359, %v1542, 0
    %v1627 = vsel %vm359, %v1570, 0
    %1629 = vmatprep.subr.bf16.mxu0 0
    %1630 = vmatpush1.bf16.xpose.msra.mxu0 %v1627
    %1631 = vmatprep.subr.bf16.mxu0 0
    %1632 = vmatpush1.bf16.xpose.msra.mxu0 0
    %1633 = vmatprep.subr.bf16.mxu0 0
    %1634 = vmatpush1.bf16.xpose.msra.mxu0 0
    %1635 = vmatprep.subr.bf16.mxu0 0
    %1636 = vmatpush1.bf16.xpose.msra.mxu0 0
    %1637 = vmatprep.subr.bf16.mxu0 0
    %1638 = vmatpush1.bf16.xpose.msra.mxu0 0
    %1639 = vmatprep.subr.bf16.mxu0 0
    %1640 = vmatpush1.bf16.xpose.msra.mxu0 0
    %1641 = vmatprep.subr.bf16.mxu0 0
    %1642 = vmatpush1.bf16.xpose.msra.mxu0 0
    %1643 = vmatprep.subr.bf16.mxu0 0
    %1644 = vmatpush1.bf16.xpose.msra.mxu0 0
    %1645 = vmatprep.subr.bf16.mxu0 0
    %1646 = vmatpush1.bf16.xpose.msra.mxu0 0
    %1647 = vmatprep.subr.bf16.mxu0 0
    %1648 = vmatpush1.bf16.xpose.msra.mxu0 0
    %1649 = vmatprep.subr.bf16.mxu0 0
    %1650 = vmatpush1.bf16.xpose.msra.mxu0 0
    %1651 = vmatprep.subr.bf16.mxu0 0
    %1652 = vmatpush1.bf16.xpose.msra.mxu0 0
    %1653 = vmatprep.subr.bf16.mxu0 0
    %1654 = vmatpush1.bf16.xpose.msra.mxu0 0
    %1655 = vmatprep.subr.bf16.mxu0 0
    %1656 = vmatpush1.bf16.xpose.msra.mxu0 0
    %1657 = vmatprep.subr.bf16.mxu0 0
    %1658 = vmatpush1.bf16.xpose.msra.mxu0 0
    %1659 = vmatprep.subr.bf16.mxu0 0
    %1660 = vmatpush1.bf16.xpose.msra.mxu0 0
    %1661 = vmatprep.mubr.bf16.mxu0 0
    %1662 = vmatmul.mubr.bf16.gmra.mrb[0].mxu0 %v1624
    %v1663 = vpop.f32.mrb[0].mxu0
    %v1664 = vadd.f32 0.0, %v1663
    %v1665 = vpop.f32.mrb[0].mxu0
    %v1666 = vpop.f32.mrb[0].mxu0
    %v1667 = vpop.f32.mrb[0].mxu0
    %1668 = vdwg.mxu0
    %v1670 = vsel %vm359, %v1543, 0
    %v1673 = vsel %vm359, %v1571, 0
    %1675 = vmatprep.subr.bf16.mxu0 0
    %1676 = vmatpush1.bf16.xpose.msra.mxu0 %v1673
    %1677 = vmatprep.subr.bf16.mxu0 0
    %1678 = vmatpush1.bf16.xpose.msra.mxu0 0
    %1679 = vmatprep.subr.bf16.mxu0 0
    %1680 = vmatpush1.bf16.xpose.msra.mxu0 0
    %1681 = vmatprep.subr.bf16.mxu0 0
    %1682 = vmatpush1.bf16.xpose.msra.mxu0 0
    %1683 = vmatprep.subr.bf16.mxu0 0
    %1684 = vmatpush1.bf16.xpose.msra.mxu0 0
    %1685 = vmatprep.subr.bf16.mxu0 0
    %1686 = vmatpush1.bf16.xpose.msra.mxu0 0
    %1687 = vmatprep.subr.bf16.mxu0 0
    %1688 = vmatpush1.bf16.xpose.msra.mxu0 0
    %1689 = vmatprep.subr.bf16.mxu0 0
    %1690 = vmatpush1.bf16.xpose.msra.mxu0 0
    %1691 = vmatprep.subr.bf16.mxu0 0
    %1692 = vmatpush1.bf16.xpose.msra.mxu0 0
    %1693 = vmatprep.subr.bf16.mxu0 0
    %1694 = vmatpush1.bf16.xpose.msra.mxu0 0
    %1695 = vmatprep.subr.bf16.mxu0 0
    %1696 = vmatpush1.bf16.xpose.msra.mxu0 0
    %1697 = vmatprep.subr.bf16.mxu0 0
    %1698 = vmatpush1.bf16.xpose.msra.mxu0 0
    %1699 = vmatprep.subr.bf16.mxu0 0
    %1700 = vmatpush1.bf16.xpose.msra.mxu0 0
    %1701 = vmatprep.subr.bf16.mxu0 0
    %1702 = vmatpush1.bf16.xpose.msra.mxu0 0
    %1703 = vmatprep.subr.bf16.mxu0 0
    %1704 = vmatpush1.bf16.xpose.msra.mxu0 0
    %1705 = vmatprep.subr.bf16.mxu0 0
    %1706 = vmatpush1.bf16.xpose.msra.mxu0 0
    %1707 = vmatprep.mubr.bf16.mxu0 0
    %1708 = vmatmul.mubr.bf16.gmra.mrb[0].mxu0 %v1670
    %v1709 = vpop.f32.mrb[0].mxu0
    %v1710 = vadd.f32 0.0, %v1709
    %v1711 = vpop.f32.mrb[0].mxu0
    %v1712 = vpop.f32.mrb[0].mxu0
    %v1713 = vpop.f32.mrb[0].mxu0
    %1714 = vdwg.mxu0
    %v1716 = vsel %vm359, %v1544, 0
    %v1719 = vsel %vm359, %v1572, 0
    %1721 = vmatprep.subr.bf16.mxu0 0
    %1722 = vmatpush1.bf16.xpose.msra.mxu0 %v1719
    %1723 = vmatprep.subr.bf16.mxu0 0
    %1724 = vmatpush1.bf16.xpose.msra.mxu0 0
    %1725 = vmatprep.subr.bf16.mxu0 0
    %1726 = vmatpush1.bf16.xpose.msra.mxu0 0
    %1727 = vmatprep.subr.bf16.mxu0 0
    %1728 = vmatpush1.bf16.xpose.msra.mxu0 0
    %1729 = vmatprep.subr.bf16.mxu0 0
    %1730 = vmatpush1.bf16.xpose.msra.mxu0 0
    %1731 = vmatprep.subr.bf16.mxu0 0
    %1732 = vmatpush1.bf16.xpose.msra.mxu0 0
    %1733 = vmatprep.subr.bf16.mxu0 0
    %1734 = vmatpush1.bf16.xpose.msra.mxu0 0
    %1735 = vmatprep.subr.bf16.mxu0 0
    %1736 = vmatpush1.bf16.xpose.msra.mxu0 0
    %1737 = vmatprep.subr.bf16.mxu0 0
    %1738 = vmatpush1.bf16.xpose.msra.mxu0 0
    %1739 = vmatprep.subr.bf16.mxu0 0
    %1740 = vmatpush1.bf16.xpose.msra.mxu0 0
    %1741 = vmatprep.subr.bf16.mxu0 0
    %1742 = vmatpush1.bf16.xpose.msra.mxu0 0
    %1743 = vmatprep.subr.bf16.mxu0 0
    %1744 = vmatpush1.bf16.xpose.msra.mxu0 0
    %1745 = vmatprep.subr.bf16.mxu0 0
    %1746 = vmatpush1.bf16.xpose.msra.mxu0 0
    %1747 = vmatprep.subr.bf16.mxu0 0
    %1748 = vmatpush1.bf16.xpose.msra.mxu0 0
    %1749 = vmatprep.subr.bf16.mxu0 0
    %1750 = vmatpush1.bf16.xpose.msra.mxu0 0
    %1751 = vmatprep.subr.bf16.mxu0 0
    %1752 = vmatpush1.bf16.xpose.msra.mxu0 0
    %1753 = vmatprep.mubr.bf16.mxu0 0
    %1754 = vmatmul.mubr.bf16.gmra.mrb[0].mxu0 %v1716
    %v1755 = vpop.f32.mrb[0].mxu0
    %v1756 = vadd.f32 0.0, %v1755
    %v1757 = vpop.f32.mrb[0].mxu0
    %v1758 = vpop.f32.mrb[0].mxu0
    %v1759 = vpop.f32.mrb[0].mxu0
    %1760 = vdwg.mxu0
    %v1762 = vsel %vm359, %v1545, 0
    %v1765 = vsel %vm359, %v1573, 0
    %1767 = vmatprep.subr.bf16.mxu0 0
    %1768 = vmatpush1.bf16.xpose.msra.mxu0 %v1765
    %1769 = vmatprep.subr.bf16.mxu0 0
    %1770 = vmatpush1.bf16.xpose.msra.mxu0 0
    %1771 = vmatprep.subr.bf16.mxu0 0
    %1772 = vmatpush1.bf16.xpose.msra.mxu0 0
    %1773 = vmatprep.subr.bf16.mxu0 0
    %1774 = vmatpush1.bf16.xpose.msra.mxu0 0
    %1775 = vmatprep.subr.bf16.mxu0 0
    %1776 = vmatpush1.bf16.xpose.msra.mxu0 0
    %1777 = vmatprep.subr.bf16.mxu0 0
    %1778 = vmatpush1.bf16.xpose.msra.mxu0 0
    %1779 = vmatprep.subr.bf16.mxu0 0
    %1780 = vmatpush1.bf16.xpose.msra.mxu0 0
    %1781 = vmatprep.subr.bf16.mxu0 0
    %1782 = vmatpush1.bf16.xpose.msra.mxu0 0
    %1783 = vmatprep.subr.bf16.mxu0 0
    %1784 = vmatpush1.bf16.xpose.msra.mxu0 0
    %1785 = vmatprep.subr.bf16.mxu0 0
    %1786 = vmatpush1.bf16.xpose.msra.mxu0 0
    %1787 = vmatprep.subr.bf16.mxu0 0
    %1788 = vmatpush1.bf16.xpose.msra.mxu0 0
    %1789 = vmatprep.subr.bf16.mxu0 0
    %1790 = vmatpush1.bf16.xpose.msra.mxu0 0
    %1791 = vmatprep.subr.bf16.mxu0 0
    %1792 = vmatpush1.bf16.xpose.msra.mxu0 0
    %1793 = vmatprep.subr.bf16.mxu0 0
    %1794 = vmatpush1.bf16.xpose.msra.mxu0 0
    %1795 = vmatprep.subr.bf16.mxu0 0
    %1796 = vmatpush1.bf16.xpose.msra.mxu0 0
    %1797 = vmatprep.subr.bf16.mxu0 0
    %1798 = vmatpush1.bf16.xpose.msra.mxu0 0
    %1799 = vmatprep.mubr.bf16.mxu0 0
    %1800 = vmatmul.mubr.bf16.gmra.mrb[0].mxu0 %v1762
    %v1801 = vpop.f32.mrb[0].mxu0
    %v1802 = vadd.f32 0.0, %v1801
    %v1803 = vpop.f32.mrb[0].mxu0
    %v1804 = vpop.f32.mrb[0].mxu0
    %v1805 = vpop.f32.mrb[0].mxu0
    %1806 = vdwg.mxu0
    %v1808 = vsel %vm359, %v1546, 0
    %v1811 = vsel %vm359, %v1574, 0
    %1813 = vmatprep.subr.bf16.mxu0 0
    %1814 = vmatpush1.bf16.xpose.msra.mxu0 %v1811
    %1815 = vmatprep.subr.bf16.mxu0 0
    %1816 = vmatpush1.bf16.xpose.msra.mxu0 0
    %1817 = vmatprep.subr.bf16.mxu0 0
    %1818 = vmatpush1.bf16.xpose.msra.mxu0 0
    %1819 = vmatprep.subr.bf16.mxu0 0
    %1820 = vmatpush1.bf16.xpose.msra.mxu0 0
    %1821 = vmatprep.subr.bf16.mxu0 0
    %1822 = vmatpush1.bf16.xpose.msra.mxu0 0
    %1823 = vmatprep.subr.bf16.mxu0 0
    %1824 = vmatpush1.bf16.xpose.msra.mxu0 0
    %1825 = vmatprep.subr.bf16.mxu0 0
    %1826 = vmatpush1.bf16.xpose.msra.mxu0 0
    %1827 = vmatprep.subr.bf16.mxu0 0
    %1828 = vmatpush1.bf16.xpose.msra.mxu0 0
    %1829 = vmatprep.subr.bf16.mxu0 0
    %1830 = vmatpush1.bf16.xpose.msra.mxu0 0
    %1831 = vmatprep.subr.bf16.mxu0 0
    %1832 = vmatpush1.bf16.xpose.msra.mxu0 0
    %1833 = vmatprep.subr.bf16.mxu0 0
    %1834 = vmatpush1.bf16.xpose.msra.mxu0 0
    %1835 = vmatprep.subr.bf16.mxu0 0
    %1836 = vmatpush1.bf16.xpose.msra.mxu0 0
    %1837 = vmatprep.subr.bf16.mxu0 0
    %1838 = vmatpush1.bf16.xpose.msra.mxu0 0
    %1839 = vmatprep.subr.bf16.mxu0 0
    %1840 = vmatpush1.bf16.xpose.msra.mxu0 0
    %1841 = vmatprep.subr.bf16.mxu0 0
    %1842 = vmatpush1.bf16.xpose.msra.mxu0 0
    %1843 = vmatprep.subr.bf16.mxu0 0
    %1844 = vmatpush1.bf16.xpose.msra.mxu0 0
    %1845 = vmatprep.mubr.bf16.mxu0 0
    %1846 = vmatmul.mubr.bf16.gmra.mrb[0].mxu0 %v1808
    %v1847 = vpop.f32.mrb[0].mxu0
    %v1848 = vadd.f32 0.0, %v1847
    %v1849 = vpop.f32.mrb[0].mxu0
    %v1850 = vpop.f32.mrb[0].mxu0
    %v1851 = vpop.f32.mrb[0].mxu0
    %1852 = vdwg.mxu0
    %v1854 = vsel %vm359, %v1547, 0
    %v1857 = vsel %vm359, %v1575, 0
    %1859 = vmatprep.subr.bf16.mxu0 0
    %1860 = vmatpush1.bf16.xpose.msra.mxu0 %v1857
    %1861 = vmatprep.subr.bf16.mxu0 0
    %1862 = vmatpush1.bf16.xpose.msra.mxu0 0
    %1863 = vmatprep.subr.bf16.mxu0 0
    %1864 = vmatpush1.bf16.xpose.msra.mxu0 0
    %1865 = vmatprep.subr.bf16.mxu0 0
    %1866 = vmatpush1.bf16.xpose.msra.mxu0 0
    %1867 = vmatprep.subr.bf16.mxu0 0
    %1868 = vmatpush1.bf16.xpose.msra.mxu0 0
    %1869 = vmatprep.subr.bf16.mxu0 0
    %1870 = vmatpush1.bf16.xpose.msra.mxu0 0
    %1871 = vmatprep.subr.bf16.mxu0 0
    %1872 = vmatpush1.bf16.xpose.msra.mxu0 0
    %1873 = vmatprep.subr.bf16.mxu0 0
    %1874 = vmatpush1.bf16.xpose.msra.mxu0 0
    %1875 = vmatprep.subr.bf16.mxu0 0
    %1876 = vmatpush1.bf16.xpose.msra.mxu0 0
    %1877 = vmatprep.subr.bf16.mxu0 0
    %1878 = vmatpush1.bf16.xpose.msra.mxu0 0
    %1879 = vmatprep.subr.bf16.mxu0 0
    %1880 = vmatpush1.bf16.xpose.msra.mxu0 0
    %1881 = vmatprep.subr.bf16.mxu0 0
    %1882 = vmatpush1.bf16.xpose.msra.mxu0 0
    %1883 = vmatprep.subr.bf16.mxu0 0
    %1884 = vmatpush1.bf16.xpose.msra.mxu0 0
    %1885 = vmatprep.subr.bf16.mxu0 0
    %1886 = vmatpush1.bf16.xpose.msra.mxu0 0
    %1887 = vmatprep.subr.bf16.mxu0 0
    %1888 = vmatpush1.bf16.xpose.msra.mxu0 0
    %1889 = vmatprep.subr.bf16.mxu0 0
    %1890 = vmatpush1.bf16.xpose.msra.mxu0 0
    %1891 = vmatprep.mubr.bf16.mxu0 0
    %1892 = vmatmul.mubr.bf16.gmra.mrb[0].mxu0 %v1854
    %v1893 = vpop.f32.mrb[0].mxu0
    %v1894 = vadd.f32 0.0, %v1893
    %v1895 = vpop.f32.mrb[0].mxu0
    %v1896 = vpop.f32.mrb[0].mxu0
    %v1897 = vpop.f32.mrb[0].mxu0
    %1898 = vdwg.mxu0
    %v1900 = vsel %vm359, %v1548, 0
    %v1903 = vsel %vm359, %v1576, 0
    %1905 = vmatprep.subr.bf16.mxu0 0
    %1906 = vmatpush1.bf16.xpose.msra.mxu0 %v1903
    %1907 = vmatprep.subr.bf16.mxu0 0
    %1908 = vmatpush1.bf16.xpose.msra.mxu0 0
    %1909 = vmatprep.subr.bf16.mxu0 0
    %1910 = vmatpush1.bf16.xpose.msra.mxu0 0
    %1911 = vmatprep.subr.bf16.mxu0 0
    %1912 = vmatpush1.bf16.xpose.msra.mxu0 0
    %1913 = vmatprep.subr.bf16.mxu0 0
    %1914 = vmatpush1.bf16.xpose.msra.mxu0 0
    %1915 = vmatprep.subr.bf16.mxu0 0
    %1916 = vmatpush1.bf16.xpose.msra.mxu0 0
    %1917 = vmatprep.subr.bf16.mxu0 0
    %1918 = vmatpush1.bf16.xpose.msra.mxu0 0
    %1919 = vmatprep.subr.bf16.mxu0 0
    %1920 = vmatpush1.bf16.xpose.msra.mxu0 0
    %1921 = vmatprep.subr.bf16.mxu0 0
    %1922 = vmatpush1.bf16.xpose.msra.mxu0 0
    %1923 = vmatprep.subr.bf16.mxu0 0
    %1924 = vmatpush1.bf16.xpose.msra.mxu0 0
    %1925 = vmatprep.subr.bf16.mxu0 0
    %1926 = vmatpush1.bf16.xpose.msra.mxu0 0
    %1927 = vmatprep.subr.bf16.mxu0 0
    %1928 = vmatpush1.bf16.xpose.msra.mxu0 0
    %1929 = vmatprep.subr.bf16.mxu0 0
    %1930 = vmatpush1.bf16.xpose.msra.mxu0 0
    %1931 = vmatprep.subr.bf16.mxu0 0
    %1932 = vmatpush1.bf16.xpose.msra.mxu0 0
    %1933 = vmatprep.subr.bf16.mxu0 0
    %1934 = vmatpush1.bf16.xpose.msra.mxu0 0
    %1935 = vmatprep.subr.bf16.mxu0 0
    %1936 = vmatpush1.bf16.xpose.msra.mxu0 0
    %1937 = vmatprep.mubr.bf16.mxu0 0
    %1938 = vmatmul.mubr.bf16.gmra.mrb[0].mxu0 %v1900
    %v1939 = vpop.f32.mrb[0].mxu0
    %v1940 = vadd.f32 0.0, %v1939
    %v1941 = vpop.f32.mrb[0].mxu0
    %v1942 = vpop.f32.mrb[0].mxu0
    %v1943 = vpop.f32.mrb[0].mxu0
    %1944 = vdwg.mxu0
    %v1945 = vmul.f32 %v1618, 0.35355338
    %v1946 = vmul.f32 %v1664, 0.35355338
    %v1947 = vmul.f32 %v1710, 0.35355338
    %v1948 = vmul.f32 %v1756, 0.35355338
    %v1949 = vmul.f32 %v1802, 0.35355338
    %v1950 = vmul.f32 %v1848, 0.35355338
    %v1951 = vmul.f32 %v1894, 0.35355338
    %v1952 = vmul.f32 %v1940, 0.35355338
    %v1953 = vsel %vm359, %v1945, -inf
    %1954 = vmax.xlane.f32.xlu0 %v1953
    %v1955 = vpop.xlane.xlu0 %1954
    %v1956 = vsel %vm359, %v1946, -inf
    %1957 = vmax.xlane.f32.xlu0 %v1956
    %v1958 = vpop.xlane.xlu0 %1957
    %v1959 = vsel %vm359, %v1947, -inf
    %1960 = vmax.xlane.f32.xlu0 %v1959
    %v1961 = vpop.xlane.xlu0 %1960
    %v1962 = vsel %vm359, %v1948, -inf
    %1963 = vmax.xlane.f32.xlu0 %v1962
    %v1964 = vpop.xlane.xlu0 %1963
    %v1965 = vsel %vm359, %v1949, -inf
    %1966 = vmax.xlane.f32.xlu0 %v1965
    %v1967 = vpop.xlane.xlu0 %1966
    %v1968 = vsel %vm359, %v1950, -inf
    %1969 = vmax.xlane.f32.xlu0 %v1968
    %v1970 = vpop.xlane.xlu0 %1969
    %v1971 = vsel %vm359, %v1951, -inf
    %1972 = vmax.xlane.f32.xlu0 %v1971
    %v1973 = vpop.xlane.xlu0 %1972
    %v1974 = vsel %vm359, %v1952, -inf
    %1975 = vmax.xlane.f32.xlu0 %v1974
    %v1976 = vpop.xlane.xlu0 %1975
    %v1977 = vsub.f32 %v1945, %v1955
    %v1978 = vsub.f32 %v1946, %v1958
    %v1979 = vsub.f32 %v1947, %v1961
    %v1980 = vsub.f32 %v1948, %v1964
    %v1981 = vsub.f32 %v1949, %v1967
    %v1982 = vsub.f32 %v1950, %v1970
    %v1983 = vsub.f32 %v1951, %v1973
    %v1984 = vsub.f32 %v1952, %v1976
    %v1985 = vmul.f32 %v1977, 1.442695
    %v1986 = vpow.pop %v1985
    %v1987 = vmul.f32 %v1978, 1.442695
    %v1988 = vpow.pop %v1987
    %v1989 = vmul.f32 %v1979, 1.442695
    %v1990 = vpow.pop %v1989
    %v1991 = vmul.f32 %v1980, 1.442695
    %v1992 = vpow.pop %v1991
    %v1993 = vmul.f32 %v1981, 1.442695
    %v1994 = vpow.pop %v1993
    %v1995 = vmul.f32 %v1982, 1.442695
    %v1996 = vpow.pop %v1995
    %v1997 = vmul.f32 %v1983, 1.442695
    %v1998 = vpow.pop %v1997
    %v1999 = vmul.f32 %v1984, 1.442695
    %v2000 = vpow.pop %v1999
    %v2001 = vsel %vm359, %v1986, 0.0
    %2002 = vadd.xlane.f32.xlu0 %v2001
    %v2003 = vpop.xlane.xlu0 %2002
    %v2004 = vsel %vm359, %v1988, 0.0
    %2005 = vadd.xlane.f32.xlu0 %v2004
    %v2006 = vpop.xlane.xlu0 %2005
    %v2007 = vsel %vm359, %v1990, 0.0
    %2008 = vadd.xlane.f32.xlu0 %v2007
    %v2009 = vpop.xlane.xlu0 %2008
    %v2010 = vsel %vm359, %v1992, 0.0
    %2011 = vadd.xlane.f32.xlu0 %v2010
    %v2012 = vpop.xlane.xlu0 %2011
    %v2013 = vsel %vm359, %v1994, 0.0
    %2014 = vadd.xlane.f32.xlu0 %v2013
    %v2015 = vpop.xlane.xlu0 %2014
    %v2016 = vsel %vm359, %v1996, 0.0
    %2017 = vadd.xlane.f32.xlu0 %v2016
    %v2018 = vpop.xlane.xlu0 %2017
    %v2019 = vsel %vm359, %v1998, 0.0
    %2020 = vadd.xlane.f32.xlu0 %v2019
    %v2021 = vpop.xlane.xlu0 %2020
    %v2022 = vsel %vm359, %v2000, 0.0
    %2023 = vadd.xlane.f32.xlu0 %v2022
    %v2024 = vpop.xlane.xlu0 %2023
    %v2025 = vrcp.pop %v2003
    %v2026 = vrcp.pop %v2006
    %v2027 = vrcp.pop %v2009
    %v2028 = vrcp.pop %v2012
    %v2029 = vrcp.pop %v2015
    %v2030 = vrcp.pop %v2018
    %v2031 = vrcp.pop %v2021
    %v2032 = vrcp.pop %v2024
    %v2033 = vmul.f32 %v1986, %v2025
    %v2034 = vmul.f32 %v1988, %v2026
    %v2035 = vmul.f32 %v1990, %v2027
    %v2036 = vmul.f32 %v1992, %v2028
    %v2037 = vmul.f32 %v1994, %v2029
    %v2038 = vmul.f32 %v1996, %v2030
    %v2039 = vmul.f32 %v1998, %v2031
    %v2040 = vmul.f32 %v2000, %v2032
    %v2041 = vpack.c.bf16 %v2033, %v2033
    %v2042 = vpack.c.bf16 %v2034, %v2034
    %v2043 = vpack.c.bf16 %v2035, %v2035
    %v2044 = vpack.c.bf16 %v2036, %v2036
    %v2045 = vpack.c.bf16 %v2037, %v2037
    %v2046 = vpack.c.bf16 %v2038, %v2038
    %v2047 = vpack.c.bf16 %v2039, %v2039
    %v2048 = vpack.c.bf16 %v2040, %v2040
    %2050 = vrot.lane.b32.xlu0 %v1569, 96
    %v2051 = vpop.permute.xlu0 %2050
    %v2053 = vsel %vm359, %v2041, 0
    %v2056 = vsel %vm858, %v2051, 0
    %2058 = vmatprep.subr.bf16.mxu0 0
    %2059 = vmatpush1.bf16.msra.mxu0 %v2056
    %2060 = vmatprep.subr.bf16.mxu0 0
    %2061 = vmatpush1.bf16.msra.mxu0 0
    %2062 = vmatprep.subr.bf16.mxu0 0
    %2063 = vmatpush1.bf16.msra.mxu0 0
    %2064 = vmatprep.subr.bf16.mxu0 0
    %2065 = vmatpush1.bf16.msra.mxu0 0
    %2066 = vmatprep.subr.bf16.mxu0 0
    %2067 = vmatpush1.bf16.msra.mxu0 0
    %2068 = vmatprep.subr.bf16.mxu0 0
    %2069 = vmatpush1.bf16.msra.mxu0 0
    %2070 = vmatprep.subr.bf16.mxu0 0
    %2071 = vmatpush1.bf16.msra.mxu0 0
    %2072 = vmatprep.subr.bf16.mxu0 0
    %2073 = vmatpush1.bf16.msra.mxu0 0
    %2074 = vmatprep.subr.bf16.mxu0 0
    %2075 = vmatpush1.bf16.msra.mxu0 0
    %2076 = vmatprep.subr.bf16.mxu0 0
    %2077 = vmatpush1.bf16.msra.mxu0 0
    %2078 = vmatprep.subr.bf16.mxu0 0
    %2079 = vmatpush1.bf16.msra.mxu0 0
    %2080 = vmatprep.subr.bf16.mxu0 0
    %2081 = vmatpush1.bf16.msra.mxu0 0
    %2082 = vmatprep.subr.bf16.mxu0 0
    %2083 = vmatpush1.bf16.msra.mxu0 0
    %2084 = vmatprep.subr.bf16.mxu0 0
    %2085 = vmatpush1.bf16.msra.mxu0 0
    %2086 = vmatprep.subr.bf16.mxu0 0
    %2087 = vmatpush1.bf16.msra.mxu0 0
    %2088 = vmatprep.subr.bf16.mxu0 0
    %2089 = vmatpush1.bf16.msra.mxu0 0
    %2090 = vmatprep.mubr.bf16.mxu0 0
    %2091 = vmatmul.mubr.bf16.gmra.mrb[0].mxu0 %v2053
    %v2092 = vpop.f32.mrb[0].mxu0
    %v2093 = vadd.f32 0.0, %v2092
    %v2094 = vpop.f32.mrb[0].mxu0
    %v2095 = vpop.f32.mrb[0].mxu0
    %v2096 = vpop.f32.mrb[0].mxu0
    %2097 = vdwg.mxu0
    %2099 = vrot.lane.b32.xlu0 %v1570, 96
    %v2100 = vpop.permute.xlu0 %2099
    %v2102 = vsel %vm359, %v2042, 0
    %v2105 = vsel %vm858, %v2100, 0
    %2107 = vmatprep.subr.bf16.mxu0 0
    %2108 = vmatpush1.bf16.msra.mxu0 %v2105
    %2109 = vmatprep.subr.bf16.mxu0 0
    %2110 = vmatpush1.bf16.msra.mxu0 0
    %2111 = vmatprep.subr.bf16.mxu0 0
    %2112 = vmatpush1.bf16.msra.mxu0 0
    %2113 = vmatprep.subr.bf16.mxu0 0
    %2114 = vmatpush1.bf16.msra.mxu0 0
    %2115 = vmatprep.subr.bf16.mxu0 0
    %2116 = vmatpush1.bf16.msra.mxu0 0
    %2117 = vmatprep.subr.bf16.mxu0 0
    %2118 = vmatpush1.bf16.msra.mxu0 0
    %2119 = vmatprep.subr.bf16.mxu0 0
    %2120 = vmatpush1.bf16.msra.mxu0 0
    %2121 = vmatprep.subr.bf16.mxu0 0
    %2122 = vmatpush1.bf16.msra.mxu0 0
    %2123 = vmatprep.subr.bf16.mxu0 0
    %2124 = vmatpush1.bf16.msra.mxu0 0
    %2125 = vmatprep.subr.bf16.mxu0 0
    %2126 = vmatpush1.bf16.msra.mxu0 0
    %2127 = vmatprep.subr.bf16.mxu0 0
    %2128 = vmatpush1.bf16.msra.mxu0 0
    %2129 = vmatprep.subr.bf16.mxu0 0
    %2130 = vmatpush1.bf16.msra.mxu0 0
    %2131 = vmatprep.subr.bf16.mxu0 0
    %2132 = vmatpush1.bf16.msra.mxu0 0
    %2133 = vmatprep.subr.bf16.mxu0 0
    %2134 = vmatpush1.bf16.msra.mxu0 0
    %2135 = vmatprep.subr.bf16.mxu0 0
    %2136 = vmatpush1.bf16.msra.mxu0 0
    %2137 = vmatprep.subr.bf16.mxu0 0
    %2138 = vmatpush1.bf16.msra.mxu0 0
    %2139 = vmatprep.mubr.bf16.mxu0 0
    %2140 = vmatmul.mubr.bf16.gmra.mrb[0].mxu0 %v2102
    %v2141 = vpop.f32.mrb[0].mxu0
    %v2142 = vadd.f32 0.0, %v2141
    %v2143 = vpop.f32.mrb[0].mxu0
    %v2144 = vpop.f32.mrb[0].mxu0
    %v2145 = vpop.f32.mrb[0].mxu0
    %2146 = vdwg.mxu0
    %2148 = vrot.lane.b32.xlu0 %v1571, 96
    %v2149 = vpop.permute.xlu0 %2148
    %v2151 = vsel %vm359, %v2043, 0
    %v2154 = vsel %vm858, %v2149, 0
    %2156 = vmatprep.subr.bf16.mxu0 0
    %2157 = vmatpush1.bf16.msra.mxu0 %v2154
    %2158 = vmatprep.subr.bf16.mxu0 0
    %2159 = vmatpush1.bf16.msra.mxu0 0
    %2160 = vmatprep.subr.bf16.mxu0 0
    %2161 = vmatpush1.bf16.msra.mxu0 0
    %2162 = vmatprep.subr.bf16.mxu0 0
    %2163 = vmatpush1.bf16.msra.mxu0 0
    %2164 = vmatprep.subr.bf16.mxu0 0
    %2165 = vmatpush1.bf16.msra.mxu0 0
    %2166 = vmatprep.subr.bf16.mxu0 0
    %2167 = vmatpush1.bf16.msra.mxu0 0
    %2168 = vmatprep.subr.bf16.mxu0 0
    %2169 = vmatpush1.bf16.msra.mxu0 0
    %2170 = vmatprep.subr.bf16.mxu0 0
    %2171 = vmatpush1.bf16.msra.mxu0 0
    %2172 = vmatprep.subr.bf16.mxu0 0
    %2173 = vmatpush1.bf16.msra.mxu0 0
    %2174 = vmatprep.subr.bf16.mxu0 0
    %2175 = vmatpush1.bf16.msra.mxu0 0
    %2176 = vmatprep.subr.bf16.mxu0 0
    %2177 = vmatpush1.bf16.msra.mxu0 0
    %2178 = vmatprep.subr.bf16.mxu0 0
    %2179 = vmatpush1.bf16.msra.mxu0 0
    %2180 = vmatprep.subr.bf16.mxu0 0
    %2181 = vmatpush1.bf16.msra.mxu0 0
    %2182 = vmatprep.subr.bf16.mxu0 0
    %2183 = vmatpush1.bf16.msra.mxu0 0
    %2184 = vmatprep.subr.bf16.mxu0 0
    %2185 = vmatpush1.bf16.msra.mxu0 0
    %2186 = vmatprep.subr.bf16.mxu0 0
    %2187 = vmatpush1.bf16.msra.mxu0 0
    %2188 = vmatprep.mubr.bf16.mxu0 0
    %2189 = vmatmul.mubr.bf16.gmra.mrb[0].mxu0 %v2151
    %v2190 = vpop.f32.mrb[0].mxu0
    %v2191 = vadd.f32 0.0, %v2190
    %v2192 = vpop.f32.mrb[0].mxu0
    %v2193 = vpop.f32.mrb[0].mxu0
    %v2194 = vpop.f32.mrb[0].mxu0
    %2195 = vdwg.mxu0
    %2197 = vrot.lane.b32.xlu0 %v1572, 96
    %v2198 = vpop.permute.xlu0 %2197
    %v2200 = vsel %vm359, %v2044, 0
    %v2203 = vsel %vm858, %v2198, 0
    %2205 = vmatprep.subr.bf16.mxu0 0
    %2206 = vmatpush1.bf16.msra.mxu0 %v2203
    %2207 = vmatprep.subr.bf16.mxu0 0
    %2208 = vmatpush1.bf16.msra.mxu0 0
    %2209 = vmatprep.subr.bf16.mxu0 0
    %2210 = vmatpush1.bf16.msra.mxu0 0
    %2211 = vmatprep.subr.bf16.mxu0 0
    %2212 = vmatpush1.bf16.msra.mxu0 0
    %2213 = vmatprep.subr.bf16.mxu0 0
    %2214 = vmatpush1.bf16.msra.mxu0 0
    %2215 = vmatprep.subr.bf16.mxu0 0
    %2216 = vmatpush1.bf16.msra.mxu0 0
    %2217 = vmatprep.subr.bf16.mxu0 0
    %2218 = vmatpush1.bf16.msra.mxu0 0
    %2219 = vmatprep.subr.bf16.mxu0 0
    %2220 = vmatpush1.bf16.msra.mxu0 0
    %2221 = vmatprep.subr.bf16.mxu0 0
    %2222 = vmatpush1.bf16.msra.mxu0 0
    %2223 = vmatprep.subr.bf16.mxu0 0
    %2224 = vmatpush1.bf16.msra.mxu0 0
    %2225 = vmatprep.subr.bf16.mxu0 0
    %2226 = vmatpush1.bf16.msra.mxu0 0
    %2227 = vmatprep.subr.bf16.mxu0 0
    %2228 = vmatpush1.bf16.msra.mxu0 0
    %2229 = vmatprep.subr.bf16.mxu0 0
    %2230 = vmatpush1.bf16.msra.mxu0 0
    %2231 = vmatprep.subr.bf16.mxu0 0
    %2232 = vmatpush1.bf16.msra.mxu0 0
    %2233 = vmatprep.subr.bf16.mxu0 0
    %2234 = vmatpush1.bf16.msra.mxu0 0
    %2235 = vmatprep.subr.bf16.mxu0 0
    %2236 = vmatpush1.bf16.msra.mxu0 0
    %2237 = vmatprep.mubr.bf16.mxu0 0
    %2238 = vmatmul.mubr.bf16.gmra.mrb[0].mxu0 %v2200
    %v2239 = vpop.f32.mrb[0].mxu0
    %v2240 = vadd.f32 0.0, %v2239
    %v2241 = vpop.f32.mrb[0].mxu0
    %v2242 = vpop.f32.mrb[0].mxu0
    %v2243 = vpop.f32.mrb[0].mxu0
    %2244 = vdwg.mxu0
    %2246 = vrot.lane.b32.xlu0 %v1573, 96
    %v2247 = vpop.permute.xlu0 %2246
    %v2249 = vsel %vm359, %v2045, 0
    %v2252 = vsel %vm858, %v2247, 0
    %2254 = vmatprep.subr.bf16.mxu0 0
    %2255 = vmatpush1.bf16.msra.mxu0 %v2252
    %2256 = vmatprep.subr.bf16.mxu0 0
    %2257 = vmatpush1.bf16.msra.mxu0 0
    %2258 = vmatprep.subr.bf16.mxu0 0
    %2259 = vmatpush1.bf16.msra.mxu0 0
    %2260 = vmatprep.subr.bf16.mxu0 0
    %2261 = vmatpush1.bf16.msra.mxu0 0
    %2262 = vmatprep.subr.bf16.mxu0 0
    %2263 = vmatpush1.bf16.msra.mxu0 0
    %2264 = vmatprep.subr.bf16.mxu0 0
    %2265 = vmatpush1.bf16.msra.mxu0 0
    %2266 = vmatprep.subr.bf16.mxu0 0
    %2267 = vmatpush1.bf16.msra.mxu0 0
    %2268 = vmatprep.subr.bf16.mxu0 0
    %2269 = vmatpush1.bf16.msra.mxu0 0
    %2270 = vmatprep.subr.bf16.mxu0 0
    %2271 = vmatpush1.bf16.msra.mxu0 0
    %2272 = vmatprep.subr.bf16.mxu0 0
    %2273 = vmatpush1.bf16.msra.mxu0 0
    %2274 = vmatprep.subr.bf16.mxu0 0
    %2275 = vmatpush1.bf16.msra.mxu0 0
    %2276 = vmatprep.subr.bf16.mxu0 0
    %2277 = vmatpush1.bf16.msra.mxu0 0
    %2278 = vmatprep.subr.bf16.mxu0 0
    %2279 = vmatpush1.bf16.msra.mxu0 0
    %2280 = vmatprep.subr.bf16.mxu0 0
    %2281 = vmatpush1.bf16.msra.mxu0 0
    %2282 = vmatprep.subr.bf16.mxu0 0
    %2283 = vmatpush1.bf16.msra.mxu0 0
    %2284 = vmatprep.subr.bf16.mxu0 0
    %2285 = vmatpush1.bf16.msra.mxu0 0
    %2286 = vmatprep.mubr.bf16.mxu0 0
    %2287 = vmatmul.mubr.bf16.gmra.mrb[0].mxu0 %v2249
    %v2288 = vpop.f32.mrb[0].mxu0
    %v2289 = vadd.f32 0.0, %v2288
    %v2290 = vpop.f32.mrb[0].mxu0
    %v2291 = vpop.f32.mrb[0].mxu0
    %v2292 = vpop.f32.mrb[0].mxu0
    %2293 = vdwg.mxu0
    %2295 = vrot.lane.b32.xlu0 %v1574, 96
    %v2296 = vpop.permute.xlu0 %2295
    %v2298 = vsel %vm359, %v2046, 0
    %v2301 = vsel %vm858, %v2296, 0
    %2303 = vmatprep.subr.bf16.mxu0 0
    %2304 = vmatpush1.bf16.msra.mxu0 %v2301
    %2305 = vmatprep.subr.bf16.mxu0 0
    %2306 = vmatpush1.bf16.msra.mxu0 0
    %2307 = vmatprep.subr.bf16.mxu0 0
    %2308 = vmatpush1.bf16.msra.mxu0 0
    %2309 = vmatprep.subr.bf16.mxu0 0
    %2310 = vmatpush1.bf16.msra.mxu0 0
    %2311 = vmatprep.subr.bf16.mxu0 0
    %2312 = vmatpush1.bf16.msra.mxu0 0
    %2313 = vmatprep.subr.bf16.mxu0 0
    %2314 = vmatpush1.bf16.msra.mxu0 0
    %2315 = vmatprep.subr.bf16.mxu0 0
    %2316 = vmatpush1.bf16.msra.mxu0 0
    %2317 = vmatprep.subr.bf16.mxu0 0
    %2318 = vmatpush1.bf16.msra.mxu0 0
    %2319 = vmatprep.subr.bf16.mxu0 0
    %2320 = vmatpush1.bf16.msra.mxu0 0
    %2321 = vmatprep.subr.bf16.mxu0 0
    %2322 = vmatpush1.bf16.msra.mxu0 0
    %2323 = vmatprep.subr.bf16.mxu0 0
    %2324 = vmatpush1.bf16.msra.mxu0 0
    %2325 = vmatprep.subr.bf16.mxu0 0
    %2326 = vmatpush1.bf16.msra.mxu0 0
    %2327 = vmatprep.subr.bf16.mxu0 0
    %2328 = vmatpush1.bf16.msra.mxu0 0
    %2329 = vmatprep.subr.bf16.mxu0 0
    %2330 = vmatpush1.bf16.msra.mxu0 0
    %2331 = vmatprep.subr.bf16.mxu0 0
    %2332 = vmatpush1.bf16.msra.mxu0 0
    %2333 = vmatprep.subr.bf16.mxu0 0
    %2334 = vmatpush1.bf16.msra.mxu0 0
    %2335 = vmatprep.mubr.bf16.mxu0 0
    %2336 = vmatmul.mubr.bf16.gmra.mrb[0].mxu0 %v2298
    %v2337 = vpop.f32.mrb[0].mxu0
    %v2338 = vadd.f32 0.0, %v2337
    %v2339 = vpop.f32.mrb[0].mxu0
    %v2340 = vpop.f32.mrb[0].mxu0
    %v2341 = vpop.f32.mrb[0].mxu0
    %2342 = vdwg.mxu0
    %2344 = vrot.lane.b32.xlu0 %v1575, 96
    %v2345 = vpop.permute.xlu0 %2344
    %v2347 = vsel %vm359, %v2047, 0
    %v2350 = vsel %vm858, %v2345, 0
    %2352 = vmatprep.subr.bf16.mxu0 0
    %2353 = vmatpush1.bf16.msra.mxu0 %v2350
    %2354 = vmatprep.subr.bf16.mxu0 0
    %2355 = vmatpush1.bf16.msra.mxu0 0
    %2356 = vmatprep.subr.bf16.mxu0 0
    %2357 = vmatpush1.bf16.msra.mxu0 0
    %2358 = vmatprep.subr.bf16.mxu0 0
    %2359 = vmatpush1.bf16.msra.mxu0 0
    %2360 = vmatprep.subr.bf16.mxu0 0
    %2361 = vmatpush1.bf16.msra.mxu0 0
    %2362 = vmatprep.subr.bf16.mxu0 0
    %2363 = vmatpush1.bf16.msra.mxu0 0
    %2364 = vmatprep.subr.bf16.mxu0 0
    %2365 = vmatpush1.bf16.msra.mxu0 0
    %2366 = vmatprep.subr.bf16.mxu0 0
    %2367 = vmatpush1.bf16.msra.mxu0 0
    %2368 = vmatprep.subr.bf16.mxu0 0
    %2369 = vmatpush1.bf16.msra.mxu0 0
    %2370 = vmatprep.subr.bf16.mxu0 0
    %2371 = vmatpush1.bf16.msra.mxu0 0
    %2372 = vmatprep.subr.bf16.mxu0 0
    %2373 = vmatpush1.bf16.msra.mxu0 0
    %2374 = vmatprep.subr.bf16.mxu0 0
    %2375 = vmatpush1.bf16.msra.mxu0 0
    %2376 = vmatprep.subr.bf16.mxu0 0
    %2377 = vmatpush1.bf16.msra.mxu0 0
    %2378 = vmatprep.subr.bf16.mxu0 0
    %2379 = vmatpush1.bf16.msra.mxu0 0
    %2380 = vmatprep.subr.bf16.mxu0 0
    %2381 = vmatpush1.bf16.msra.mxu0 0
    %2382 = vmatprep.subr.bf16.mxu0 0
    %2383 = vmatpush1.bf16.msra.mxu0 0
    %2384 = vmatprep.mubr.bf16.mxu0 0
    %2385 = vmatmul.mubr.bf16.gmra.mrb[0].mxu0 %v2347
    %v2386 = vpop.f32.mrb[0].mxu0
    %v2387 = vadd.f32 0.0, %v2386
    %v2388 = vpop.f32.mrb[0].mxu0
    %v2389 = vpop.f32.mrb[0].mxu0
    %v2390 = vpop.f32.mrb[0].mxu0
    %2391 = vdwg.mxu0
    %2393 = vrot.lane.b32.xlu0 %v1576, 96
    %v2394 = vpop.permute.xlu0 %2393
    %v2396 = vsel %vm359, %v2048, 0
    %v2399 = vsel %vm858, %v2394, 0
    %2401 = vmatprep.subr.bf16.mxu0 0
    %2402 = vmatpush1.bf16.msra.mxu0 %v2399
    %2403 = vmatprep.subr.bf16.mxu0 0
    %2404 = vmatpush1.bf16.msra.mxu0 0
    %2405 = vmatprep.subr.bf16.mxu0 0
    %2406 = vmatpush1.bf16.msra.mxu0 0
    %2407 = vmatprep.subr.bf16.mxu0 0
    %2408 = vmatpush1.bf16.msra.mxu0 0
    %2409 = vmatprep.subr.bf16.mxu0 0
    %2410 = vmatpush1.bf16.msra.mxu0 0
    %2411 = vmatprep.subr.bf16.mxu0 0
    %2412 = vmatpush1.bf16.msra.mxu0 0
    %2413 = vmatprep.subr.bf16.mxu0 0
    %2414 = vmatpush1.bf16.msra.mxu0 0
    %2415 = vmatprep.subr.bf16.mxu0 0
    %2416 = vmatpush1.bf16.msra.mxu0 0
    %2417 = vmatprep.subr.bf16.mxu0 0
    %2418 = vmatpush1.bf16.msra.mxu0 0
    %2419 = vmatprep.subr.bf16.mxu0 0
    %2420 = vmatpush1.bf16.msra.mxu0 0
    %2421 = vmatprep.subr.bf16.mxu0 0
    %2422 = vmatpush1.bf16.msra.mxu0 0
    %2423 = vmatprep.subr.bf16.mxu0 0
    %2424 = vmatpush1.bf16.msra.mxu0 0
    %2425 = vmatprep.subr.bf16.mxu0 0
    %2426 = vmatpush1.bf16.msra.mxu0 0
    %2427 = vmatprep.subr.bf16.mxu0 0
    %2428 = vmatpush1.bf16.msra.mxu0 0
    %2429 = vmatprep.subr.bf16.mxu0 0
    %2430 = vmatpush1.bf16.msra.mxu0 0
    %2431 = vmatprep.subr.bf16.mxu0 0
    %2432 = vmatpush1.bf16.msra.mxu0 0
    %2433 = vmatprep.mubr.bf16.mxu0 0
    %2434 = vmatmul.mubr.bf16.gmra.mrb[0].mxu0 %v2396
    %v2435 = vpop.f32.mrb[0].mxu0
    %v2436 = vadd.f32 0.0, %v2435
    %v2437 = vpop.f32.mrb[0].mxu0
    %v2438 = vpop.f32.mrb[0].mxu0
    %v2439 = vpop.f32.mrb[0].mxu0
    %2440 = vdwg.mxu0
    %2443 = vrot.lane.b32.xlu0 %v2191, 8
    %v2444 = vpop.permute.xlu0 %2443
    %2445 = vrot.lane.b32.xlu0 %v2240, 8
    %v2446 = vpop.permute.xlu0 %2445
    %2451 = vrot.lane.b32.xlu0 %v2289, 16
    %v2452 = vpop.permute.xlu0 %2451
    %2453 = vrot.lane.b32.xlu0 %v2338, 16
    %v2454 = vpop.permute.xlu0 %2453
    %2459 = vrot.lane.b32.xlu0 %v2387, 24
    %v2460 = vpop.permute.xlu0 %2459
    %2461 = vrot.lane.b32.xlu0 %v2436, 24
    %v2462 = vpop.permute.xlu0 %2461
    %v2465 = vsel %vm359, %v2093, %v2444
    %v2466 = vsel %vm359, %v2142, %v2446
    %v2467 = vsel %vm1264, %v2465, %v2452
    %v2468 = vsel %vm1264, %v2466, %v2454
    %v2469 = vsel %vm1267, %v2467, %v2460
    %v2470 = vsel %vm1267, %v2468, %v2462
    %v2471 = vpack.c.bf16 %v2470, %v2469
    %v2473 = vlaneseq
    %v2474 = vshrl.u32 %v2473, 7
    %v2475 = vsub.s32 0, %v2474
    %v2476 = vrot.slane %v1520, %v2475
    %v2482 = vunpack.c.l.b16 %v1516
    %v2483 = vunpack.c.l.b16 %v1517
    %v2484 = vunpack.c.l.b16 %v1518
    %v2485 = vunpack.c.l.b16 %v1519
    %v2486 = vpack.c.b16 %v2483, %v2482
    %v2487 = vpack.c.b16 %v2485, %v2484
    %v2491 = vsel %vm278, %v2471, 0
    %2493 = vmatprep.subr.bf16.mxu0 0
    %2494 = vmatpush1.bf16.msra.mxu0 %v2486
    %2495 = vmatprep.subr.bf16.mxu0 0
    %2496 = vmatpush1.bf16.msra.mxu0 %v2487
    %2497 = vmatprep.subr.bf16.mxu0 0
    %2498 = vmatpush1.bf16.msra.mxu0 0
    %2499 = vmatprep.subr.bf16.mxu0 0
    %2500 = vmatpush1.bf16.msra.mxu0 0
    %2501 = vmatprep.subr.bf16.mxu0 0
    %2502 = vmatpush1.bf16.msra.mxu0 0
    %2503 = vmatprep.subr.bf16.mxu0 0
    %2504 = vmatpush1.bf16.msra.mxu0 0
    %2505 = vmatprep.subr.bf16.mxu0 0
    %2506 = vmatpush1.bf16.msra.mxu0 0
    %2507 = vmatprep.subr.bf16.mxu0 0
    %2508 = vmatpush1.bf16.msra.mxu0 0
    %2509 = vmatprep.subr.bf16.mxu0 0
    %2510 = vmatpush1.bf16.msra.mxu0 0
    %2511 = vmatprep.subr.bf16.mxu0 0
    %2512 = vmatpush1.bf16.msra.mxu0 0
    %2513 = vmatprep.subr.bf16.mxu0 0
    %2514 = vmatpush1.bf16.msra.mxu0 0
    %2515 = vmatprep.subr.bf16.mxu0 0
    %2516 = vmatpush1.bf16.msra.mxu0 0
    %2517 = vmatprep.subr.bf16.mxu0 0
    %2518 = vmatpush1.bf16.msra.mxu0 0
    %2519 = vmatprep.subr.bf16.mxu0 0
    %2520 = vmatpush1.bf16.msra.mxu0 0
    %2521 = vmatprep.subr.bf16.mxu0 0
    %2522 = vmatpush1.bf16.msra.mxu0 0
    %2523 = vmatprep.subr.bf16.mxu0 0
    %2524 = vmatpush1.bf16.msra.mxu0 0
    %2525 = vmatprep.mubr.bf16.mxu0 0
    %2526 = vmatmul.mubr.bf16.gmra.mrb[0].mxu0 %v2491
    %v2527 = vpop.f32.mrb[0].mxu0
    %v2528 = vadd.f32 %v2476, %v2527
    %v2529 = vpop.f32.mrb[0].mxu0
    %v2530 = vpop.f32.mrb[0].mxu0
    %v2531 = vadd.f32 %v2476, %v2530
    %v2532 = vpop.f32.mrb[0].mxu0
    %2533 = vdwg.mxu0
    %v2534 = vld [vmem:[#allocation16] sm:$0x1]
    %v2535 = vld [vmem:[#allocation17] sm:$0x1]
    %v2536 = vadd.f32 %v1378, %v2528
    %v2537 = vadd.f32 %v1379, %v2531
    %v2538 = vsel %vm278, %v2536, 0.0
    %2539 = vadd.xlane.f32.xlu0 %v2538
    %v2540 = vpop.xlane.xlu0 %2539
    %v2541 = vsel %vm278, %v2537, 0.0
    %2542 = vadd.xlane.f32.xlu0 %v2541
    %v2543 = vpop.xlane.xlu0 %2542
    %v2544 = vmul.f32 %v2540, %v1343
    %v2545 = vmul.f32 %v2543, %v1343
    %v2546 = vsub.f32 %v2536, %v2544
    %v2547 = vsub.f32 %v2537, %v2545
    %v2548 = vmul.f32 %v2546, %v2546
    %v2549 = vmul.f32 %v2547, %v2547
    %v2550 = vsel %vm278, %v2548, 0.0
    %2551 = vadd.xlane.f32.xlu0 %v2550
    %v2552 = vpop.xlane.xlu0 %2551
    %v2553 = vsel %vm278, %v2549, 0.0
    %2554 = vadd.xlane.f32.xlu0 %v2553
    %v2555 = vpop.xlane.xlu0 %2554
    %v2556 = vmul.f32 %v2552, %v1343
    %v2557 = vmul.f32 %v2555, %v1343
    %v2558 = vadd.f32 %v2556, 1e-05
    %v2559 = vadd.f32 %v2557, 1e-05
    %v2560 = vrsqrt.pop %v2558
    %v2561 = vrsqrt.pop %v2559
    %v2562 = vmul.f32 %v2546, %v2560
    %v2563 = vmul.f32 %v2547, %v2561
    %v2565 = vlaneseq
    %v2566 = vshrl.u32 %v2565, 7
    %v2567 = vsub.s32 0, %v2566
    %v2568 = vrot.slane %v2534, %v2567
    %v2570 = vmul.f32 %v2562, %v2568
    %v2571 = vmul.f32 %v2563, %v2568
    %v2573 = vlaneseq
    %v2574 = vshrl.u32 %v2573, 7
    %v2575 = vsub.s32 0, %v2574
    %v2576 = vrot.slane %v2535, %v2575
    %v2578 = vadd.f32 %v2570, %v2576
    %v2579 = vadd.f32 %v2571, %v2576
    %v2580 = vld [vmem:[#allocation19] sm:$0xf]
    %v2581 = vld [vmem:[#allocation19 + $0x4] sm:$0xf]
    %v2582 = vld [vmem:[#allocation19 + $0x8] sm:$0xf]
    %v2583 = vld [vmem:[#allocation19 + $0xc] sm:$0xf]
    %v2584 = vld [vmem:[#allocation20] sm:$0x1]
    %v2585 = vld [vmem:[%s18] sm:$0xf]
    %v2586 = vld [vmem:[%s18 + $0x4] sm:$0xf]
    %v2587 = vld [vmem:[%s18 + $0x8] sm:$0xf]
    %v2588 = vld [vmem:[%s18 + $0xc] sm:$0xf]
    %v2589 = vld [vmem:[%s18 + $0x10] sm:$0xf]
    %v2590 = vld [vmem:[%s18 + $0x14] sm:$0xf]
    %v2591 = vld [vmem:[%s18 + $0x18] sm:$0xf]
    %v2592 = vld [vmem:[%s18 + $0x1c] sm:$0xf]
    %v2593 = vld [vmem:[#allocation22] sm:$0x1]
    %v2594 = vpack.c.bf16 %v2579, %v2578
    %v2596 = vlaneseq
    %v2597 = vshrl.u32 %v2596, 7
    %v2598 = vsub.s32 0, %v2597
    %v2599 = vrot.slane %v2584, %v2598
    %v2605 = vunpack.c.l.b16 %v2580
    %v2606 = vunpack.c.l.b16 %v2581
    %v2607 = vunpack.c.l.b16 %v2582
    %v2608 = vunpack.c.l.b16 %v2583
    %v2609 = vpack.c.b16 %v2606, %v2605
    %v2610 = vpack.c.b16 %v2608, %v2607
    %v2614 = vsel %vm278, %v2594, 0
    %2616 = vmatprep.subr.bf16.mxu0 0
    %2617 = vmatpush1.bf16.msra.mxu0 %v2609
    %2618 = vmatprep.subr.bf16.mxu0 0
    %2619 = vmatpush1.bf16.msra.mxu0 %v2610
    %2620 = vmatprep.subr.bf16.mxu0 0
    %2621 = vmatpush1.bf16.msra.mxu0 0
    %2622 = vmatprep.subr.bf16.mxu0 0
    %2623 = vmatpush1.bf16.msra.mxu0 0
    %2624 = vmatprep.subr.bf16.mxu0 0
    %2625 = vmatpush1.bf16.msra.mxu0 0
    %2626 = vmatprep.subr.bf16.mxu0 0
    %2627 = vmatpush1.bf16.msra.mxu0 0
    %2628 = vmatprep.subr.bf16.mxu0 0
    %2629 = vmatpush1.bf16.msra.mxu0 0
    %2630 = vmatprep.subr.bf16.mxu0 0
    %2631 = vmatpush1.bf16.msra.mxu0 0
    %2632 = vmatprep.subr.bf16.mxu0 0
    %2633 = vmatpush1.bf16.msra.mxu0 0
    %2634 = vmatprep.subr.bf16.mxu0 0
    %2635 = vmatpush1.bf16.msra.mxu0 0
    %2636 = vmatprep.subr.bf16.mxu0 0
    %2637 = vmatpush1.bf16.msra.mxu0 0
    %2638 = vmatprep.subr.bf16.mxu0 0
    %2639 = vmatpush1.bf16.msra.mxu0 0
    %2640 = vmatprep.subr.bf16.mxu0 0
    %2641 = vmatpush1.bf16.msra.mxu0 0
    %2642 = vmatprep.subr.bf16.mxu0 0
    %2643 = vmatpush1.bf16.msra.mxu0 0
    %2644 = vmatprep.subr.bf16.mxu0 0
    %2645 = vmatpush1.bf16.msra.mxu0 0
    %2646 = vmatprep.subr.bf16.mxu0 0
    %2647 = vmatpush1.bf16.msra.mxu0 0
    %2648 = vmatprep.mubr.bf16.mxu0 0
    %2649 = vmatmul.mubr.bf16.gmra.mrb[0].mxu0 %v2614
    %v2650 = vpop.f32.mrb[0].mxu0
    %v2651 = vadd.f32 %v2599, %v2650
    %v2652 = vpop.f32.mrb[0].mxu0
    %v2653 = vpop.f32.mrb[0].mxu0
    %v2654 = vadd.f32 %v2599, %v2653
    %v2655 = vpop.f32.mrb[0].mxu0
    %2656 = vdwg.mxu0
    %v2657 = vmax.f32 %v2651, 0.0
    %v2658 = vmax.f32 %v2654, 0.0
    %v2659 = vpack.c.bf16 %v2658, %v2657
    %v2661 = vlaneseq
    %v2662 = vshrl.u32 %v2661, 7
    %v2663 = vsub.s32 0, %v2662
    %v2664 = vrot.slane %v2593, %v2663
    %v2674 = vunpack.c.l.b16 %v2585
    %v2675 = vunpack.c.l.b16 %v2586
    %v2676 = vunpack.c.l.b16 %v2587
    %v2677 = vunpack.c.l.b16 %v2588
    %v2678 = vunpack.c.l.b16 %v2589
    %v2679 = vunpack.c.l.b16 %v2590
    %v2680 = vunpack.c.l.b16 %v2591
    %v2681 = vunpack.c.l.b16 %v2592
    %v2682 = vpack.c.b16 %v2675, %v2674
    %v2683 = vpack.c.b16 %v2677, %v2676
    %v2684 = vpack.c.b16 %v2679, %v2678
    %v2685 = vpack.c.b16 %v2681, %v2680
    %vm2690 = vcmask 523264
    %v2692 = vsel %vm2690, %v2659, 0
    %2694 = vmatprep.subr.bf16.mxu0 0
    %2695 = vmatpush1.bf16.msra.mxu0 %v2682
    %2696 = vmatprep.subr.bf16.mxu0 0
    %2697 = vmatpush1.bf16.msra.mxu0 %v2683
    %2698 = vmatprep.subr.bf16.mxu0 0
    %2699 = vmatpush1.bf16.msra.mxu0 %v2684
    %2700 = vmatprep.subr.bf16.mxu0 0
    %2701 = vmatpush1.bf16.msra.mxu0 %v2685
    %2702 = vmatprep.subr.bf16.mxu0 0
    %2703 = vmatpush1.bf16.msra.mxu0 0
    %2704 = vmatprep.subr.bf16.mxu0 0
    %2705 = vmatpush1.bf16.msra.mxu0 0
    %2706 = vmatprep.subr.bf16.mxu0 0
    %2707 = vmatpush1.bf16.msra.mxu0 0
    %2708 = vmatprep.subr.bf16.mxu0 0
    %2709 = vmatpush1.bf16.msra.mxu0 0
    %2710 = vmatprep.subr.bf16.mxu0 0
    %2711 = vmatpush1.bf16.msra.mxu0 0
    %2712 = vmatprep.subr.bf16.mxu0 0
    %2713 = vmatpush1.bf16.msra.mxu0 0
    %2714 = vmatprep.subr.bf16.mxu0 0
    %2715 = vmatpush1.bf16.msra.mxu0 0
    %2716 = vmatprep.subr.bf16.mxu0 0
    %2717 = vmatpush1.bf16.msra.mxu0 0
    %2718 = vmatprep.subr.bf16.mxu0 0
    %2719 = vmatpush1.bf16.msra.mxu0 0
    %2720 = vmatprep.subr.bf16.mxu0 0
    %2721 = vmatpush1.bf16.msra.mxu0 0
    %2722 = vmatprep.subr.bf16.mxu0 0
    %2723 = vmatpush1.bf16.msra.mxu0 0
    %2724 = vmatprep.subr.bf16.mxu0 0
    %2725 = vmatpush1.bf16.msra.mxu0 0
    %2726 = vmatprep.mubr.bf16.mxu0 0
    %2727 = vmatmul.mubr.bf16.gmra.mrb[0].mxu0 %v2692
    %v2728 = vpop.f32.mrb[0].mxu0
    %v2729 = vadd.f32 %v2664, %v2728
    %v2730 = vpop.f32.mrb[0].mxu0
    %v2731 = vpop.f32.mrb[0].mxu0
    %v2732 = vadd.f32 %v2664, %v2731
    %v2733 = vpop.f32.mrb[0].mxu0
    %2734 = vdwg.mxu0
    %v2735 = vld [vmem:[#allocation23] sm:$0x1]
    %v2736 = vld [vmem:[#allocation25] sm:$0x1]
    %v2737 = vadd.f32 %v2578, %v2729
    %v2738 = vadd.f32 %v2579, %v2732
    %v2739 = vsel %vm278, %v2737, 0.0
    %2740 = vadd.xlane.f32.xlu0 %v2739
    %v2741 = vpop.xlane.xlu0 %2740
    %v2742 = vsel %vm278, %v2738, 0.0
    %2743 = vadd.xlane.f32.xlu0 %v2742
    %v2744 = vpop.xlane.xlu0 %2743
    %v2745 = vmul.f32 %v2741, %v1343
    %v2746 = vmul.f32 %v2744, %v1343
    %v2747 = vsub.f32 %v2737, %v2745
    %v2748 = vsub.f32 %v2738, %v2746
    %v2749 = vmul.f32 %v2747, %v2747
    %v2750 = vmul.f32 %v2748, %v2748
    %v2751 = vsel %vm278, %v2749, 0.0
    %2752 = vadd.xlane.f32.xlu0 %v2751
    %v2753 = vpop.xlane.xlu0 %2752
    %v2754 = vsel %vm278, %v2750, 0.0
    %2755 = vadd.xlane.f32.xlu0 %v2754
    %v2756 = vpop.xlane.xlu0 %2755
    %v2757 = vmul.f32 %v2753, %v1343
    %v2758 = vmul.f32 %v2756, %v1343
    %v2759 = vadd.f32 %v2757, 1e-05
    %v2760 = vadd.f32 %v2758, 1e-05
    %v2761 = vrsqrt.pop %v2759
    %v2762 = vrsqrt.pop %v2760
    %v2763 = vmul.f32 %v2747, %v2761
    %v2764 = vmul.f32 %v2748, %v2762
    %v2766 = vlaneseq
    %v2767 = vshrl.u32 %v2766, 7
    %v2768 = vsub.s32 0, %v2767
    %v2769 = vrot.slane %v2735, %v2768
    %v2771 = vmul.f32 %v2763, %v2769
    %v2772 = vmul.f32 %v2764, %v2769
    %v2774 = vlaneseq
    %v2775 = vshrl.u32 %v2774, 7
    %v2776 = vsub.s32 0, %v2775
    %v2777 = vrot.slane %v2736, %v2776
    %v2779 = vadd.f32 %v2771, %v2777
    %v2780 = vadd.f32 %v2772, %v2777
    %2781 = vst.msk [vmem:[#allocation26] sm:$0xff] %vm278, %v2779
    %2782 = vst.msk [vmem:[#allocation26 + $0x8] sm:$0xff] %vm278, %v2780
    // Predicated region
    $region150: #{decoder_layer_forward.1} parent=1 // pred_check
      _
    $region151: #{decoder_layer_forward.1} parent=1 // pred_check_branch
      %2784 = sbr.rel (0) target = $region153
    $region152: #{decoder_layer_forward.1} parent=1 // pred_region
      %s2786 = ssub.s32 256, 256
      %2787 = vsyncadd [#allocation4], %s2786
      %s2788 = sshll.u32 [#allocation26], 4
      %s2789 = int_to_ptr.vmem [resolvable:$true] %s2788
      %2794 = dma.vmem_to_hbm [thread:$0]  %s2789, 256, %s22, [#allocation4], 128, 128, 8
    $region153: #{decoder_layer_forward.1} parent=1 // pred_fallthru
      _
    // Predicated region
    $region154: #{decoder_layer_forward.1} parent=1 // pred_check
      _
    $region155: #{decoder_layer_forward.1} parent=1 // pred_check_branch
      %2796 = sbr.rel (0) target = $region157
    $region156: #{decoder_layer_forward.1} parent=1 // pred_region
      %2797 = dma.done [#allocation4], 256
    $region157: #{decoder_layer_forward.1} parent=1 // pred_fallthru
      _
    %2798 = vsyncpa [#allocation3], 1
    %2799 = vsyncpa [#allocation6], 1
    %2800 = vsyncpa [#allocation9], 1
    %2801 = vsyncpa [#allocation12], 1
    %2802 = vsyncpa [#allocation15], 1
    %2803 = vsyncpa [#allocation18], 1
    %2804 = vsyncpa [#allocation21], 1
    %2805 = vsyncpa [#allocation24], 1
    %2806 = vsyncpa [#allocation4], 1

</llo_original>
